<compile_context>
chip_gen: v7x
topology: tpu7x:2x2x1
jax: 0.10.0
libtpu: 0.0.40
codegen_flags: <defaults>
</compile_context>

<pallas_src>
import functools

import jax
import jax.numpy as jnp
import numpy as np
from jax.experimental import pallas as pl
from jax.experimental.pallas import tpu as pltpu


# --------------------------- fused forward kernel ---------------------------
def _sp_gnn_kernel(
    # per-batch data (leading block dim of 1)
    feats_ref, read_in_ref, h0_ref, l_ref, ep_ref, coef_in_ref,
    # weights (whole-array blocks, identical every grid step -> DMA'd once)
    w1a, b1a, wc1, bc1, wc2, bc2, wc3, bc3, temp,
    w2a, b2a, w2b, b2b, w2c, b2c,
    wih_m, wih_e, whh, bih, bhh,
    w4, b4,
    w3a, b3a, w3b, b3b, w3c, b3c,
    # outputs
    pyx_ref, read_out_ref, h_out_ref, coef_out_ref,
    *, K, num_iter, n_hid, first_call):
    f32 = jnp.float32

    def mm(x, w_ref, b_ref, relu=False):
        y = jnp.dot(x, w_ref[...], preferred_element_type=f32) + b_ref[...]
        return jnp.maximum(y, 0.0) if relu else y

    Lb = l_ref[0]                       # (N, N)
    ep = ep_ref[0]                      # (N, 2) == [x_hat_EP, variance_EP]
    hidden = h0_ref[0]                  # (N, n_hid)
    read_cur = read_in_ref[0]           # (N, su)

    if first_call:
        # initial node embedding + attention-weighted Chebyshev coefficients
        x = feats_ref[0]                # (N, n_feat)
        nodes = mm(x, w1a, b1a)         # (N, su)
        ch = mm(x, wc1, bc1, relu=True)
        ch = mm(ch, wc2, bc2, relu=True)
        ch = mm(ch, wc3, bc3)           # (N, K+1)
        att = jnp.dot(ch, temp[...], preferred_element_type=f32)    # (N, 1)
        att = att - jnp.max(att, axis=0, keepdims=True)
        e = jnp.exp(att)
        score = e / jnp.sum(e, axis=0, keepdims=True)                # softmax over nodes
        coef = jnp.sum(score * ch, axis=0, keepdims=True)            # (1, K+1)
    else:
        nodes = read_cur                # init_nodes = read_gru when GNN_iter > 0
        coef = coef_in_ref[0]           # stored self.coef from a previous call
    coef_out_ref[0] = coef

    for _ in range(num_iter):
        feat = mm(nodes, w2a, b2a, relu=True)
        feat = mm(feat, w2b, b2b, relu=True)
        feat = mm(feat, w2c, b2c, relu=True)                         # (N, su)

        # Chebyshev filter: coef0*T0 + coef1*T1 + sum_{i>=2} coef_i/i * T_i
        tx0 = feat
        tx1 = jnp.dot(Lb, feat, preferred_element_type=f32)
        msg = coef[0:1, 0:1] * tx0 + coef[0:1, 1:2] * tx1
        for i in range(2, K + 1):
            tx2 = 2.0 * jnp.dot(Lb, tx1, preferred_element_type=f32) - tx0
            msg = msg + (coef[0:1, i:i + 1] * (1.0 / i)) * tx2
            tx0, tx1 = tx1, tx2

        # GRUCell on concat([msg, x_hat, var]); the concat is folded into two
        # matmuls via the row-split of W_ih (gate order: r, z, n).
        gi = (jnp.dot(msg, wih_m[...], preferred_element_type=f32)
              + jnp.dot(ep, wih_e[...], preferred_element_type=f32)
              + bih[...])
        gh = jnp.dot(hidden, whh[...], preferred_element_type=f32) + bhh[...]
        H = n_hid
        r = jax.nn.sigmoid(gi[:, 0:H] + gh[:, 0:H])
        z = jax.nn.sigmoid(gi[:, H:2 * H] + gh[:, H:2 * H])
        n = jnp.tanh(gi[:, 2 * H:3 * H] + r * gh[:, 2 * H:3 * H])
        hidden = (1.0 - z) * n + z * hidden                          # (N, n_hid)
        read_cur = mm(hidden, w4, b4)                                # (N, su)
        nodes = read_cur

    # readout MLP (no activations, matching the reference)
    r1 = mm(read_cur, w3a, b3a)
    r2 = mm(r1, w3b, b3b)
    pyx = mm(r2, w3c, b3c)

    pyx_ref[0] = pyx
    read_out_ref[0] = read_cur
    h_out_ref[0] = hidden


# ------------------------------ jitted wrapper -------------------------------
@functools.partial(jax.jit, static_argnames=("GNN_iter", "K", "num_iter"))
def sp_gnn_forward(params, read_gru, gru_init, init_features, L, noise_info,
                   x_hat_EP, variance_EP, *, GNN_iter, K, num_iter):
    """Returns (p_y_x, read_gru, gru_hidden, coef); coef is the stateful self.coef."""
    del noise_info  # unused by the reference forward
    f32 = jnp.float32
    B, N, n_feat = init_features.shape
    su = params['fc1a'][0].shape[1]
    n_hid = params['fc2a'][0].shape[1]
    num_classes = params['fc3c'][0].shape[1]

    first_call = (GNN_iter == 0)
    coef_in = params.get('coef')
    if coef_in is None:
        coef_in = jnp.zeros((B, K + 1), f32)
    coef_in3 = coef_in.reshape(B, 1, K + 1).astype(f32)   # lane-safe block shape

    ep = jnp.stack([x_hat_EP, variance_EP], axis=-1).astype(f32)     # (B, N, 2)

    def wb(name):
        w, b = params[name]
        return w.astype(f32), b.reshape(1, -1).astype(f32)

    w1a, b1a = wb('fc1a')
    wc1, bc1 = wb('coef_lin1')
    wc2, bc2 = wb('coef_lin2')
    wc3, bc3 = wb('coef_lin3')
    w2a, b2a = wb('fc2a')
    w2b, b2b = wb('fc2b')
    w2c, b2c = wb('fc2c')
    w3a, b3a = wb('fc3a')
    w3b, b3b = wb('fc3b')
    w3c, b3c = wb('fc3c')
    w4, b4 = wb('fc4')
    temp = params['temp'].reshape(K + 1, 1).astype(f32)
    wih = params['gru_wih'].astype(f32)
    wih_m, wih_e = wih[:su, :], wih[su:, :]     # message rows / (x_hat, var) rows
    whh = params['gru_whh'].astype(f32)
    bih = params['gru_bih'].reshape(1, -1).astype(f32)
    bhh = params['gru_bhh'].reshape(1, -1).astype(f32)

    weights = (w1a, b1a, wc1, bc1, wc2, bc2, wc3, bc3, temp,
               w2a, b2a, w2b, b2b, w2c, b2c,
               wih_m, wih_e, whh, bih, bhh,
               w4, b4,
               w3a, b3a, w3b, b3b, w3c, b3c)

    def rep_spec(shape):            # same whole-array block every grid step
        nd = len(shape)
        return pl.BlockSpec(tuple(shape), lambda b, nd=nd: (0,) * nd)

    def batch_spec(shape):          # one batch element per grid step
        nd = len(shape)
        return pl.BlockSpec((1,) + tuple(shape), lambda b, nd=nd: (b,) + (0,) * nd)

    in_specs = ([batch_spec((N, n_feat)), batch_spec((N, su)), batch_spec((N, n_hid)),
                 batch_spec((N, N)), batch_spec((N, 2)), batch_spec((1, K + 1))]
                + [rep_spec(w.shape) for w in weights])
    out_specs = (batch_spec((N, num_classes)), batch_spec((N, su)),
                 batch_spec((N, n_hid)), batch_spec((1, K + 1)))
    out_shape = (jax.ShapeDtypeStruct((B, N, num_classes), f32),
                 jax.ShapeDtypeStruct((B, N, su), f32),
                 jax.ShapeDtypeStruct((B, N, n_hid), f32),
                 jax.ShapeDtypeStruct((B, 1, K + 1), f32))

    kernel = functools.partial(_sp_gnn_kernel, K=K, num_iter=num_iter,
                               n_hid=n_hid, first_call=first_call)

    p_y_x, read_out, gru_out, coef_out = pl.pallas_call(
        kernel,
        out_shape=out_shape,
        grid=(B,),
        in_specs=in_specs,
        out_specs=out_specs,
        compiler_params=pltpu.CompilerParams(
            dimension_semantics=("parallel",)),   # batches independent -> both TCs on v7x
    )(init_features.astype(f32), read_gru.astype(f32), gru_init.astype(f32),
      L.astype(f32), ep, coef_in3, *weights)

    return p_y_x, read_out, gru_out, coef_out.reshape(B, K + 1)


# --------------------- pure-JAX reference (for verification) -----------------
def _reference_forward(params, read_gru, gru_init, init_features, L,
                       x_hat_EP, variance_EP, *, GNN_iter, K, num_iter):
    hp = jax.lax.Precision.HIGHEST

    def lin(x, wb, relu=False):
        w, b = wb
        y = jnp.matmul(x, w, precision=hp) + b
        return jnp.maximum(y, 0.0) if relu else y

    coef = params.get('coef')
    gru_hidden = gru_init
    read = read_gru
    for idx in range(num_iter):
        if idx == 0 and GNN_iter == 0:
            init_nodes = lin(init_features, params['fc1a'])
            ch = lin(init_features, params['coef_lin1'], relu=True)
            ch = lin(ch, params['coef_lin2'], relu=True)
            ch = lin(ch, params['coef_lin3'])
            att = jnp.einsum('bnk,k->bn', ch, params['temp'], precision=hp)
            score = jax.nn.softmax(att, axis=1)
            coef = jnp.einsum('bn,bnk->bk', score, ch, precision=hp)
        else:
            init_nodes = read
        feat = lin(init_nodes, params['fc2a'], relu=True)
        feat = lin(feat, params['fc2b'], relu=True)
        feat = lin(feat, params['fc2c'], relu=True)
        tx0 = feat
        tx1 = jnp.einsum('bnm,bmf->bnf', L, feat, precision=hp)
        out = coef[:, 0, None, None] * tx0 + coef[:, 1, None, None] * tx1
        for i in range(2, K + 1):
            tx2 = 2.0 * jnp.einsum('bnm,bmf->bnf', L, tx1, precision=hp) - tx0
            out = out + coef[:, i, None, None] / i * tx2
            tx0, tx1 = tx1, tx2
        gin = jnp.concatenate(
            [out, x_hat_EP[..., None], variance_EP[..., None]], axis=2)
        B, N, _ = gin.shape
        x2 = gin.reshape(B * N, -1)
        h2 = gru_hidden.reshape(B * N, -1)
        gi = jnp.matmul(x2, params['gru_wih'], precision=hp) + params['gru_bih']
        gh = jnp.matmul(h2, params['gru_whh'], precision=hp) + params['gru_bhh']
        H = h2.shape[-1]
        r = jax.nn.sigmoid(gi[:, :H] + gh[:, :H])
        z = jax.nn.sigmoid(gi[:, H:2 * H] + gh[:, H:2 * H])
        n = jnp.tanh(gi[:, 2 * H:] + r * gh[:, 2 * H:])
        h2 = (1.0 - z) * n + z * h2
        gru_hidden = h2.reshape(B, N, H)
        read = lin(gru_hidden, params['fc4'])
    r1 = lin(read, params['fc3a'])
    r2 = lin(r1, params['fc3b'])
    pyx = lin(r2, params['fc3c'])
    return pyx, read, gru_hidden, coef


# ------------------------------- param init ----------------------------------
def init_linear(key, fan_in, fan_out):
    # PyTorch nn.Linear default: U(-1/sqrt(fan_in), 1/sqrt(fan_in))
    k1, k2 = jax.random.split(key)
    bound = 1.0 / (fan_in ** 0.5)
    w = jax.random.uniform(k1, (fan_in, fan_out), jnp.float32, -bound, bound)
    b = jax.random.uniform(k2, (fan_out,), jnp.float32, -bound, bound)
    return w, b


if __name__ == "__main__":
    # Module hyper-parameters (small, consistent with the forward semantics)
    K, num_classes, num_iter, n_hid, su, n_feat = 3, 4, 2, 32, 8, 8
    B, N = 2, 16

    key = jax.random.PRNGKey(0)
    keys = jax.random.split(key, 20)

    params = {
        'fc1a': init_linear(keys[0], n_feat, su),
        'fc2a': init_linear(keys[1], su, n_hid),
        'fc2b': init_linear(keys[2], n_hid, n_hid // 2),
        'fc2c': init_linear(keys[3], n_hid // 2, su),
        'fc3a': init_linear(keys[4], su, n_hid),
        'fc3b': init_linear(keys[5], n_hid, n_hid // 2),
        'fc3c': init_linear(keys[6], n_hid // 2, num_classes),
        'fc4': init_linear(keys[7], n_hid, su),
        'coef_lin1': init_linear(keys[8], n_feat, n_hid),
        'coef_lin2': init_linear(keys[9], n_hid, n_hid // 2),
        'coef_lin3': init_linear(keys[10], n_hid // 2, K + 1),
    }
    # GRUCell(su+2, n_hid) params (gate order r, z, n), stored transposed
    gbound = 1.0 / (n_hid ** 0.5)
    params['gru_wih'] = jax.random.uniform(keys[11], (su + 2, 3 * n_hid), jnp.float32, -gbound, gbound)
    params['gru_whh'] = jax.random.uniform(keys[12], (n_hid, 3 * n_hid), jnp.float32, -gbound, gbound)
    params['gru_bih'] = jax.random.uniform(keys[13], (3 * n_hid,), jnp.float32, -gbound, gbound)
    params['gru_bhh'] = jax.random.uniform(keys[14], (3 * n_hid,), jnp.float32, -gbound, gbound)
    # self.temp: (K+1,) Parameter; reset_parameters sets temp[0] = 1.0
    temp = jax.random.uniform(keys[15], (K + 1,), jnp.float32, -1.0, 1.0)
    params['temp'] = temp.at[0].set(1.0)

    # Forward inputs
    read_gru = jax.random.normal(keys[16], (B, N, su), jnp.float32)
    gru_init = jax.random.normal(keys[17], (B, N, n_hid), jnp.float32)
    init_features = jax.random.normal(keys[18], (B, N, n_feat), jnp.float32)
    L = jax.random.normal(keys[19], (B, N, N), jnp.float32) / N
    x_hat_EP = jax.random.normal(jax.random.PRNGKey(1), (B, N), jnp.float32)
    variance_EP = jnp.abs(jax.random.normal(jax.random.PRNGKey(2), (B, N), jnp.float32))
    noise_info = jnp.zeros((B,), jnp.float32)   # unused by the reference forward

    # ---- outer GNN iteration 0 (coefficients computed inside the kernel) ----
    p_y_x, read_out, gru_hid, coef = sp_gnn_forward(
        params, read_gru, gru_init, init_features, L, noise_info,
        x_hat_EP, variance_EP, GNN_iter=0, K=K, num_iter=num_iter)
    jax.block_until_ready((p_y_x, read_out, gru_hid, coef))

    assert p_y_x.shape == (B, N, num_classes)
    assert read_out.shape == (B, N, su)
    assert gru_hid.shape == (B, N, n_hid)
    assert coef.shape == (B, K + 1)

    ref = _reference_forward(params, read_gru, gru_init, init_features, L,
                             x_hat_EP, variance_EP, GNN_iter=0, K=K, num_iter=num_iter)
    for got, want in zip((p_y_x, read_out, gru_hid, coef), ref):
        np.testing.assert_allclose(np.asarray(got), np.asarray(want), rtol=5e-3, atol=5e-3)

    # ---- outer GNN iteration 1 (reuses the stored coef, like self.coef) ----
    params2 = dict(params, coef=coef)
    p_y_x2, read_out2, gru_hid2, coef2 = sp_gnn_forward(
        params2, read_out, gru_hid, init_features, L, noise_info,
        x_hat_EP, variance_EP, GNN_iter=1, K=K, num_iter=num_iter)
    jax.block_until_ready((p_y_x2, read_out2, gru_hid2, coef2))

    ref2 = _reference_forward(params2, read_out, gru_hid, init_features, L,
                              x_hat_EP, variance_EP, GNN_iter=1, K=K, num_iter=num_iter)
    for got, want in zip((p_y_x2, read_out2, gru_hid2, coef2), ref2):
        np.testing.assert_allclose(np.asarray(got), np.asarray(want), rtol=5e-3, atol=5e-3)

    print("KERNEL_OK")
</pallas_src>

<mosaic_0001>
module attributes {stable_mosaic.version = 11 : i64} {
  func.func @_sp_gnn_kernel(%arg0: i32, %arg1: memref<1x16x8xf32, #tpu.memory_space<vmem>>, %arg2: memref<1x16x8xf32, #tpu.memory_space<vmem>>, %arg3: memref<1x16x32xf32, #tpu.memory_space<vmem>>, %arg4: memref<1x16x16xf32, #tpu.memory_space<vmem>>, %arg5: memref<1x16x2xf32, #tpu.memory_space<vmem>>, %arg6: memref<1x1x4xf32, #tpu.memory_space<vmem>>, %arg7: memref<8x8xf32, #tpu.memory_space<vmem>>, %arg8: memref<1x8xf32, #tpu.memory_space<vmem>>, %arg9: memref<8x32xf32, #tpu.memory_space<vmem>>, %arg10: memref<1x32xf32, #tpu.memory_space<vmem>>, %arg11: memref<32x16xf32, #tpu.memory_space<vmem>>, %arg12: memref<1x16xf32, #tpu.memory_space<vmem>>, %arg13: memref<16x4xf32, #tpu.memory_space<vmem>>, %arg14: memref<1x4xf32, #tpu.memory_space<vmem>>, %arg15: memref<4x1xf32, #tpu.memory_space<vmem>>, %arg16: memref<8x32xf32, #tpu.memory_space<vmem>>, %arg17: memref<1x32xf32, #tpu.memory_space<vmem>>, %arg18: memref<32x16xf32, #tpu.memory_space<vmem>>, %arg19: memref<1x16xf32, #tpu.memory_space<vmem>>, %arg20: memref<16x8xf32, #tpu.memory_space<vmem>>, %arg21: memref<1x8xf32, #tpu.memory_space<vmem>>, %arg22: memref<8x96xf32, #tpu.memory_space<vmem>>, %arg23: memref<2x96xf32, #tpu.memory_space<vmem>>, %arg24: memref<32x96xf32, #tpu.memory_space<vmem>>, %arg25: memref<1x96xf32, #tpu.memory_space<vmem>>, %arg26: memref<1x96xf32, #tpu.memory_space<vmem>>, %arg27: memref<32x8xf32, #tpu.memory_space<vmem>>, %arg28: memref<1x8xf32, #tpu.memory_space<vmem>>, %arg29: memref<8x32xf32, #tpu.memory_space<vmem>>, %arg30: memref<1x32xf32, #tpu.memory_space<vmem>>, %arg31: memref<32x16xf32, #tpu.memory_space<vmem>>, %arg32: memref<1x16xf32, #tpu.memory_space<vmem>>, %arg33: memref<16x4xf32, #tpu.memory_space<vmem>>, %arg34: memref<1x4xf32, #tpu.memory_space<vmem>>, %arg35: memref<1x16x4xf32, #tpu.memory_space<vmem>>, %arg36: memref<1x16x8xf32, #tpu.memory_space<vmem>>, %arg37: memref<1x16x32xf32, #tpu.memory_space<vmem>>, %arg38: memref<1x1x4xf32, #tpu.memory_space<vmem>>) attributes {dimension_semantics = [#tpu.dimension_semantics<parallel>], iteration_bounds = array<i64: 2>, scalar_prefetch = 0 : i64, scratch_operands = 0 : i64, tpu.core_type = #tpu.core_type<tc>, window_params = [{transform_indices = @transform_0, window_bounds = array<i64: 1, 16, 8>}, {transform_indices = @transform_1, window_bounds = array<i64: 1, 16, 8>}, {transform_indices = @transform_2, window_bounds = array<i64: 1, 16, 32>}, {transform_indices = @transform_3, window_bounds = array<i64: 1, 16, 16>}, {transform_indices = @transform_4, window_bounds = array<i64: 1, 16, 2>}, {transform_indices = @transform_5, window_bounds = array<i64: 1, 1, 4>}, {pipeline_mode = #tpu.pipeline_mode<synchronous>, transform_indices = @transform_6, window_bounds = array<i64: 8, 8>}, {pipeline_mode = #tpu.pipeline_mode<synchronous>, transform_indices = @transform_7, window_bounds = array<i64: 1, 8>}, {pipeline_mode = #tpu.pipeline_mode<synchronous>, transform_indices = @transform_8, window_bounds = array<i64: 8, 32>}, {pipeline_mode = #tpu.pipeline_mode<synchronous>, transform_indices = @transform_9, window_bounds = array<i64: 1, 32>}, {pipeline_mode = #tpu.pipeline_mode<synchronous>, transform_indices = @transform_10, window_bounds = array<i64: 32, 16>}, {pipeline_mode = #tpu.pipeline_mode<synchronous>, transform_indices = @transform_11, window_bounds = array<i64: 1, 16>}, {pipeline_mode = #tpu.pipeline_mode<synchronous>, transform_indices = @transform_12, window_bounds = array<i64: 16, 4>}, {pipeline_mode = #tpu.pipeline_mode<synchronous>, transform_indices = @transform_13, window_bounds = array<i64: 1, 4>}, {pipeline_mode = #tpu.pipeline_mode<synchronous>, transform_indices = @transform_14, window_bounds = array<i64: 4, 1>}, {pipeline_mode = #tpu.pipeline_mode<synchronous>, transform_indices = @transform_15, window_bounds = array<i64: 8, 32>}, {pipeline_mode = #tpu.pipeline_mode<synchronous>, transform_indices = @transform_16, window_bounds = array<i64: 1, 32>}, {pipeline_mode = #tpu.pipeline_mode<synchronous>, transform_indices = @transform_17, window_bounds = array<i64: 32, 16>}, {pipeline_mode = #tpu.pipeline_mode<synchronous>, transform_indices = @transform_18, window_bounds = array<i64: 1, 16>}, {pipeline_mode = #tpu.pipeline_mode<synchronous>, transform_indices = @transform_19, window_bounds = array<i64: 16, 8>}, {pipeline_mode = #tpu.pipeline_mode<synchronous>, transform_indices = @transform_20, window_bounds = array<i64: 1, 8>}, {pipeline_mode = #tpu.pipeline_mode<synchronous>, transform_indices = @transform_21, window_bounds = array<i64: 8, 96>}, {pipeline_mode = #tpu.pipeline_mode<synchronous>, transform_indices = @transform_22, window_bounds = array<i64: 2, 96>}, {pipeline_mode = #tpu.pipeline_mode<synchronous>, transform_indices = @transform_23, window_bounds = array<i64: 32, 96>}, {pipeline_mode = #tpu.pipeline_mode<synchronous>, transform_indices = @transform_24, window_bounds = array<i64: 1, 96>}, {pipeline_mode = #tpu.pipeline_mode<synchronous>, transform_indices = @transform_25, window_bounds = array<i64: 1, 96>}, {pipeline_mode = #tpu.pipeline_mode<synchronous>, transform_indices = @transform_26, window_bounds = array<i64: 32, 8>}, {pipeline_mode = #tpu.pipeline_mode<synchronous>, transform_indices = @transform_27, window_bounds = array<i64: 1, 8>}, {pipeline_mode = #tpu.pipeline_mode<synchronous>, transform_indices = @transform_28, window_bounds = array<i64: 8, 32>}, {pipeline_mode = #tpu.pipeline_mode<synchronous>, transform_indices = @transform_29, window_bounds = array<i64: 1, 32>}, {pipeline_mode = #tpu.pipeline_mode<synchronous>, transform_indices = @transform_30, window_bounds = array<i64: 32, 16>}, {pipeline_mode = #tpu.pipeline_mode<synchronous>, transform_indices = @transform_31, window_bounds = array<i64: 1, 16>}, {pipeline_mode = #tpu.pipeline_mode<synchronous>, transform_indices = @transform_32, window_bounds = array<i64: 16, 4>}, {pipeline_mode = #tpu.pipeline_mode<synchronous>, transform_indices = @transform_33, window_bounds = array<i64: 1, 4>}, {transform_indices = @transform_34, window_bounds = array<i64: 1, 16, 4>}, {transform_indices = @transform_35, window_bounds = array<i64: 1, 16, 8>}, {transform_indices = @transform_36, window_bounds = array<i64: 1, 16, 32>}, {transform_indices = @transform_37, window_bounds = array<i64: 1, 1, 4>}]} {
    %c0 = arith.constant 0 : index
    %c0_0 = arith.constant 0 : index
    %c0_1 = arith.constant 0 : index
    %0 = vector.load %arg4[%c0, %c0_0, %c0_1] : memref<1x16x16xf32, #tpu.memory_space<vmem>>, vector<1x16x16xf32>
    %1 = vector.shape_cast %0 : vector<1x16x16xf32> to vector<16x16xf32>
    %c0_2 = arith.constant 0 : index
    %c0_3 = arith.constant 0 : index
    %c0_4 = arith.constant 0 : index
    %2 = vector.load %arg5[%c0_2, %c0_3, %c0_4] : memref<1x16x2xf32, #tpu.memory_space<vmem>>, vector<1x16x2xf32>
    %3 = vector.shape_cast %2 : vector<1x16x2xf32> to vector<16x2xf32>
    %c0_5 = arith.constant 0 : index
    %c0_6 = arith.constant 0 : index
    %c0_7 = arith.constant 0 : index
    %4 = vector.load %arg3[%c0_5, %c0_6, %c0_7] : memref<1x16x32xf32, #tpu.memory_space<vmem>>, vector<1x16x32xf32>
    %5 = vector.shape_cast %4 : vector<1x16x32xf32> to vector<16x32xf32>
    %c0_8 = arith.constant 0 : index
    %c0_9 = arith.constant 0 : index
    %c0_10 = arith.constant 0 : index
    %6 = vector.load %arg1[%c0_8, %c0_9, %c0_10] : memref<1x16x8xf32, #tpu.memory_space<vmem>>, vector<1x16x8xf32>
    %7 = vector.shape_cast %6 : vector<1x16x8xf32> to vector<16x8xf32>
    %c0_11 = arith.constant 0 : index
    %c0_12 = arith.constant 0 : index
    %8 = vector.load %arg7[%c0_11, %c0_12] : memref<8x8xf32, #tpu.memory_space<vmem>>, vector<8x8xf32>
    %cst = arith.constant dense<0.000000e+00> : vector<16x8xf32>
    %9 = tpu.matmul %7, %8, %cst {dimension_numbers = #tpu.dot_dimension_numbers<[1], [0], [0], [1], [0, 0, 1, 1], [], []>} : vector<16x8xf32>, vector<8x8xf32>, vector<16x8xf32> -> vector<16x8xf32>
    %c0_13 = arith.constant 0 : index
    %c0_14 = arith.constant 0 : index
    %10 = vector.load %arg8[%c0_13, %c0_14] : memref<1x8xf32, #tpu.memory_space<vmem>>, vector<1x8xf32>
    %11 = vector.broadcast %10 : vector<1x8xf32> to vector<16x8xf32>
    %12 = arith.addf %9, %11 : vector<16x8xf32>
    %c0_15 = arith.constant 0 : index
    %c0_16 = arith.constant 0 : index
    %13 = vector.load %arg9[%c0_15, %c0_16] : memref<8x32xf32, #tpu.memory_space<vmem>>, vector<8x32xf32>
    %cst_17 = arith.constant dense<0.000000e+00> : vector<16x32xf32>
    %14 = tpu.matmul %7, %13, %cst_17 {dimension_numbers = #tpu.dot_dimension_numbers<[1], [0], [0], [1], [0, 0, 1, 1], [], []>} : vector<16x8xf32>, vector<8x32xf32>, vector<16x32xf32> -> vector<16x32xf32>
    %c0_18 = arith.constant 0 : index
    %c0_19 = arith.constant 0 : index
    %15 = vector.load %arg10[%c0_18, %c0_19] : memref<1x32xf32, #tpu.memory_space<vmem>>, vector<1x32xf32>
    %16 = vector.broadcast %15 : vector<1x32xf32> to vector<16x32xf32>
    %17 = arith.addf %14, %16 : vector<16x32xf32>
    %cst_20 = arith.constant 0.000000e+00 : f32
    %18 = vector.broadcast %cst_20 : f32 to vector<16x32xf32>
    %19 = arith.maximumf %17, %18 : vector<16x32xf32>
    %c0_21 = arith.constant 0 : index
    %c0_22 = arith.constant 0 : index
    %20 = vector.load %arg11[%c0_21, %c0_22] : memref<32x16xf32, #tpu.memory_space<vmem>>, vector<32x16xf32>
    %cst_23 = arith.constant dense<0.000000e+00> : vector<16x16xf32>
    %21 = tpu.matmul %19, %20, %cst_23 {dimension_numbers = #tpu.dot_dimension_numbers<[1], [0], [0], [1], [0, 0, 1, 1], [], []>} : vector<16x32xf32>, vector<32x16xf32>, vector<16x16xf32> -> vector<16x16xf32>
    %c0_24 = arith.constant 0 : index
    %c0_25 = arith.constant 0 : index
    %22 = vector.load %arg12[%c0_24, %c0_25] : memref<1x16xf32, #tpu.memory_space<vmem>>, vector<1x16xf32>
    %23 = vector.broadcast %22 : vector<1x16xf32> to vector<16x16xf32>
    %24 = arith.addf %21, %23 : vector<16x16xf32>
    %cst_26 = arith.constant 0.000000e+00 : f32
    %25 = vector.broadcast %cst_26 : f32 to vector<16x16xf32>
    %26 = arith.maximumf %24, %25 : vector<16x16xf32>
    %c0_27 = arith.constant 0 : index
    %c0_28 = arith.constant 0 : index
    %27 = vector.load %arg13[%c0_27, %c0_28] : memref<16x4xf32, #tpu.memory_space<vmem>>, vector<16x4xf32>
    %cst_29 = arith.constant dense<0.000000e+00> : vector<16x4xf32>
    %28 = tpu.matmul %26, %27, %cst_29 {dimension_numbers = #tpu.dot_dimension_numbers<[1], [0], [0], [1], [0, 0, 1, 1], [], []>} : vector<16x16xf32>, vector<16x4xf32>, vector<16x4xf32> -> vector<16x4xf32>
    %c0_30 = arith.constant 0 : index
    %c0_31 = arith.constant 0 : index
    %29 = vector.load %arg14[%c0_30, %c0_31] : memref<1x4xf32, #tpu.memory_space<vmem>>, vector<1x4xf32>
    %30 = vector.broadcast %29 : vector<1x4xf32> to vector<16x4xf32>
    %31 = arith.addf %28, %30 : vector<16x4xf32>
    %c0_32 = arith.constant 0 : index
    %c0_33 = arith.constant 0 : index
    %32 = vector.load %arg15[%c0_32, %c0_33] : memref<4x1xf32, #tpu.memory_space<vmem>>, vector<4x1xf32>
    %cst_34 = arith.constant dense<0.000000e+00> : vector<16x1xf32>
    %33 = tpu.matmul %31, %32, %cst_34 {dimension_numbers = #tpu.dot_dimension_numbers<[1], [0], [0], [1], [0, 0, 1, 1], [], []>} : vector<16x4xf32>, vector<4x1xf32>, vector<16x1xf32> -> vector<16x1xf32>
    %cst_35 = arith.constant dense<0xFF800000> : vector<1xf32>
    %34 = vector.multi_reduction <maximumf>, %33, %cst_35 [0] : vector<16x1xf32> to vector<1xf32>
    %35 = vector.shape_cast %34 : vector<1xf32> to vector<1x1xf32>
    %36 = vector.broadcast %35 : vector<1x1xf32> to vector<16x1xf32>
    %37 = arith.subf %33, %36 : vector<16x1xf32>
    %38 = math.exp %37 : vector<16x1xf32>
    %cst_36 = arith.constant dense<0.000000e+00> : vector<1xf32>
    %39 = vector.multi_reduction <add>, %38, %cst_36 [0] : vector<16x1xf32> to vector<1xf32>
    %40 = vector.shape_cast %39 : vector<1xf32> to vector<1x1xf32>
    %41 = vector.broadcast %40 : vector<1x1xf32> to vector<16x1xf32>
    %42 = arith.divf %38, %41 : vector<16x1xf32>
    %43 = vector.broadcast %42 : vector<16x1xf32> to vector<16x4xf32>
    %44 = arith.mulf %43, %31 : vector<16x4xf32>
    %cst_37 = arith.constant dense<0.000000e+00> : vector<4xf32>
    %45 = vector.multi_reduction <add>, %44, %cst_37 [0] : vector<16x4xf32> to vector<4xf32>
    %46 = vector.shape_cast %45 : vector<4xf32> to vector<1x4xf32>
    %c0_38 = arith.constant 0 : index
    %c0_39 = arith.constant 0 : index
    %c0_40 = arith.constant 0 : index
    %47 = vector.load %arg38[%c0_38, %c0_39, %c0_40] : memref<1x1x4xf32, #tpu.memory_space<vmem>>, vector<1x1x4xf32>
    %48 = vector.shape_cast %47 : vector<1x1x4xf32> to vector<1x4xf32>
    %49 = vector.shape_cast %46 : vector<1x4xf32> to vector<1x1x4xf32>
    tpu.vector_store %arg38[%c0_38, %c0_39, %c0_40], %49 {strides = array<i32>} : memref<1x1x4xf32, #tpu.memory_space<vmem>>, vector<1x1x4xf32>,
    %c0_41 = arith.constant 0 : index
    %c0_42 = arith.constant 0 : index
    %50 = vector.load %arg16[%c0_41, %c0_42] : memref<8x32xf32, #tpu.memory_space<vmem>>, vector<8x32xf32>
    %cst_43 = arith.constant dense<0.000000e+00> : vector<16x32xf32>
    %51 = tpu.matmul %12, %50, %cst_43 {dimension_numbers = #tpu.dot_dimension_numbers<[1], [0], [0], [1], [0, 0, 1, 1], [], []>} : vector<16x8xf32>, vector<8x32xf32>, vector<16x32xf32> -> vector<16x32xf32>
    %c0_44 = arith.constant 0 : index
    %c0_45 = arith.constant 0 : index
    %52 = vector.load %arg17[%c0_44, %c0_45] : memref<1x32xf32, #tpu.memory_space<vmem>>, vector<1x32xf32>
    %53 = vector.broadcast %52 : vector<1x32xf32> to vector<16x32xf32>
    %54 = arith.addf %51, %53 : vector<16x32xf32>
    %cst_46 = arith.constant 0.000000e+00 : f32
    %55 = vector.broadcast %cst_46 : f32 to vector<16x32xf32>
    %56 = arith.maximumf %54, %55 : vector<16x32xf32>
    %c0_47 = arith.constant 0 : index
    %c0_48 = arith.constant 0 : index
    %57 = vector.load %arg18[%c0_47, %c0_48] : memref<32x16xf32, #tpu.memory_space<vmem>>, vector<32x16xf32>
    %cst_49 = arith.constant dense<0.000000e+00> : vector<16x16xf32>
    %58 = tpu.matmul %56, %57, %cst_49 {dimension_numbers = #tpu.dot_dimension_numbers<[1], [0], [0], [1], [0, 0, 1, 1], [], []>} : vector<16x32xf32>, vector<32x16xf32>, vector<16x16xf32> -> vector<16x16xf32>
    %c0_50 = arith.constant 0 : index
    %c0_51 = arith.constant 0 : index
    %59 = vector.load %arg19[%c0_50, %c0_51] : memref<1x16xf32, #tpu.memory_space<vmem>>, vector<1x16xf32>
    %60 = vector.broadcast %59 : vector<1x16xf32> to vector<16x16xf32>
    %61 = arith.addf %58, %60 : vector<16x16xf32>
    %cst_52 = arith.constant 0.000000e+00 : f32
    %62 = vector.broadcast %cst_52 : f32 to vector<16x16xf32>
    %63 = arith.maximumf %61, %62 : vector<16x16xf32>
    %c0_53 = arith.constant 0 : index
    %c0_54 = arith.constant 0 : index
    %64 = vector.load %arg20[%c0_53, %c0_54] : memref<16x8xf32, #tpu.memory_space<vmem>>, vector<16x8xf32>
    %cst_55 = arith.constant dense<0.000000e+00> : vector<16x8xf32>
    %65 = tpu.matmul %63, %64, %cst_55 {dimension_numbers = #tpu.dot_dimension_numbers<[1], [0], [0], [1], [0, 0, 1, 1], [], []>} : vector<16x16xf32>, vector<16x8xf32>, vector<16x8xf32> -> vector<16x8xf32>
    %c0_56 = arith.constant 0 : index
    %c0_57 = arith.constant 0 : index
    %66 = vector.load %arg21[%c0_56, %c0_57] : memref<1x8xf32, #tpu.memory_space<vmem>>, vector<1x8xf32>
    %67 = vector.broadcast %66 : vector<1x8xf32> to vector<16x8xf32>
    %68 = arith.addf %65, %67 : vector<16x8xf32>
    %cst_58 = arith.constant 0.000000e+00 : f32
    %69 = vector.broadcast %cst_58 : f32 to vector<16x8xf32>
    %70 = arith.maximumf %68, %69 : vector<16x8xf32>
    %cst_59 = arith.constant dense<0.000000e+00> : vector<16x8xf32>
    %71 = tpu.matmul %1, %70, %cst_59 {dimension_numbers = #tpu.dot_dimension_numbers<[1], [0], [0], [1], [0, 0, 1, 1], [], []>} : vector<16x16xf32>, vector<16x8xf32>, vector<16x8xf32> -> vector<16x8xf32>
    %72 = vector.extract_strided_slice %46 {offsets = [0, 0], sizes = [1, 1], strides = [1, 1]} : vector<1x4xf32> to vector<1x1xf32>
    %73 = vector.broadcast %72 : vector<1x1xf32> to vector<16x8xf32>
    %74 = arith.mulf %73, %70 : vector<16x8xf32>
    %75 = vector.extract_strided_slice %46 {offsets = [0, 1], sizes = [1, 1], strides = [1, 1]} : vector<1x4xf32> to vector<1x1xf32>
    %76 = vector.broadcast %75 : vector<1x1xf32> to vector<16x8xf32>
    %77 = arith.mulf %76, %71 : vector<16x8xf32>
    %78 = arith.addf %74, %77 : vector<16x8xf32>
    %cst_60 = arith.constant dense<0.000000e+00> : vector<16x8xf32>
    %79 = tpu.matmul %1, %71, %cst_60 {dimension_numbers = #tpu.dot_dimension_numbers<[1], [0], [0], [1], [0, 0, 1, 1], [], []>} : vector<16x16xf32>, vector<16x8xf32>, vector<16x8xf32> -> vector<16x8xf32>
    %cst_61 = arith.constant 2.000000e+00 : f32
    %80 = vector.broadcast %cst_61 : f32 to vector<16x8xf32>
    %81 = arith.mulf %80, %79 : vector<16x8xf32>
    %82 = arith.subf %81, %70 : vector<16x8xf32>
    %83 = vector.extract_strided_slice %46 {offsets = [0, 2], sizes = [1, 1], strides = [1, 1]} : vector<1x4xf32> to vector<1x1xf32>
    %cst_62 = arith.constant 5.000000e-01 : f32
    %84 = vector.broadcast %cst_62 : f32 to vector<1x1xf32>
    %85 = arith.mulf %83, %84 : vector<1x1xf32>
    %86 = vector.broadcast %85 : vector<1x1xf32> to vector<16x8xf32>
    %87 = arith.mulf %86, %82 : vector<16x8xf32>
    %88 = arith.addf %78, %87 : vector<16x8xf32>
    %cst_63 = arith.constant dense<0.000000e+00> : vector<16x8xf32>
    %89 = tpu.matmul %1, %82, %cst_63 {dimension_numbers = #tpu.dot_dimension_numbers<[1], [0], [0], [1], [0, 0, 1, 1], [], []>} : vector<16x16xf32>, vector<16x8xf32>, vector<16x8xf32> -> vector<16x8xf32>
    %cst_64 = arith.constant 2.000000e+00 : f32
    %90 = vector.broadcast %cst_64 : f32 to vector<16x8xf32>
    %91 = arith.mulf %90, %89 : vector<16x8xf32>
    %92 = arith.subf %91, %71 : vector<16x8xf32>
    %93 = vector.extract_strided_slice %46 {offsets = [0, 3], sizes = [1, 1], strides = [1, 1]} : vector<1x4xf32> to vector<1x1xf32>
    %cst_65 = arith.constant 0.333333343 : f32
    %94 = vector.broadcast %cst_65 : f32 to vector<1x1xf32>
    %95 = arith.mulf %93, %94 : vector<1x1xf32>
    %96 = vector.broadcast %95 : vector<1x1xf32> to vector<16x8xf32>
    %97 = arith.mulf %96, %92 : vector<16x8xf32>
    %98 = arith.addf %88, %97 : vector<16x8xf32>
    %c0_66 = arith.constant 0 : index
    %c0_67 = arith.constant 0 : index
    %99 = vector.load %arg22[%c0_66, %c0_67] : memref<8x96xf32, #tpu.memory_space<vmem>>, vector<8x96xf32>
    %cst_68 = arith.constant dense<0.000000e+00> : vector<16x96xf32>
    %100 = tpu.matmul %98, %99, %cst_68 {dimension_numbers = #tpu.dot_dimension_numbers<[1], [0], [0], [1], [0, 0, 1, 1], [], []>} : vector<16x8xf32>, vector<8x96xf32>, vector<16x96xf32> -> vector<16x96xf32>
    %c0_69 = arith.constant 0 : index
    %c0_70 = arith.constant 0 : index
    %101 = vector.load %arg23[%c0_69, %c0_70] : memref<2x96xf32, #tpu.memory_space<vmem>>, vector<2x96xf32>
    %cst_71 = arith.constant dense<0.000000e+00> : vector<16x96xf32>
    %102 = tpu.matmul %3, %101, %cst_71 {dimension_numbers = #tpu.dot_dimension_numbers<[1], [0], [0], [1], [0, 0, 1, 1], [], []>} : vector<16x2xf32>, vector<2x96xf32>, vector<16x96xf32> -> vector<16x96xf32>
    %103 = arith.addf %100, %102 : vector<16x96xf32>
    %c0_72 = arith.constant 0 : index
    %c0_73 = arith.constant 0 : index
    %104 = vector.load %arg25[%c0_72, %c0_73] : memref<1x96xf32, #tpu.memory_space<vmem>>, vector<1x96xf32>
    %105 = vector.broadcast %104 : vector<1x96xf32> to vector<16x96xf32>
    %106 = arith.addf %103, %105 : vector<16x96xf32>
    %c0_74 = arith.constant 0 : index
    %c0_75 = arith.constant 0 : index
    %107 = vector.load %arg24[%c0_74, %c0_75] : memref<32x96xf32, #tpu.memory_space<vmem>>, vector<32x96xf32>
    %cst_76 = arith.constant dense<0.000000e+00> : vector<16x96xf32>
    %108 = tpu.matmul %5, %107, %cst_76 {dimension_numbers = #tpu.dot_dimension_numbers<[1], [0], [0], [1], [0, 0, 1, 1], [], []>} : vector<16x32xf32>, vector<32x96xf32>, vector<16x96xf32> -> vector<16x96xf32>
    %c0_77 = arith.constant 0 : index
    %c0_78 = arith.constant 0 : index
    %109 = vector.load %arg26[%c0_77, %c0_78] : memref<1x96xf32, #tpu.memory_space<vmem>>, vector<1x96xf32>
    %110 = vector.broadcast %109 : vector<1x96xf32> to vector<16x96xf32>
    %111 = arith.addf %108, %110 : vector<16x96xf32>
    %112 = vector.extract_strided_slice %106 {offsets = [0, 0], sizes = [16, 32], strides = [1, 1]} : vector<16x96xf32> to vector<16x32xf32>
    %113 = vector.extract_strided_slice %111 {offsets = [0, 0], sizes = [16, 32], strides = [1, 1]} : vector<16x96xf32> to vector<16x32xf32>
    %114 = arith.addf %112, %113 : vector<16x32xf32>
    %115 = arith.negf %114 : vector<16x32xf32>
    %116 = math.exp %115 : vector<16x32xf32>
    %cst_79 = arith.constant 1.000000e+00 : f32
    %117 = vector.broadcast %cst_79 : f32 to vector<16x32xf32>
    %118 = arith.addf %117, %116 : vector<16x32xf32>
    %119 = arith.divf %117, %118 : vector<16x32xf32>
    %120 = vector.extract_strided_slice %106 {offsets = [0, 32], sizes = [16, 32], strides = [1, 1]} : vector<16x96xf32> to vector<16x32xf32>
    %121 = vector.extract_strided_slice %111 {offsets = [0, 32], sizes = [16, 32], strides = [1, 1]} : vector<16x96xf32> to vector<16x32xf32>
    %122 = arith.addf %120, %121 : vector<16x32xf32>
    %123 = arith.negf %122 : vector<16x32xf32>
    %124 = math.exp %123 : vector<16x32xf32>
    %cst_80 = arith.constant 1.000000e+00 : f32
    %125 = vector.broadcast %cst_80 : f32 to vector<16x32xf32>
    %126 = arith.addf %125, %124 : vector<16x32xf32>
    %127 = arith.divf %125, %126 : vector<16x32xf32>
    %128 = vector.extract_strided_slice %106 {offsets = [0, 64], sizes = [16, 32], strides = [1, 1]} : vector<16x96xf32> to vector<16x32xf32>
    %129 = vector.extract_strided_slice %111 {offsets = [0, 64], sizes = [16, 32], strides = [1, 1]} : vector<16x96xf32> to vector<16x32xf32>
    %130 = arith.mulf %119, %129 : vector<16x32xf32>
    %131 = arith.addf %128, %130 : vector<16x32xf32>
    %132 = math.tanh %131 : vector<16x32xf32>
    %cst_81 = arith.constant 1.000000e+00 : f32
    %133 = vector.broadcast %cst_81 : f32 to vector<16x32xf32>
    %134 = arith.subf %133, %127 : vector<16x32xf32>
    %135 = arith.mulf %134, %132 : vector<16x32xf32>
    %136 = arith.mulf %127, %5 : vector<16x32xf32>
    %137 = arith.addf %135, %136 : vector<16x32xf32>
    %c0_82 = arith.constant 0 : index
    %c0_83 = arith.constant 0 : index
    %138 = vector.load %arg27[%c0_82, %c0_83] : memref<32x8xf32, #tpu.memory_space<vmem>>, vector<32x8xf32>
    %cst_84 = arith.constant dense<0.000000e+00> : vector<16x8xf32>
    %139 = tpu.matmul %137, %138, %cst_84 {dimension_numbers = #tpu.dot_dimension_numbers<[1], [0], [0], [1], [0, 0, 1, 1], [], []>} : vector<16x32xf32>, vector<32x8xf32>, vector<16x8xf32> -> vector<16x8xf32>
    %c0_85 = arith.constant 0 : index
    %c0_86 = arith.constant 0 : index
    %140 = vector.load %arg28[%c0_85, %c0_86] : memref<1x8xf32, #tpu.memory_space<vmem>>, vector<1x8xf32>
    %141 = vector.broadcast %140 : vector<1x8xf32> to vector<16x8xf32>
    %142 = arith.addf %139, %141 : vector<16x8xf32>
    %c0_87 = arith.constant 0 : index
    %c0_88 = arith.constant 0 : index
    %143 = vector.load %arg16[%c0_87, %c0_88] : memref<8x32xf32, #tpu.memory_space<vmem>>, vector<8x32xf32>
    %cst_89 = arith.constant dense<0.000000e+00> : vector<16x32xf32>
    %144 = tpu.matmul %142, %143, %cst_89 {dimension_numbers = #tpu.dot_dimension_numbers<[1], [0], [0], [1], [0, 0, 1, 1], [], []>} : vector<16x8xf32>, vector<8x32xf32>, vector<16x32xf32> -> vector<16x32xf32>
    %c0_90 = arith.constant 0 : index
    %c0_91 = arith.constant 0 : index
    %145 = vector.load %arg17[%c0_90, %c0_91] : memref<1x32xf32, #tpu.memory_space<vmem>>, vector<1x32xf32>
    %146 = vector.broadcast %145 : vector<1x32xf32> to vector<16x32xf32>
    %147 = arith.addf %144, %146 : vector<16x32xf32>
    %cst_92 = arith.constant 0.000000e+00 : f32
    %148 = vector.broadcast %cst_92 : f32 to vector<16x32xf32>
    %149 = arith.maximumf %147, %148 : vector<16x32xf32>
    %c0_93 = arith.constant 0 : index
    %c0_94 = arith.constant 0 : index
    %150 = vector.load %arg18[%c0_93, %c0_94] : memref<32x16xf32, #tpu.memory_space<vmem>>, vector<32x16xf32>
    %cst_95 = arith.constant dense<0.000000e+00> : vector<16x16xf32>
    %151 = tpu.matmul %149, %150, %cst_95 {dimension_numbers = #tpu.dot_dimension_numbers<[1], [0], [0], [1], [0, 0, 1, 1], [], []>} : vector<16x32xf32>, vector<32x16xf32>, vector<16x16xf32> -> vector<16x16xf32>
    %c0_96 = arith.constant 0 : index
    %c0_97 = arith.constant 0 : index
    %152 = vector.load %arg19[%c0_96, %c0_97] : memref<1x16xf32, #tpu.memory_space<vmem>>, vector<1x16xf32>
    %153 = vector.broadcast %152 : vector<1x16xf32> to vector<16x16xf32>
    %154 = arith.addf %151, %153 : vector<16x16xf32>
    %cst_98 = arith.constant 0.000000e+00 : f32
    %155 = vector.broadcast %cst_98 : f32 to vector<16x16xf32>
    %156 = arith.maximumf %154, %155 : vector<16x16xf32>
    %c0_99 = arith.constant 0 : index
    %c0_100 = arith.constant 0 : index
    %157 = vector.load %arg20[%c0_99, %c0_100] : memref<16x8xf32, #tpu.memory_space<vmem>>, vector<16x8xf32>
    %cst_101 = arith.constant dense<0.000000e+00> : vector<16x8xf32>
    %158 = tpu.matmul %156, %157, %cst_101 {dimension_numbers = #tpu.dot_dimension_numbers<[1], [0], [0], [1], [0, 0, 1, 1], [], []>} : vector<16x16xf32>, vector<16x8xf32>, vector<16x8xf32> -> vector<16x8xf32>
    %c0_102 = arith.constant 0 : index
    %c0_103 = arith.constant 0 : index
    %159 = vector.load %arg21[%c0_102, %c0_103] : memref<1x8xf32, #tpu.memory_space<vmem>>, vector<1x8xf32>
    %160 = vector.broadcast %159 : vector<1x8xf32> to vector<16x8xf32>
    %161 = arith.addf %158, %160 : vector<16x8xf32>
    %cst_104 = arith.constant 0.000000e+00 : f32
    %162 = vector.broadcast %cst_104 : f32 to vector<16x8xf32>
    %163 = arith.maximumf %161, %162 : vector<16x8xf32>
    %cst_105 = arith.constant dense<0.000000e+00> : vector<16x8xf32>
    %164 = tpu.matmul %1, %163, %cst_105 {dimension_numbers = #tpu.dot_dimension_numbers<[1], [0], [0], [1], [0, 0, 1, 1], [], []>} : vector<16x16xf32>, vector<16x8xf32>, vector<16x8xf32> -> vector<16x8xf32>
    %165 = vector.extract_strided_slice %46 {offsets = [0, 0], sizes = [1, 1], strides = [1, 1]} : vector<1x4xf32> to vector<1x1xf32>
    %166 = vector.broadcast %165 : vector<1x1xf32> to vector<16x8xf32>
    %167 = arith.mulf %166, %163 : vector<16x8xf32>
    %168 = vector.extract_strided_slice %46 {offsets = [0, 1], sizes = [1, 1], strides = [1, 1]} : vector<1x4xf32> to vector<1x1xf32>
    %169 = vector.broadcast %168 : vector<1x1xf32> to vector<16x8xf32>
    %170 = arith.mulf %169, %164 : vector<16x8xf32>
    %171 = arith.addf %167, %170 : vector<16x8xf32>
    %cst_106 = arith.constant dense<0.000000e+00> : vector<16x8xf32>
    %172 = tpu.matmul %1, %164, %cst_106 {dimension_numbers = #tpu.dot_dimension_numbers<[1], [0], [0], [1], [0, 0, 1, 1], [], []>} : vector<16x16xf32>, vector<16x8xf32>, vector<16x8xf32> -> vector<16x8xf32>
    %cst_107 = arith.constant 2.000000e+00 : f32
    %173 = vector.broadcast %cst_107 : f32 to vector<16x8xf32>
    %174 = arith.mulf %173, %172 : vector<16x8xf32>
    %175 = arith.subf %174, %163 : vector<16x8xf32>
    %176 = vector.extract_strided_slice %46 {offsets = [0, 2], sizes = [1, 1], strides = [1, 1]} : vector<1x4xf32> to vector<1x1xf32>
    %cst_108 = arith.constant 5.000000e-01 : f32
    %177 = vector.broadcast %cst_108 : f32 to vector<1x1xf32>
    %178 = arith.mulf %176, %177 : vector<1x1xf32>
    %179 = vector.broadcast %178 : vector<1x1xf32> to vector<16x8xf32>
    %180 = arith.mulf %179, %175 : vector<16x8xf32>
    %181 = arith.addf %171, %180 : vector<16x8xf32>
    %cst_109 = arith.constant dense<0.000000e+00> : vector<16x8xf32>
    %182 = tpu.matmul %1, %175, %cst_109 {dimension_numbers = #tpu.dot_dimension_numbers<[1], [0], [0], [1], [0, 0, 1, 1], [], []>} : vector<16x16xf32>, vector<16x8xf32>, vector<16x8xf32> -> vector<16x8xf32>
    %cst_110 = arith.constant 2.000000e+00 : f32
    %183 = vector.broadcast %cst_110 : f32 to vector<16x8xf32>
    %184 = arith.mulf %183, %182 : vector<16x8xf32>
    %185 = arith.subf %184, %164 : vector<16x8xf32>
    %186 = vector.extract_strided_slice %46 {offsets = [0, 3], sizes = [1, 1], strides = [1, 1]} : vector<1x4xf32> to vector<1x1xf32>
    %cst_111 = arith.constant 0.333333343 : f32
    %187 = vector.broadcast %cst_111 : f32 to vector<1x1xf32>
    %188 = arith.mulf %186, %187 : vector<1x1xf32>
    %189 = vector.broadcast %188 : vector<1x1xf32> to vector<16x8xf32>
    %190 = arith.mulf %189, %185 : vector<16x8xf32>
    %191 = arith.addf %181, %190 : vector<16x8xf32>
    %c0_112 = arith.constant 0 : index
    %c0_113 = arith.constant 0 : index
    %192 = vector.load %arg22[%c0_112, %c0_113] : memref<8x96xf32, #tpu.memory_space<vmem>>, vector<8x96xf32>
    %cst_114 = arith.constant dense<0.000000e+00> : vector<16x96xf32>
    %193 = tpu.matmul %191, %192, %cst_114 {dimension_numbers = #tpu.dot_dimension_numbers<[1], [0], [0], [1], [0, 0, 1, 1], [], []>} : vector<16x8xf32>, vector<8x96xf32>, vector<16x96xf32> -> vector<16x96xf32>
    %c0_115 = arith.constant 0 : index
    %c0_116 = arith.constant 0 : index
    %194 = vector.load %arg23[%c0_115, %c0_116] : memref<2x96xf32, #tpu.memory_space<vmem>>, vector<2x96xf32>
    %cst_117 = arith.constant dense<0.000000e+00> : vector<16x96xf32>
    %195 = tpu.matmul %3, %194, %cst_117 {dimension_numbers = #tpu.dot_dimension_numbers<[1], [0], [0], [1], [0, 0, 1, 1], [], []>} : vector<16x2xf32>, vector<2x96xf32>, vector<16x96xf32> -> vector<16x96xf32>
    %196 = arith.addf %193, %195 : vector<16x96xf32>
    %c0_118 = arith.constant 0 : index
    %c0_119 = arith.constant 0 : index
    %197 = vector.load %arg25[%c0_118, %c0_119] : memref<1x96xf32, #tpu.memory_space<vmem>>, vector<1x96xf32>
    %198 = vector.broadcast %197 : vector<1x96xf32> to vector<16x96xf32>
    %199 = arith.addf %196, %198 : vector<16x96xf32>
    %c0_120 = arith.constant 0 : index
    %c0_121 = arith.constant 0 : index
    %200 = vector.load %arg24[%c0_120, %c0_121] : memref<32x96xf32, #tpu.memory_space<vmem>>, vector<32x96xf32>
    %cst_122 = arith.constant dense<0.000000e+00> : vector<16x96xf32>
    %201 = tpu.matmul %137, %200, %cst_122 {dimension_numbers = #tpu.dot_dimension_numbers<[1], [0], [0], [1], [0, 0, 1, 1], [], []>} : vector<16x32xf32>, vector<32x96xf32>, vector<16x96xf32> -> vector<16x96xf32>
    %c0_123 = arith.constant 0 : index
    %c0_124 = arith.constant 0 : index
    %202 = vector.load %arg26[%c0_123, %c0_124] : memref<1x96xf32, #tpu.memory_space<vmem>>, vector<1x96xf32>
    %203 = vector.broadcast %202 : vector<1x96xf32> to vector<16x96xf32>
    %204 = arith.addf %201, %203 : vector<16x96xf32>
    %205 = vector.extract_strided_slice %199 {offsets = [0, 0], sizes = [16, 32], strides = [1, 1]} : vector<16x96xf32> to vector<16x32xf32>
    %206 = vector.extract_strided_slice %204 {offsets = [0, 0], sizes = [16, 32], strides = [1, 1]} : vector<16x96xf32> to vector<16x32xf32>
    %207 = arith.addf %205, %206 : vector<16x32xf32>
    %208 = arith.negf %207 : vector<16x32xf32>
    %209 = math.exp %208 : vector<16x32xf32>
    %cst_125 = arith.constant 1.000000e+00 : f32
    %210 = vector.broadcast %cst_125 : f32 to vector<16x32xf32>
    %211 = arith.addf %210, %209 : vector<16x32xf32>
    %212 = arith.divf %210, %211 : vector<16x32xf32>
    %213 = vector.extract_strided_slice %199 {offsets = [0, 32], sizes = [16, 32], strides = [1, 1]} : vector<16x96xf32> to vector<16x32xf32>
    %214 = vector.extract_strided_slice %204 {offsets = [0, 32], sizes = [16, 32], strides = [1, 1]} : vector<16x96xf32> to vector<16x32xf32>
    %215 = arith.addf %213, %214 : vector<16x32xf32>
    %216 = arith.negf %215 : vector<16x32xf32>
    %217 = math.exp %216 : vector<16x32xf32>
    %cst_126 = arith.constant 1.000000e+00 : f32
    %218 = vector.broadcast %cst_126 : f32 to vector<16x32xf32>
    %219 = arith.addf %218, %217 : vector<16x32xf32>
    %220 = arith.divf %218, %219 : vector<16x32xf32>
    %221 = vector.extract_strided_slice %199 {offsets = [0, 64], sizes = [16, 32], strides = [1, 1]} : vector<16x96xf32> to vector<16x32xf32>
    %222 = vector.extract_strided_slice %204 {offsets = [0, 64], sizes = [16, 32], strides = [1, 1]} : vector<16x96xf32> to vector<16x32xf32>
    %223 = arith.mulf %212, %222 : vector<16x32xf32>
    %224 = arith.addf %221, %223 : vector<16x32xf32>
    %225 = math.tanh %224 : vector<16x32xf32>
    %cst_127 = arith.constant 1.000000e+00 : f32
    %226 = vector.broadcast %cst_127 : f32 to vector<16x32xf32>
    %227 = arith.subf %226, %220 : vector<16x32xf32>
    %228 = arith.mulf %227, %225 : vector<16x32xf32>
    %229 = arith.mulf %220, %137 : vector<16x32xf32>
    %230 = arith.addf %228, %229 : vector<16x32xf32>
    %c0_128 = arith.constant 0 : index
    %c0_129 = arith.constant 0 : index
    %231 = vector.load %arg27[%c0_128, %c0_129] : memref<32x8xf32, #tpu.memory_space<vmem>>, vector<32x8xf32>
    %cst_130 = arith.constant dense<0.000000e+00> : vector<16x8xf32>
    %232 = tpu.matmul %230, %231, %cst_130 {dimension_numbers = #tpu.dot_dimension_numbers<[1], [0], [0], [1], [0, 0, 1, 1], [], []>} : vector<16x32xf32>, vector<32x8xf32>, vector<16x8xf32> -> vector<16x8xf32>
    %c0_131 = arith.constant 0 : index
    %c0_132 = arith.constant 0 : index
    %233 = vector.load %arg28[%c0_131, %c0_132] : memref<1x8xf32, #tpu.memory_space<vmem>>, vector<1x8xf32>
    %234 = vector.broadcast %233 : vector<1x8xf32> to vector<16x8xf32>
    %235 = arith.addf %232, %234 : vector<16x8xf32>
    %c0_133 = arith.constant 0 : index
    %c0_134 = arith.constant 0 : index
    %236 = vector.load %arg29[%c0_133, %c0_134] : memref<8x32xf32, #tpu.memory_space<vmem>>, vector<8x32xf32>
    %cst_135 = arith.constant dense<0.000000e+00> : vector<16x32xf32>
    %237 = tpu.matmul %235, %236, %cst_135 {dimension_numbers = #tpu.dot_dimension_numbers<[1], [0], [0], [1], [0, 0, 1, 1], [], []>} : vector<16x8xf32>, vector<8x32xf32>, vector<16x32xf32> -> vector<16x32xf32>
    %c0_136 = arith.constant 0 : index
    %c0_137 = arith.constant 0 : index
    %238 = vector.load %arg30[%c0_136, %c0_137] : memref<1x32xf32, #tpu.memory_space<vmem>>, vector<1x32xf32>
    %239 = vector.broadcast %238 : vector<1x32xf32> to vector<16x32xf32>
    %240 = arith.addf %237, %239 : vector<16x32xf32>
    %c0_138 = arith.constant 0 : index
    %c0_139 = arith.constant 0 : index
    %241 = vector.load %arg31[%c0_138, %c0_139] : memref<32x16xf32, #tpu.memory_space<vmem>>, vector<32x16xf32>
    %cst_140 = arith.constant dense<0.000000e+00> : vector<16x16xf32>
    %242 = tpu.matmul %240, %241, %cst_140 {dimension_numbers = #tpu.dot_dimension_numbers<[1], [0], [0], [1], [0, 0, 1, 1], [], []>} : vector<16x32xf32>, vector<32x16xf32>, vector<16x16xf32> -> vector<16x16xf32>
    %c0_141 = arith.constant 0 : index
    %c0_142 = arith.constant 0 : index
    %243 = vector.load %arg32[%c0_141, %c0_142] : memref<1x16xf32, #tpu.memory_space<vmem>>, vector<1x16xf32>
    %244 = vector.broadcast %243 : vector<1x16xf32> to vector<16x16xf32>
    %245 = arith.addf %242, %244 : vector<16x16xf32>
    %c0_143 = arith.constant 0 : index
    %c0_144 = arith.constant 0 : index
    %246 = vector.load %arg33[%c0_143, %c0_144] : memref<16x4xf32, #tpu.memory_space<vmem>>, vector<16x4xf32>
    %cst_145 = arith.constant dense<0.000000e+00> : vector<16x4xf32>
    %247 = tpu.matmul %245, %246, %cst_145 {dimension_numbers = #tpu.dot_dimension_numbers<[1], [0], [0], [1], [0, 0, 1, 1], [], []>} : vector<16x16xf32>, vector<16x4xf32>, vector<16x4xf32> -> vector<16x4xf32>
    %c0_146 = arith.constant 0 : index
    %c0_147 = arith.constant 0 : index
    %248 = vector.load %arg34[%c0_146, %c0_147] : memref<1x4xf32, #tpu.memory_space<vmem>>, vector<1x4xf32>
    %249 = vector.broadcast %248 : vector<1x4xf32> to vector<16x4xf32>
    %250 = arith.addf %247, %249 : vector<16x4xf32>
    %c0_148 = arith.constant 0 : index
    %c0_149 = arith.constant 0 : index
    %c0_150 = arith.constant 0 : index
    %251 = vector.load %arg35[%c0_148, %c0_149, %c0_150] : memref<1x16x4xf32, #tpu.memory_space<vmem>>, vector<1x16x4xf32>
    %252 = vector.shape_cast %251 : vector<1x16x4xf32> to vector<16x4xf32>
    %253 = vector.shape_cast %250 : vector<16x4xf32> to vector<1x16x4xf32>
    tpu.vector_store %arg35[%c0_148, %c0_149, %c0_150], %253 {strides = array<i32>} : memref<1x16x4xf32, #tpu.memory_space<vmem>>, vector<1x16x4xf32>,
    %c0_151 = arith.constant 0 : index
    %c0_152 = arith.constant 0 : index
    %c0_153 = arith.constant 0 : index
    %254 = vector.load %arg36[%c0_151, %c0_152, %c0_153] : memref<1x16x8xf32, #tpu.memory_space<vmem>>, vector<1x16x8xf32>
    %255 = vector.shape_cast %254 : vector<1x16x8xf32> to vector<16x8xf32>
    %256 = vector.shape_cast %235 : vector<16x8xf32> to vector<1x16x8xf32>
    tpu.vector_store %arg36[%c0_151, %c0_152, %c0_153], %256 {strides = array<i32>} : memref<1x16x8xf32, #tpu.memory_space<vmem>>, vector<1x16x8xf32>,
    %c0_154 = arith.constant 0 : index
    %c0_155 = arith.constant 0 : index
    %c0_156 = arith.constant 0 : index
    %257 = vector.load %arg37[%c0_154, %c0_155, %c0_156] : memref<1x16x32xf32, #tpu.memory_space<vmem>>, vector<1x16x32xf32>
    %258 = vector.shape_cast %257 : vector<1x16x32xf32> to vector<16x32xf32>
    %259 = vector.shape_cast %230 : vector<16x32xf32> to vector<1x16x32xf32>
    tpu.vector_store %arg37[%c0_154, %c0_155, %c0_156], %259 {strides = array<i32>} : memref<1x16x32xf32, #tpu.memory_space<vmem>>, vector<1x16x32xf32>,
    return
  }
  func.func @transform_0(%arg0: i32) -> (i32, i32, i32) {
    %c0_i32 = arith.constant 0 : i32
    %c0_i32_0 = arith.constant 0 : i32
    %c0_i32_1 = arith.constant 0 : i32
    return %arg0, %c0_i32, %c0_i32_0 : i32, i32, i32
  }
  func.func @transform_1(%arg0: i32) -> (i32, i32, i32) {
    %c0_i32 = arith.constant 0 : i32
    %c0_i32_0 = arith.constant 0 : i32
    %c0_i32_1 = arith.constant 0 : i32
    return %arg0, %c0_i32, %c0_i32_0 : i32, i32, i32
  }
  func.func @transform_2(%arg0: i32) -> (i32, i32, i32) {
    %c0_i32 = arith.constant 0 : i32
    %c0_i32_0 = arith.constant 0 : i32
    %c0_i32_1 = arith.constant 0 : i32
    return %arg0, %c0_i32, %c0_i32_0 : i32, i32, i32
  }
  func.func @transform_3(%arg0: i32) -> (i32, i32, i32) {
    %c0_i32 = arith.constant 0 : i32
    %c0_i32_0 = arith.constant 0 : i32
    %c0_i32_1 = arith.constant 0 : i32
    return %arg0, %c0_i32, %c0_i32_0 : i32, i32, i32
  }
  func.func @transform_4(%arg0: i32) -> (i32, i32, i32) {
    %c0_i32 = arith.constant 0 : i32
    %c0_i32_0 = arith.constant 0 : i32
    %c0_i32_1 = arith.constant 0 : i32
    return %arg0, %c0_i32, %c0_i32_0 : i32, i32, i32
  }
  func.func @transform_5(%arg0: i32) -> (i32, i32, i32) {
    %c0_i32 = arith.constant 0 : i32
    %c0_i32_0 = arith.constant 0 : i32
    %c0_i32_1 = arith.constant 0 : i32
    return %arg0, %c0_i32, %c0_i32_0 : i32, i32, i32
  }
  func.func @transform_6(%arg0: i32) -> (i32, i32) {
    %c0_i32 = arith.constant 0 : i32
    %c0_i32_0 = arith.constant 0 : i32
    %c0_i32_1 = arith.constant 0 : i32
    return %c0_i32, %c0_i32_0 : i32, i32
  }
  func.func @transform_7(%arg0: i32) -> (i32, i32) {
    %c0_i32 = arith.constant 0 : i32
    %c0_i32_0 = arith.constant 0 : i32
    %c0_i32_1 = arith.constant 0 : i32
    return %c0_i32, %c0_i32_0 : i32, i32
  }
  func.func @transform_8(%arg0: i32) -> (i32, i32) {
    %c0_i32 = arith.constant 0 : i32
    %c0_i32_0 = arith.constant 0 : i32
    %c0_i32_1 = arith.constant 0 : i32
    return %c0_i32, %c0_i32_0 : i32, i32
  }
  func.func @transform_9(%arg0: i32) -> (i32, i32) {
    %c0_i32 = arith.constant 0 : i32
    %c0_i32_0 = arith.constant 0 : i32
    %c0_i32_1 = arith.constant 0 : i32
    return %c0_i32, %c0_i32_0 : i32, i32
  }
  func.func @transform_10(%arg0: i32) -> (i32, i32) {
    %c0_i32 = arith.constant 0 : i32
    %c0_i32_0 = arith.constant 0 : i32
    %c0_i32_1 = arith.constant 0 : i32
    return %c0_i32, %c0_i32_0 : i32, i32
  }
  func.func @transform_11(%arg0: i32) -> (i32, i32) {
    %c0_i32 = arith.constant 0 : i32
    %c0_i32_0 = arith.constant 0 : i32
    %c0_i32_1 = arith.constant 0 : i32
    return %c0_i32, %c0_i32_0 : i32, i32
  }
  func.func @transform_12(%arg0: i32) -> (i32, i32) {
    %c0_i32 = arith.constant 0 : i32
    %c0_i32_0 = arith.constant 0 : i32
    %c0_i32_1 = arith.constant 0 : i32
    return %c0_i32, %c0_i32_0 : i32, i32
  }
  func.func @transform_13(%arg0: i32) -> (i32, i32) {
    %c0_i32 = arith.constant 0 : i32
    %c0_i32_0 = arith.constant 0 : i32
    %c0_i32_1 = arith.constant 0 : i32
    return %c0_i32, %c0_i32_0 : i32, i32
  }
  func.func @transform_14(%arg0: i32) -> (i32, i32) {
    %c0_i32 = arith.constant 0 : i32
    %c0_i32_0 = arith.constant 0 : i32
    %c0_i32_1 = arith.constant 0 : i32
    return %c0_i32, %c0_i32_0 : i32, i32
  }
  func.func @transform_15(%arg0: i32) -> (i32, i32) {
    %c0_i32 = arith.constant 0 : i32
    %c0_i32_0 = arith.constant 0 : i32
    %c0_i32_1 = arith.constant 0 : i32
    return %c0_i32, %c0_i32_0 : i32, i32
  }
  func.func @transform_16(%arg0: i32) -> (i32, i32) {
    %c0_i32 = arith.constant 0 : i32
    %c0_i32_0 = arith.constant 0 : i32
    %c0_i32_1 = arith.constant 0 : i32
    return %c0_i32, %c0_i32_0 : i32, i32
  }
  func.func @transform_17(%arg0: i32) -> (i32, i32) {
    %c0_i32 = arith.constant 0 : i32
    %c0_i32_0 = arith.constant 0 : i32
    %c0_i32_1 = arith.constant 0 : i32
    return %c0_i32, %c0_i32_0 : i32, i32
  }
  func.func @transform_18(%arg0: i32) -> (i32, i32) {
    %c0_i32 = arith.constant 0 : i32
    %c0_i32_0 = arith.constant 0 : i32
    %c0_i32_1 = arith.constant 0 : i32
    return %c0_i32, %c0_i32_0 : i32, i32
  }
  func.func @transform_19(%arg0: i32) -> (i32, i32) {
    %c0_i32 = arith.constant 0 : i32
    %c0_i32_0 = arith.constant 0 : i32
    %c0_i32_1 = arith.constant 0 : i32
    return %c0_i32, %c0_i32_0 : i32, i32
  }
  func.func @transform_20(%arg0: i32) -> (i32, i32) {
    %c0_i32 = arith.constant 0 : i32
    %c0_i32_0 = arith.constant 0 : i32
    %c0_i32_1 = arith.constant 0 : i32
    return %c0_i32, %c0_i32_0 : i32, i32
  }
  func.func @transform_21(%arg0: i32) -> (i32, i32) {
    %c0_i32 = arith.constant 0 : i32
    %c0_i32_0 = arith.constant 0 : i32
    %c0_i32_1 = arith.constant 0 : i32
    return %c0_i32, %c0_i32_0 : i32, i32
  }
  func.func @transform_22(%arg0: i32) -> (i32, i32) {
    %c0_i32 = arith.constant 0 : i32
    %c0_i32_0 = arith.constant 0 : i32
    %c0_i32_1 = arith.constant 0 : i32
    return %c0_i32, %c0_i32_0 : i32, i32
  }
  func.func @transform_23(%arg0: i32) -> (i32, i32) {
    %c0_i32 = arith.constant 0 : i32
    %c0_i32_0 = arith.constant 0 : i32
    %c0_i32_1 = arith.constant 0 : i32
    return %c0_i32, %c0_i32_0 : i32, i32
  }
  func.func @transform_24(%arg0: i32) -> (i32, i32) {
    %c0_i32 = arith.constant 0 : i32
    %c0_i32_0 = arith.constant 0 : i32
    %c0_i32_1 = arith.constant 0 : i32
    return %c0_i32, %c0_i32_0 : i32, i32
  }
  func.func @transform_25(%arg0: i32) -> (i32, i32) {
    %c0_i32 = arith.constant 0 : i32
    %c0_i32_0 = arith.constant 0 : i32
    %c0_i32_1 = arith.constant 0 : i32
    return %c0_i32, %c0_i32_0 : i32, i32
  }
  func.func @transform_26(%arg0: i32) -> (i32, i32) {
    %c0_i32 = arith.constant 0 : i32
    %c0_i32_0 = arith.constant 0 : i32
    %c0_i32_1 = arith.constant 0 : i32
    return %c0_i32, %c0_i32_0 : i32, i32
  }
  func.func @transform_27(%arg0: i32) -> (i32, i32) {
    %c0_i32 = arith.constant 0 : i32
    %c0_i32_0 = arith.constant 0 : i32
    %c0_i32_1 = arith.constant 0 : i32
    return %c0_i32, %c0_i32_0 : i32, i32
  }
  func.func @transform_28(%arg0: i32) -> (i32, i32) {
    %c0_i32 = arith.constant 0 : i32
    %c0_i32_0 = arith.constant 0 : i32
    %c0_i32_1 = arith.constant 0 : i32
    return %c0_i32, %c0_i32_0 : i32, i32
  }
  func.func @transform_29(%arg0: i32) -> (i32, i32) {
    %c0_i32 = arith.constant 0 : i32
    %c0_i32_0 = arith.constant 0 : i32
    %c0_i32_1 = arith.constant 0 : i32
    return %c0_i32, %c0_i32_0 : i32, i32
  }
  func.func @transform_30(%arg0: i32) -> (i32, i32) {
    %c0_i32 = arith.constant 0 : i32
    %c0_i32_0 = arith.constant 0 : i32
    %c0_i32_1 = arith.constant 0 : i32
    return %c0_i32, %c0_i32_0 : i32, i32
  }
  func.func @transform_31(%arg0: i32) -> (i32, i32) {
    %c0_i32 = arith.constant 0 : i32
    %c0_i32_0 = arith.constant 0 : i32
    %c0_i32_1 = arith.constant 0 : i32
    return %c0_i32, %c0_i32_0 : i32, i32
  }
  func.func @transform_32(%arg0: i32) -> (i32, i32) {
    %c0_i32 = arith.constant 0 : i32
    %c0_i32_0 = arith.constant 0 : i32
    %c0_i32_1 = arith.constant 0 : i32
    return %c0_i32, %c0_i32_0 : i32, i32
  }
  func.func @transform_33(%arg0: i32) -> (i32, i32) {
    %c0_i32 = arith.constant 0 : i32
    %c0_i32_0 = arith.constant 0 : i32
    %c0_i32_1 = arith.constant 0 : i32
    return %c0_i32, %c0_i32_0 : i32, i32
  }
  func.func @transform_34(%arg0: i32) -> (i32, i32, i32) {
    %c0_i32 = arith.constant 0 : i32
    %c0_i32_0 = arith.constant 0 : i32
    %c0_i32_1 = arith.constant 0 : i32
    return %arg0, %c0_i32, %c0_i32_0 : i32, i32, i32
  }
  func.func @transform_35(%arg0: i32) -> (i32, i32, i32) {
    %c0_i32 = arith.constant 0 : i32
    %c0_i32_0 = arith.constant 0 : i32
    %c0_i32_1 = arith.constant 0 : i32
    return %arg0, %c0_i32, %c0_i32_0 : i32, i32, i32
  }
  func.func @transform_36(%arg0: i32) -> (i32, i32, i32) {
    %c0_i32 = arith.constant 0 : i32
    %c0_i32_0 = arith.constant 0 : i32
    %c0_i32_1 = arith.constant 0 : i32
    return %arg0, %c0_i32, %c0_i32_0 : i32, i32, i32
  }
  func.func @transform_37(%arg0: i32) -> (i32, i32, i32) {
    %c0_i32 = arith.constant 0 : i32
    %c0_i32_0 = arith.constant 0 : i32
    %c0_i32_1 = arith.constant 0 : i32
    return %arg0, %c0_i32, %c0_i32_0 : i32, i32, i32
  }
}

</mosaic_0001>

<llo_original>
// kernel: sp_gnn_forward.1
$region0: #{sp_gnn_forward.1}
  #allocation0 [shape = 'u32[]', space=smem, size = 0x4, offset = 0x4, fixed_abs, tag = 'smem constant byte address 0x4 - core index']
  #allocation1 [shape = 'u32[144,128]{1,0:T(1,128)}', space=vmem, size = 0x12000, scoped, tag = 'internal scratch']
  %s0 = inlined_call_operand.smem [shape: u32[38], index: -1, kind: input, shape index: {}]
  %s1 = sld [smem:[%s0]]
  %s2 = scalar_lea.smem %s0, 1
  %s3 = sld [smem:[%s2]]
  %s4 = scalar_lea.smem %s0, 2
  %s5 = sld [smem:[%s4]]
  %s6 = scalar_lea.smem %s0, 3
  %s7 = sld [smem:[%s6]]
  %s8 = scalar_lea.smem %s0, 4
  %s9 = sld [smem:[%s8]]
  %s10 = scalar_lea.smem %s0, 5
  %s11 = sld [smem:[%s10]]
  %s12 = scalar_lea.smem %s0, 6
  %s13 = sld [smem:[%s12]]
  %s14 = scalar_lea.smem %s0, 7
  %s15 = sld [smem:[%s14]]
  %s16 = scalar_lea.smem %s0, 8
  %s17 = sld [smem:[%s16]]
  %s18 = scalar_lea.smem %s0, 9
  %s19 = sld [smem:[%s18]]
  %s20 = scalar_lea.smem %s0, 10
  %s21 = sld [smem:[%s20]]
  %s22 = scalar_lea.smem %s0, 11
  %s23 = sld [smem:[%s22]]
  %s24 = scalar_lea.smem %s0, 12
  %s25 = sld [smem:[%s24]]
  %s26 = scalar_lea.smem %s0, 13
  %s27 = sld [smem:[%s26]]
  %s28 = scalar_lea.smem %s0, 14
  %s29 = sld [smem:[%s28]]
  %s30 = scalar_lea.smem %s0, 15
  %s31 = sld [smem:[%s30]]
  %s32 = scalar_lea.smem %s0, 16
  %s33 = sld [smem:[%s32]]
  %s34 = scalar_lea.smem %s0, 17
  %s35 = sld [smem:[%s34]]
  %s36 = scalar_lea.smem %s0, 18
  %s37 = sld [smem:[%s36]]
  %s38 = scalar_lea.smem %s0, 19
  %s39 = sld [smem:[%s38]]
  %s40 = scalar_lea.smem %s0, 20
  %s41 = sld [smem:[%s40]]
  %s42 = scalar_lea.smem %s0, 21
  %s43 = sld [smem:[%s42]]
  %s44 = scalar_lea.smem %s0, 22
  %s45 = sld [smem:[%s44]]
  %s46 = scalar_lea.smem %s0, 23
  %s47 = sld [smem:[%s46]]
  %s48 = scalar_lea.smem %s0, 24
  %s49 = sld [smem:[%s48]]
  %s50 = scalar_lea.smem %s0, 25
  %s51 = sld [smem:[%s50]]
  %s52 = scalar_lea.smem %s0, 26
  %s53 = sld [smem:[%s52]]
  %s54 = scalar_lea.smem %s0, 27
  %s55 = sld [smem:[%s54]]
  %s56 = scalar_lea.smem %s0, 28
  %s57 = sld [smem:[%s56]]
  %s58 = scalar_lea.smem %s0, 29
  %s59 = sld [smem:[%s58]]
  %s60 = scalar_lea.smem %s0, 30
  %s61 = sld [smem:[%s60]]
  %s62 = scalar_lea.smem %s0, 31
  %s63 = sld [smem:[%s62]]
  %s64 = scalar_lea.smem %s0, 32
  %s65 = sld [smem:[%s64]]
  %s66 = scalar_lea.smem %s0, 33
  %s67 = sld [smem:[%s66]]
  %s68 = scalar_lea.smem %s0, 34
  %s69 = sld [smem:[%s68]]
  %s70 = scalar_lea.smem %s0, 35
  %s71 = sld [smem:[%s70]]
  %s72 = scalar_lea.smem %s0, 36
  %s73 = sld [smem:[%s72]]
  %s74 = scalar_lea.smem %s0, 37
  %s75 = sld [smem:[%s74]]
  %76 = xla_tuple %s69, %s71, %s73, %s75
  %s77 = sld [smem:[#allocation0]]
  $region193: #{sp_gnn_forward.1} parent=0
    _
  %s79 = ssub.s32 1, %s77
  %s80 = scalar_select 0, %s79, %s77
  $region1: #{sp_gnn_forward.1} parent=0
    #allocation2 [shape = 'u8[16384]{0}', space=vmem, size = 0x4000, scoped, tag = 'output window, operand 2']
    #allocation3 [shape = 's32[2]{0}', space=sflag, size = 0x8, scoped, tag = 'scoped memory for sp_gnn_forward.1']
    #allocation4 [shape = 'u8[1024]{0}', space=vmem, size = 0x400, scoped, tag = 'output window, operand 3']
    #allocation5 [shape = 's32[2]{0}', space=sflag, size = 0x8, scoped, tag = 'scoped memory for sp_gnn_forward.1']
    %81 = vsyncpa [#allocation3], 0
    %s82 = scalar_lea.sflag [#allocation3], 1
    %83 = vsyncpa %s82, 0
    %84 = vsyncpa [#allocation5], 0
    %s85 = scalar_lea.sflag [#allocation5], 1
    %86 = vsyncpa %s85, 0
    loop: start=0, step=1, limit=4
    $region2: #{sp_gnn_forward.1} parent=1 // loop_pre_header
      _
    $region3: #{sp_gnn_forward.1} parent=1 // loop_header
      %s88 = sphi 0, %s92
      %p89 = scmp.ge.s32.totalorder %s88, 4
      %s98 = sphi 0, %s100
      %s101 = sphi 0, %s98
      %s102 = sphi 0, %s101
      %s118 = sphi 0, %s102
      %s124 = sphi 0, %s126
      %s127 = sphi 0, %s124
      %s128 = sphi 0, %s127
      %s144 = sphi 0, %s128
      %s150 = sphi 0, %s152
      %s153 = sphi 0, %s150
      %s154 = sphi 0, %s153
      %s170 = sphi 0, %s154
      %s176 = sphi 0, %s178
      %s179 = sphi 0, %s176
      %s180 = sphi 0, %s179
      %s196 = sphi 0, %s180
      %s202 = sphi 0, %s204
      %s205 = sphi 0, %s202
      %s206 = sphi 0, %s205
      %s222 = sphi 0, %s206
      %s228 = sphi 0, %s230
      %s231 = sphi 0, %s228
      %s232 = sphi 0, %s231
      %s248 = sphi 0, %s232
      %s252 = sphi 0, %s252
      %s254 = sphi 0, %s252
      %s255 = sphi 0, %s254
      %s269 = sphi 0, %s255
      %s273 = sphi 0, %s273
      %s275 = sphi 0, %s273
      %s276 = sphi 0, %s275
      %s290 = sphi 0, %s276
      %s294 = sphi 0, %s294
      %s296 = sphi 0, %s294
      %s297 = sphi 0, %s296
      %s311 = sphi 0, %s297
      %s315 = sphi 0, %s315
      %s317 = sphi 0, %s315
      %s318 = sphi 0, %s317
      %s332 = sphi 0, %s318
      %s336 = sphi 0, %s336
      %s338 = sphi 0, %s336
      %s339 = sphi 0, %s338
      %s353 = sphi 0, %s339
      %s357 = sphi 0, %s357
      %s359 = sphi 0, %s357
      %s360 = sphi 0, %s359
      %s374 = sphi 0, %s360
      %s378 = sphi 0, %s378
      %s380 = sphi 0, %s378
      %s381 = sphi 0, %s380
      %s395 = sphi 0, %s381
      %s399 = sphi 0, %s399
      %s401 = sphi 0, %s399
      %s402 = sphi 0, %s401
      %s416 = sphi 0, %s402
      %s420 = sphi 0, %s420
      %s422 = sphi 0, %s420
      %s423 = sphi 0, %s422
      %s437 = sphi 0, %s423
      %s441 = sphi 0, %s441
      %s443 = sphi 0, %s441
      %s444 = sphi 0, %s443
      %s458 = sphi 0, %s444
      %s462 = sphi 0, %s462
      %s464 = sphi 0, %s462
      %s465 = sphi 0, %s464
      %s479 = sphi 0, %s465
      %s483 = sphi 0, %s483
      %s485 = sphi 0, %s483
      %s486 = sphi 0, %s485
      %s500 = sphi 0, %s486
      %s504 = sphi 0, %s504
      %s506 = sphi 0, %s504
      %s507 = sphi 0, %s506
      %s521 = sphi 0, %s507
      %s525 = sphi 0, %s525
      %s527 = sphi 0, %s525
      %s528 = sphi 0, %s527
      %s542 = sphi 0, %s528
      %s546 = sphi 0, %s546
      %s548 = sphi 0, %s546
      %s549 = sphi 0, %s548
      %s563 = sphi 0, %s549
      %s567 = sphi 0, %s567
      %s569 = sphi 0, %s567
      %s570 = sphi 0, %s569
      %s584 = sphi 0, %s570
      %s588 = sphi 0, %s588
      %s590 = sphi 0, %s588
      %s591 = sphi 0, %s590
      %s605 = sphi 0, %s591
      %s609 = sphi 0, %s609
      %s611 = sphi 0, %s609
      %s612 = sphi 0, %s611
      %s626 = sphi 0, %s612
      %s630 = sphi 0, %s630
      %s632 = sphi 0, %s630
      %s633 = sphi 0, %s632
      %s647 = sphi 0, %s633
      %s651 = sphi 0, %s651
      %s653 = sphi 0, %s651
      %s654 = sphi 0, %s653
      %s668 = sphi 0, %s654
      %s672 = sphi 0, %s672
      %s674 = sphi 0, %s672
      %s675 = sphi 0, %s674
      %s689 = sphi 0, %s675
      %s693 = sphi 0, %s693
      %s695 = sphi 0, %s693
      %s696 = sphi 0, %s695
      %s710 = sphi 0, %s696
      %s714 = sphi 0, %s714
      %s716 = sphi 0, %s714
      %s717 = sphi 0, %s716
      %s731 = sphi 0, %s717
      %s735 = sphi 0, %s735
      %s737 = sphi 0, %s735
      %s738 = sphi 0, %s737
      %s752 = sphi 0, %s738
      %s756 = sphi 0, %s756
      %s758 = sphi 0, %s756
      %s759 = sphi 0, %s758
      %s773 = sphi 0, %s759
      %s777 = sphi 0, %s777
      %s779 = sphi 0, %s777
      %s780 = sphi 0, %s779
      %s794 = sphi 0, %s780
      %s798 = sphi 0, %s798
      %s800 = sphi 0, %s798
      %s801 = sphi 0, %s800
      %s815 = sphi 0, %s801
      %s819 = sphi 0, %s819
      %s821 = sphi 0, %s819
      %s822 = sphi 0, %s821
      %s836 = sphi 0, %s822
      %s842 = sphi 0, %s844
      %s845 = sphi 0, %s842
      %s846 = sphi 0, %s845
      %s862 = sphi 0, %s846
      %s868 = sphi 0, %s870
      %s871 = sphi 0, %s868
      %s872 = sphi 0, %s871
      %s888 = sphi 0, %s872
      %s894 = sphi 0, %s896
      %s897 = sphi 0, %s894
      %s898 = sphi 0, %s897
      %s914 = sphi 0, %s898
      %s920 = sphi 0, %s922
      %s923 = sphi 0, %s920
      %s924 = sphi 0, %s923
      %s940 = sphi 0, %s924
    $region4: #{sp_gnn_forward.1} parent=1 // loop_header_branch
      %91 = sbr.rel (%p89) target = $region8
    $region5: #{sp_gnn_forward.1} parent=1 // loop_body
      %s93 = ssub.s32 %s88, 1
      %s94 = ssub.s32 %s88, 2
      %s95 = sadd.s32 %s88, 1
      %s96 = ssub.s32 %s88, %s95
      %p97 = scmp.eq.s32.totalorder %s96, 0
      %s99 = sadd.s32 %s98, 1
      %s100 = scalar_select %p97, %s98, %s99
      %p103 = pneg %p97
      %p104 = scmp.eq.s32.totalorder %s88, 1
      %p105 = por %p103, %p104
      %p106 = scmp.ne.s32.totalorder %s98, %s101
      %p107 = scmp.eq.s32.totalorder %s88, 0
      %p108 = por %p106, %p107
      %p109 = scmp.ne.s32.totalorder %s98, %s101
      %p110 = scmp.eq.s32.totalorder %s93, 1
      %p111 = por %p109, %p110
      %p112 = scmp.ne.s32.totalorder %s101, %s102
      %p113 = scmp.eq.s32.totalorder %s93, 0
      %p114 = por %p112, %p113
      %p115 = scmp.ne.s32.totalorder %s101, %s102
      %p116 = scmp.eq.s32.totalorder %s94, 1
      %p117 = por %p115, %p116
      %p119 = scmp.ne.s32.totalorder %s102, %s118
      %p120 = scmp.eq.s32.totalorder %s94, 0
      %p121 = por %p119, %p120
      %s122 = ssub.s32 %s88, %s95
      %p123 = scmp.eq.s32.totalorder %s122, 0
      %s125 = sadd.s32 %s124, 1
      %s126 = scalar_select %p123, %s124, %s125
      %p129 = pneg %p123
      %p130 = scmp.eq.s32.totalorder %s88, 1
      %p131 = por %p129, %p130
      %p132 = scmp.ne.s32.totalorder %s124, %s127
      %p133 = scmp.eq.s32.totalorder %s88, 0
      %p134 = por %p132, %p133
      %p135 = scmp.ne.s32.totalorder %s124, %s127
      %p136 = scmp.eq.s32.totalorder %s93, 1
      %p137 = por %p135, %p136
      %p138 = scmp.ne.s32.totalorder %s127, %s128
      %p139 = scmp.eq.s32.totalorder %s93, 0
      %p140 = por %p138, %p139
      %p141 = scmp.ne.s32.totalorder %s127, %s128
      %p142 = scmp.eq.s32.totalorder %s94, 1
      %p143 = por %p141, %p142
      %p145 = scmp.ne.s32.totalorder %s128, %s144
      %p146 = scmp.eq.s32.totalorder %s94, 0
      %p147 = por %p145, %p146
      %s148 = ssub.s32 %s88, %s95
      %p149 = scmp.eq.s32.totalorder %s148, 0
      %s151 = sadd.s32 %s150, 1
      %s152 = scalar_select %p149, %s150, %s151
      %p155 = pneg %p149
      %p156 = scmp.eq.s32.totalorder %s88, 1
      %p157 = por %p155, %p156
      %p158 = scmp.ne.s32.totalorder %s150, %s153
      %p159 = scmp.eq.s32.totalorder %s88, 0
      %p160 = por %p158, %p159
      %p161 = scmp.ne.s32.totalorder %s150, %s153
      %p162 = scmp.eq.s32.totalorder %s93, 1
      %p163 = por %p161, %p162
      %p164 = scmp.ne.s32.totalorder %s153, %s154
      %p165 = scmp.eq.s32.totalorder %s93, 0
      %p166 = por %p164, %p165
      %p167 = scmp.ne.s32.totalorder %s153, %s154
      %p168 = scmp.eq.s32.totalorder %s94, 1
      %p169 = por %p167, %p168
      %p171 = scmp.ne.s32.totalorder %s154, %s170
      %p172 = scmp.eq.s32.totalorder %s94, 0
      %p173 = por %p171, %p172
      %s174 = ssub.s32 %s88, %s95
      %p175 = scmp.eq.s32.totalorder %s174, 0
      %s177 = sadd.s32 %s176, 1
      %s178 = scalar_select %p175, %s176, %s177
      %p181 = pneg %p175
      %p182 = scmp.eq.s32.totalorder %s88, 1
      %p183 = por %p181, %p182
      %p184 = scmp.ne.s32.totalorder %s176, %s179
      %p185 = scmp.eq.s32.totalorder %s88, 0
      %p186 = por %p184, %p185
      %p187 = scmp.ne.s32.totalorder %s176, %s179
      %p188 = scmp.eq.s32.totalorder %s93, 1
      %p189 = por %p187, %p188
      %p190 = scmp.ne.s32.totalorder %s179, %s180
      %p191 = scmp.eq.s32.totalorder %s93, 0
      %p192 = por %p190, %p191
      %p193 = scmp.ne.s32.totalorder %s179, %s180
      %p194 = scmp.eq.s32.totalorder %s94, 1
      %p195 = por %p193, %p194
      %p197 = scmp.ne.s32.totalorder %s180, %s196
      %p198 = scmp.eq.s32.totalorder %s94, 0
      %p199 = por %p197, %p198
      %s200 = ssub.s32 %s88, %s95
      %p201 = scmp.eq.s32.totalorder %s200, 0
      %s203 = sadd.s32 %s202, 1
      %s204 = scalar_select %p201, %s202, %s203
      %p207 = pneg %p201
      %p208 = scmp.eq.s32.totalorder %s88, 1
      %p209 = por %p207, %p208
      %p210 = scmp.ne.s32.totalorder %s202, %s205
      %p211 = scmp.eq.s32.totalorder %s88, 0
      %p212 = por %p210, %p211
      %p213 = scmp.ne.s32.totalorder %s202, %s205
      %p214 = scmp.eq.s32.totalorder %s93, 1
      %p215 = por %p213, %p214
      %p216 = scmp.ne.s32.totalorder %s205, %s206
      %p217 = scmp.eq.s32.totalorder %s93, 0
      %p218 = por %p216, %p217
      %p219 = scmp.ne.s32.totalorder %s205, %s206
      %p220 = scmp.eq.s32.totalorder %s94, 1
      %p221 = por %p219, %p220
      %p223 = scmp.ne.s32.totalorder %s206, %s222
      %p224 = scmp.eq.s32.totalorder %s94, 0
      %p225 = por %p223, %p224
      %s226 = ssub.s32 %s88, %s95
      %p227 = scmp.eq.s32.totalorder %s226, 0
      %s229 = sadd.s32 %s228, 1
      %s230 = scalar_select %p227, %s228, %s229
      %p233 = pneg %p227
      %p234 = scmp.eq.s32.totalorder %s88, 1
      %p235 = por %p233, %p234
      %p236 = scmp.ne.s32.totalorder %s228, %s231
      %p237 = scmp.eq.s32.totalorder %s88, 0
      %p238 = por %p236, %p237
      %p239 = scmp.ne.s32.totalorder %s228, %s231
      %p240 = scmp.eq.s32.totalorder %s93, 1
      %p241 = por %p239, %p240
      %p242 = scmp.ne.s32.totalorder %s231, %s232
      %p243 = scmp.eq.s32.totalorder %s93, 0
      %p244 = por %p242, %p243
      %p245 = scmp.ne.s32.totalorder %s231, %s232
      %p246 = scmp.eq.s32.totalorder %s94, 1
      %p247 = por %p245, %p246
      %p249 = scmp.ne.s32.totalorder %s232, %s248
      %p250 = scmp.eq.s32.totalorder %s94, 0
      %p251 = por %p249, %p250
      %s253 = sadd.s32 %s252, 1
      %p256 = scmp.eq.s32.totalorder %s88, 1
      %p257 = scmp.ne.s32.totalorder %s252, %s254
      %p258 = scmp.eq.s32.totalorder %s88, 0
      %p259 = por %p257, %p258
      %p260 = scmp.ne.s32.totalorder %s252, %s254
      %p261 = scmp.eq.s32.totalorder %s93, 1
      %p262 = por %p260, %p261
      %p263 = scmp.ne.s32.totalorder %s254, %s255
      %p264 = scmp.eq.s32.totalorder %s93, 0
      %p265 = por %p263, %p264
      %p266 = scmp.ne.s32.totalorder %s254, %s255
      %p267 = scmp.eq.s32.totalorder %s94, 1
      %p268 = por %p266, %p267
      %p270 = scmp.ne.s32.totalorder %s255, %s269
      %p271 = scmp.eq.s32.totalorder %s94, 0
      %p272 = por %p270, %p271
      %s274 = sadd.s32 %s273, 1
      %p277 = scmp.eq.s32.totalorder %s88, 1
      %p278 = scmp.ne.s32.totalorder %s273, %s275
      %p279 = scmp.eq.s32.totalorder %s88, 0
      %p280 = por %p278, %p279
      %p281 = scmp.ne.s32.totalorder %s273, %s275
      %p282 = scmp.eq.s32.totalorder %s93, 1
      %p283 = por %p281, %p282
      %p284 = scmp.ne.s32.totalorder %s275, %s276
      %p285 = scmp.eq.s32.totalorder %s93, 0
      %p286 = por %p284, %p285
      %p287 = scmp.ne.s32.totalorder %s275, %s276
      %p288 = scmp.eq.s32.totalorder %s94, 1
      %p289 = por %p287, %p288
      %p291 = scmp.ne.s32.totalorder %s276, %s290
      %p292 = scmp.eq.s32.totalorder %s94, 0
      %p293 = por %p291, %p292
      %s295 = sadd.s32 %s294, 1
      %p298 = scmp.eq.s32.totalorder %s88, 1
      %p299 = scmp.ne.s32.totalorder %s294, %s296
      %p300 = scmp.eq.s32.totalorder %s88, 0
      %p301 = por %p299, %p300
      %p302 = scmp.ne.s32.totalorder %s294, %s296
      %p303 = scmp.eq.s32.totalorder %s93, 1
      %p304 = por %p302, %p303
      %p305 = scmp.ne.s32.totalorder %s296, %s297
      %p306 = scmp.eq.s32.totalorder %s93, 0
      %p307 = por %p305, %p306
      %p308 = scmp.ne.s32.totalorder %s296, %s297
      %p309 = scmp.eq.s32.totalorder %s94, 1
      %p310 = por %p308, %p309
      %p312 = scmp.ne.s32.totalorder %s297, %s311
      %p313 = scmp.eq.s32.totalorder %s94, 0
      %p314 = por %p312, %p313
      %s316 = sadd.s32 %s315, 1
      %p319 = scmp.eq.s32.totalorder %s88, 1
      %p320 = scmp.ne.s32.totalorder %s315, %s317
      %p321 = scmp.eq.s32.totalorder %s88, 0
      %p322 = por %p320, %p321
      %p323 = scmp.ne.s32.totalorder %s315, %s317
      %p324 = scmp.eq.s32.totalorder %s93, 1
      %p325 = por %p323, %p324
      %p326 = scmp.ne.s32.totalorder %s317, %s318
      %p327 = scmp.eq.s32.totalorder %s93, 0
      %p328 = por %p326, %p327
      %p329 = scmp.ne.s32.totalorder %s317, %s318
      %p330 = scmp.eq.s32.totalorder %s94, 1
      %p331 = por %p329, %p330
      %p333 = scmp.ne.s32.totalorder %s318, %s332
      %p334 = scmp.eq.s32.totalorder %s94, 0
      %p335 = por %p333, %p334
      %s337 = sadd.s32 %s336, 1
      %p340 = scmp.eq.s32.totalorder %s88, 1
      %p341 = scmp.ne.s32.totalorder %s336, %s338
      %p342 = scmp.eq.s32.totalorder %s88, 0
      %p343 = por %p341, %p342
      %p344 = scmp.ne.s32.totalorder %s336, %s338
      %p345 = scmp.eq.s32.totalorder %s93, 1
      %p346 = por %p344, %p345
      %p347 = scmp.ne.s32.totalorder %s338, %s339
      %p348 = scmp.eq.s32.totalorder %s93, 0
      %p349 = por %p347, %p348
      %p350 = scmp.ne.s32.totalorder %s338, %s339
      %p351 = scmp.eq.s32.totalorder %s94, 1
      %p352 = por %p350, %p351
      %p354 = scmp.ne.s32.totalorder %s339, %s353
      %p355 = scmp.eq.s32.totalorder %s94, 0
      %p356 = por %p354, %p355
      %s358 = sadd.s32 %s357, 1
      %p361 = scmp.eq.s32.totalorder %s88, 1
      %p362 = scmp.ne.s32.totalorder %s357, %s359
      %p363 = scmp.eq.s32.totalorder %s88, 0
      %p364 = por %p362, %p363
      %p365 = scmp.ne.s32.totalorder %s357, %s359
      %p366 = scmp.eq.s32.totalorder %s93, 1
      %p367 = por %p365, %p366
      %p368 = scmp.ne.s32.totalorder %s359, %s360
      %p369 = scmp.eq.s32.totalorder %s93, 0
      %p370 = por %p368, %p369
      %p371 = scmp.ne.s32.totalorder %s359, %s360
      %p372 = scmp.eq.s32.totalorder %s94, 1
      %p373 = por %p371, %p372
      %p375 = scmp.ne.s32.totalorder %s360, %s374
      %p376 = scmp.eq.s32.totalorder %s94, 0
      %p377 = por %p375, %p376
      %s379 = sadd.s32 %s378, 1
      %p382 = scmp.eq.s32.totalorder %s88, 1
      %p383 = scmp.ne.s32.totalorder %s378, %s380
      %p384 = scmp.eq.s32.totalorder %s88, 0
      %p385 = por %p383, %p384
      %p386 = scmp.ne.s32.totalorder %s378, %s380
      %p387 = scmp.eq.s32.totalorder %s93, 1
      %p388 = por %p386, %p387
      %p389 = scmp.ne.s32.totalorder %s380, %s381
      %p390 = scmp.eq.s32.totalorder %s93, 0
      %p391 = por %p389, %p390
      %p392 = scmp.ne.s32.totalorder %s380, %s381
      %p393 = scmp.eq.s32.totalorder %s94, 1
      %p394 = por %p392, %p393
      %p396 = scmp.ne.s32.totalorder %s381, %s395
      %p397 = scmp.eq.s32.totalorder %s94, 0
      %p398 = por %p396, %p397
      %s400 = sadd.s32 %s399, 1
      %p403 = scmp.eq.s32.totalorder %s88, 1
      %p404 = scmp.ne.s32.totalorder %s399, %s401
      %p405 = scmp.eq.s32.totalorder %s88, 0
      %p406 = por %p404, %p405
      %p407 = scmp.ne.s32.totalorder %s399, %s401
      %p408 = scmp.eq.s32.totalorder %s93, 1
      %p409 = por %p407, %p408
      %p410 = scmp.ne.s32.totalorder %s401, %s402
      %p411 = scmp.eq.s32.totalorder %s93, 0
      %p412 = por %p410, %p411
      %p413 = scmp.ne.s32.totalorder %s401, %s402
      %p414 = scmp.eq.s32.totalorder %s94, 1
      %p415 = por %p413, %p414
      %p417 = scmp.ne.s32.totalorder %s402, %s416
      %p418 = scmp.eq.s32.totalorder %s94, 0
      %p419 = por %p417, %p418
      %s421 = sadd.s32 %s420, 1
      %p424 = scmp.eq.s32.totalorder %s88, 1
      %p425 = scmp.ne.s32.totalorder %s420, %s422
      %p426 = scmp.eq.s32.totalorder %s88, 0
      %p427 = por %p425, %p426
      %p428 = scmp.ne.s32.totalorder %s420, %s422
      %p429 = scmp.eq.s32.totalorder %s93, 1
      %p430 = por %p428, %p429
      %p431 = scmp.ne.s32.totalorder %s422, %s423
      %p432 = scmp.eq.s32.totalorder %s93, 0
      %p433 = por %p431, %p432
      %p434 = scmp.ne.s32.totalorder %s422, %s423
      %p435 = scmp.eq.s32.totalorder %s94, 1
      %p436 = por %p434, %p435
      %p438 = scmp.ne.s32.totalorder %s423, %s437
      %p439 = scmp.eq.s32.totalorder %s94, 0
      %p440 = por %p438, %p439
      %s442 = sadd.s32 %s441, 1
      %p445 = scmp.eq.s32.totalorder %s88, 1
      %p446 = scmp.ne.s32.totalorder %s441, %s443
      %p447 = scmp.eq.s32.totalorder %s88, 0
      %p448 = por %p446, %p447
      %p449 = scmp.ne.s32.totalorder %s441, %s443
      %p450 = scmp.eq.s32.totalorder %s93, 1
      %p451 = por %p449, %p450
      %p452 = scmp.ne.s32.totalorder %s443, %s444
      %p453 = scmp.eq.s32.totalorder %s93, 0
      %p454 = por %p452, %p453
      %p455 = scmp.ne.s32.totalorder %s443, %s444
      %p456 = scmp.eq.s32.totalorder %s94, 1
      %p457 = por %p455, %p456
      %p459 = scmp.ne.s32.totalorder %s444, %s458
      %p460 = scmp.eq.s32.totalorder %s94, 0
      %p461 = por %p459, %p460
      %s463 = sadd.s32 %s462, 1
      %p466 = scmp.eq.s32.totalorder %s88, 1
      %p467 = scmp.ne.s32.totalorder %s462, %s464
      %p468 = scmp.eq.s32.totalorder %s88, 0
      %p469 = por %p467, %p468
      %p470 = scmp.ne.s32.totalorder %s462, %s464
      %p471 = scmp.eq.s32.totalorder %s93, 1
      %p472 = por %p470, %p471
      %p473 = scmp.ne.s32.totalorder %s464, %s465
      %p474 = scmp.eq.s32.totalorder %s93, 0
      %p475 = por %p473, %p474
      %p476 = scmp.ne.s32.totalorder %s464, %s465
      %p477 = scmp.eq.s32.totalorder %s94, 1
      %p478 = por %p476, %p477
      %p480 = scmp.ne.s32.totalorder %s465, %s479
      %p481 = scmp.eq.s32.totalorder %s94, 0
      %p482 = por %p480, %p481
      %s484 = sadd.s32 %s483, 1
      %p487 = scmp.eq.s32.totalorder %s88, 1
      %p488 = scmp.ne.s32.totalorder %s483, %s485
      %p489 = scmp.eq.s32.totalorder %s88, 0
      %p490 = por %p488, %p489
      %p491 = scmp.ne.s32.totalorder %s483, %s485
      %p492 = scmp.eq.s32.totalorder %s93, 1
      %p493 = por %p491, %p492
      %p494 = scmp.ne.s32.totalorder %s485, %s486
      %p495 = scmp.eq.s32.totalorder %s93, 0
      %p496 = por %p494, %p495
      %p497 = scmp.ne.s32.totalorder %s485, %s486
      %p498 = scmp.eq.s32.totalorder %s94, 1
      %p499 = por %p497, %p498
      %p501 = scmp.ne.s32.totalorder %s486, %s500
      %p502 = scmp.eq.s32.totalorder %s94, 0
      %p503 = por %p501, %p502
      %s505 = sadd.s32 %s504, 1
      %p508 = scmp.eq.s32.totalorder %s88, 1
      %p509 = scmp.ne.s32.totalorder %s504, %s506
      %p510 = scmp.eq.s32.totalorder %s88, 0
      %p511 = por %p509, %p510
      %p512 = scmp.ne.s32.totalorder %s504, %s506
      %p513 = scmp.eq.s32.totalorder %s93, 1
      %p514 = por %p512, %p513
      %p515 = scmp.ne.s32.totalorder %s506, %s507
      %p516 = scmp.eq.s32.totalorder %s93, 0
      %p517 = por %p515, %p516
      %p518 = scmp.ne.s32.totalorder %s506, %s507
      %p519 = scmp.eq.s32.totalorder %s94, 1
      %p520 = por %p518, %p519
      %p522 = scmp.ne.s32.totalorder %s507, %s521
      %p523 = scmp.eq.s32.totalorder %s94, 0
      %p524 = por %p522, %p523
      %s526 = sadd.s32 %s525, 1
      %p529 = scmp.eq.s32.totalorder %s88, 1
      %p530 = scmp.ne.s32.totalorder %s525, %s527
      %p531 = scmp.eq.s32.totalorder %s88, 0
      %p532 = por %p530, %p531
      %p533 = scmp.ne.s32.totalorder %s525, %s527
      %p534 = scmp.eq.s32.totalorder %s93, 1
      %p535 = por %p533, %p534
      %p536 = scmp.ne.s32.totalorder %s527, %s528
      %p537 = scmp.eq.s32.totalorder %s93, 0
      %p538 = por %p536, %p537
      %p539 = scmp.ne.s32.totalorder %s527, %s528
      %p540 = scmp.eq.s32.totalorder %s94, 1
      %p541 = por %p539, %p540
      %p543 = scmp.ne.s32.totalorder %s528, %s542
      %p544 = scmp.eq.s32.totalorder %s94, 0
      %p545 = por %p543, %p544
      %s547 = sadd.s32 %s546, 1
      %p550 = scmp.eq.s32.totalorder %s88, 1
      %p551 = scmp.ne.s32.totalorder %s546, %s548
      %p552 = scmp.eq.s32.totalorder %s88, 0
      %p553 = por %p551, %p552
      %p554 = scmp.ne.s32.totalorder %s546, %s548
      %p555 = scmp.eq.s32.totalorder %s93, 1
      %p556 = por %p554, %p555
      %p557 = scmp.ne.s32.totalorder %s548, %s549
      %p558 = scmp.eq.s32.totalorder %s93, 0
      %p559 = por %p557, %p558
      %p560 = scmp.ne.s32.totalorder %s548, %s549
      %p561 = scmp.eq.s32.totalorder %s94, 1
      %p562 = por %p560, %p561
      %p564 = scmp.ne.s32.totalorder %s549, %s563
      %p565 = scmp.eq.s32.totalorder %s94, 0
      %p566 = por %p564, %p565
      %s568 = sadd.s32 %s567, 1
      %p571 = scmp.eq.s32.totalorder %s88, 1
      %p572 = scmp.ne.s32.totalorder %s567, %s569
      %p573 = scmp.eq.s32.totalorder %s88, 0
      %p574 = por %p572, %p573
      %p575 = scmp.ne.s32.totalorder %s567, %s569
      %p576 = scmp.eq.s32.totalorder %s93, 1
      %p577 = por %p575, %p576
      %p578 = scmp.ne.s32.totalorder %s569, %s570
      %p579 = scmp.eq.s32.totalorder %s93, 0
      %p580 = por %p578, %p579
      %p581 = scmp.ne.s32.totalorder %s569, %s570
      %p582 = scmp.eq.s32.totalorder %s94, 1
      %p583 = por %p581, %p582
      %p585 = scmp.ne.s32.totalorder %s570, %s584
      %p586 = scmp.eq.s32.totalorder %s94, 0
      %p587 = por %p585, %p586
      %s589 = sadd.s32 %s588, 1
      %p592 = scmp.eq.s32.totalorder %s88, 1
      %p593 = scmp.ne.s32.totalorder %s588, %s590
      %p594 = scmp.eq.s32.totalorder %s88, 0
      %p595 = por %p593, %p594
      %p596 = scmp.ne.s32.totalorder %s588, %s590
      %p597 = scmp.eq.s32.totalorder %s93, 1
      %p598 = por %p596, %p597
      %p599 = scmp.ne.s32.totalorder %s590, %s591
      %p600 = scmp.eq.s32.totalorder %s93, 0
      %p601 = por %p599, %p600
      %p602 = scmp.ne.s32.totalorder %s590, %s591
      %p603 = scmp.eq.s32.totalorder %s94, 1
      %p604 = por %p602, %p603
      %p606 = scmp.ne.s32.totalorder %s591, %s605
      %p607 = scmp.eq.s32.totalorder %s94, 0
      %p608 = por %p606, %p607
      %s610 = sadd.s32 %s609, 1
      %p613 = scmp.eq.s32.totalorder %s88, 1
      %p614 = scmp.ne.s32.totalorder %s609, %s611
      %p615 = scmp.eq.s32.totalorder %s88, 0
      %p616 = por %p614, %p615
      %p617 = scmp.ne.s32.totalorder %s609, %s611
      %p618 = scmp.eq.s32.totalorder %s93, 1
      %p619 = por %p617, %p618
      %p620 = scmp.ne.s32.totalorder %s611, %s612
      %p621 = scmp.eq.s32.totalorder %s93, 0
      %p622 = por %p620, %p621
      %p623 = scmp.ne.s32.totalorder %s611, %s612
      %p624 = scmp.eq.s32.totalorder %s94, 1
      %p625 = por %p623, %p624
      %p627 = scmp.ne.s32.totalorder %s612, %s626
      %p628 = scmp.eq.s32.totalorder %s94, 0
      %p629 = por %p627, %p628
      %s631 = sadd.s32 %s630, 1
      %p634 = scmp.eq.s32.totalorder %s88, 1
      %p635 = scmp.ne.s32.totalorder %s630, %s632
      %p636 = scmp.eq.s32.totalorder %s88, 0
      %p637 = por %p635, %p636
      %p638 = scmp.ne.s32.totalorder %s630, %s632
      %p639 = scmp.eq.s32.totalorder %s93, 1
      %p640 = por %p638, %p639
      %p641 = scmp.ne.s32.totalorder %s632, %s633
      %p642 = scmp.eq.s32.totalorder %s93, 0
      %p643 = por %p641, %p642
      %p644 = scmp.ne.s32.totalorder %s632, %s633
      %p645 = scmp.eq.s32.totalorder %s94, 1
      %p646 = por %p644, %p645
      %p648 = scmp.ne.s32.totalorder %s633, %s647
      %p649 = scmp.eq.s32.totalorder %s94, 0
      %p650 = por %p648, %p649
      %s652 = sadd.s32 %s651, 1
      %p655 = scmp.eq.s32.totalorder %s88, 1
      %p656 = scmp.ne.s32.totalorder %s651, %s653
      %p657 = scmp.eq.s32.totalorder %s88, 0
      %p658 = por %p656, %p657
      %p659 = scmp.ne.s32.totalorder %s651, %s653
      %p660 = scmp.eq.s32.totalorder %s93, 1
      %p661 = por %p659, %p660
      %p662 = scmp.ne.s32.totalorder %s653, %s654
      %p663 = scmp.eq.s32.totalorder %s93, 0
      %p664 = por %p662, %p663
      %p665 = scmp.ne.s32.totalorder %s653, %s654
      %p666 = scmp.eq.s32.totalorder %s94, 1
      %p667 = por %p665, %p666
      %p669 = scmp.ne.s32.totalorder %s654, %s668
      %p670 = scmp.eq.s32.totalorder %s94, 0
      %p671 = por %p669, %p670
      %s673 = sadd.s32 %s672, 1
      %p676 = scmp.eq.s32.totalorder %s88, 1
      %p677 = scmp.ne.s32.totalorder %s672, %s674
      %p678 = scmp.eq.s32.totalorder %s88, 0
      %p679 = por %p677, %p678
      %p680 = scmp.ne.s32.totalorder %s672, %s674
      %p681 = scmp.eq.s32.totalorder %s93, 1
      %p682 = por %p680, %p681
      %p683 = scmp.ne.s32.totalorder %s674, %s675
      %p684 = scmp.eq.s32.totalorder %s93, 0
      %p685 = por %p683, %p684
      %p686 = scmp.ne.s32.totalorder %s674, %s675
      %p687 = scmp.eq.s32.totalorder %s94, 1
      %p688 = por %p686, %p687
      %p690 = scmp.ne.s32.totalorder %s675, %s689
      %p691 = scmp.eq.s32.totalorder %s94, 0
      %p692 = por %p690, %p691
      %s694 = sadd.s32 %s693, 1
      %p697 = scmp.eq.s32.totalorder %s88, 1
      %p698 = scmp.ne.s32.totalorder %s693, %s695
      %p699 = scmp.eq.s32.totalorder %s88, 0
      %p700 = por %p698, %p699
      %p701 = scmp.ne.s32.totalorder %s693, %s695
      %p702 = scmp.eq.s32.totalorder %s93, 1
      %p703 = por %p701, %p702
      %p704 = scmp.ne.s32.totalorder %s695, %s696
      %p705 = scmp.eq.s32.totalorder %s93, 0
      %p706 = por %p704, %p705
      %p707 = scmp.ne.s32.totalorder %s695, %s696
      %p708 = scmp.eq.s32.totalorder %s94, 1
      %p709 = por %p707, %p708
      %p711 = scmp.ne.s32.totalorder %s696, %s710
      %p712 = scmp.eq.s32.totalorder %s94, 0
      %p713 = por %p711, %p712
      %s715 = sadd.s32 %s714, 1
      %p718 = scmp.eq.s32.totalorder %s88, 1
      %p719 = scmp.ne.s32.totalorder %s714, %s716
      %p720 = scmp.eq.s32.totalorder %s88, 0
      %p721 = por %p719, %p720
      %p722 = scmp.ne.s32.totalorder %s714, %s716
      %p723 = scmp.eq.s32.totalorder %s93, 1
      %p724 = por %p722, %p723
      %p725 = scmp.ne.s32.totalorder %s716, %s717
      %p726 = scmp.eq.s32.totalorder %s93, 0
      %p727 = por %p725, %p726
      %p728 = scmp.ne.s32.totalorder %s716, %s717
      %p729 = scmp.eq.s32.totalorder %s94, 1
      %p730 = por %p728, %p729
      %p732 = scmp.ne.s32.totalorder %s717, %s731
      %p733 = scmp.eq.s32.totalorder %s94, 0
      %p734 = por %p732, %p733
      %s736 = sadd.s32 %s735, 1
      %p739 = scmp.eq.s32.totalorder %s88, 1
      %p740 = scmp.ne.s32.totalorder %s735, %s737
      %p741 = scmp.eq.s32.totalorder %s88, 0
      %p742 = por %p740, %p741
      %p743 = scmp.ne.s32.totalorder %s735, %s737
      %p744 = scmp.eq.s32.totalorder %s93, 1
      %p745 = por %p743, %p744
      %p746 = scmp.ne.s32.totalorder %s737, %s738
      %p747 = scmp.eq.s32.totalorder %s93, 0
      %p748 = por %p746, %p747
      %p749 = scmp.ne.s32.totalorder %s737, %s738
      %p750 = scmp.eq.s32.totalorder %s94, 1
      %p751 = por %p749, %p750
      %p753 = scmp.ne.s32.totalorder %s738, %s752
      %p754 = scmp.eq.s32.totalorder %s94, 0
      %p755 = por %p753, %p754
      %s757 = sadd.s32 %s756, 1
      %p760 = scmp.eq.s32.totalorder %s88, 1
      %p761 = scmp.ne.s32.totalorder %s756, %s758
      %p762 = scmp.eq.s32.totalorder %s88, 0
      %p763 = por %p761, %p762
      %p764 = scmp.ne.s32.totalorder %s756, %s758
      %p765 = scmp.eq.s32.totalorder %s93, 1
      %p766 = por %p764, %p765
      %p767 = scmp.ne.s32.totalorder %s758, %s759
      %p768 = scmp.eq.s32.totalorder %s93, 0
      %p769 = por %p767, %p768
      %p770 = scmp.ne.s32.totalorder %s758, %s759
      %p771 = scmp.eq.s32.totalorder %s94, 1
      %p772 = por %p770, %p771
      %p774 = scmp.ne.s32.totalorder %s759, %s773
      %p775 = scmp.eq.s32.totalorder %s94, 0
      %p776 = por %p774, %p775
      %s778 = sadd.s32 %s777, 1
      %p781 = scmp.eq.s32.totalorder %s88, 1
      %p782 = scmp.ne.s32.totalorder %s777, %s779
      %p783 = scmp.eq.s32.totalorder %s88, 0
      %p784 = por %p782, %p783
      %p785 = scmp.ne.s32.totalorder %s777, %s779
      %p786 = scmp.eq.s32.totalorder %s93, 1
      %p787 = por %p785, %p786
      %p788 = scmp.ne.s32.totalorder %s779, %s780
      %p789 = scmp.eq.s32.totalorder %s93, 0
      %p790 = por %p788, %p789
      %p791 = scmp.ne.s32.totalorder %s779, %s780
      %p792 = scmp.eq.s32.totalorder %s94, 1
      %p793 = por %p791, %p792
      %p795 = scmp.ne.s32.totalorder %s780, %s794
      %p796 = scmp.eq.s32.totalorder %s94, 0
      %p797 = por %p795, %p796
      %s799 = sadd.s32 %s798, 1
      %p802 = scmp.eq.s32.totalorder %s88, 1
      %p803 = scmp.ne.s32.totalorder %s798, %s800
      %p804 = scmp.eq.s32.totalorder %s88, 0
      %p805 = por %p803, %p804
      %p806 = scmp.ne.s32.totalorder %s798, %s800
      %p807 = scmp.eq.s32.totalorder %s93, 1
      %p808 = por %p806, %p807
      %p809 = scmp.ne.s32.totalorder %s800, %s801
      %p810 = scmp.eq.s32.totalorder %s93, 0
      %p811 = por %p809, %p810
      %p812 = scmp.ne.s32.totalorder %s800, %s801
      %p813 = scmp.eq.s32.totalorder %s94, 1
      %p814 = por %p812, %p813
      %p816 = scmp.ne.s32.totalorder %s801, %s815
      %p817 = scmp.eq.s32.totalorder %s94, 0
      %p818 = por %p816, %p817
      %s820 = sadd.s32 %s819, 1
      %p823 = scmp.eq.s32.totalorder %s88, 1
      %p824 = scmp.ne.s32.totalorder %s819, %s821
      %p825 = scmp.eq.s32.totalorder %s88, 0
      %p826 = por %p824, %p825
      %p827 = scmp.ne.s32.totalorder %s819, %s821
      %p828 = scmp.eq.s32.totalorder %s93, 1
      %p829 = por %p827, %p828
      %p830 = scmp.ne.s32.totalorder %s821, %s822
      %p831 = scmp.eq.s32.totalorder %s93, 0
      %p832 = por %p830, %p831
      %p833 = scmp.ne.s32.totalorder %s821, %s822
      %p834 = scmp.eq.s32.totalorder %s94, 1
      %p835 = por %p833, %p834
      %p837 = scmp.ne.s32.totalorder %s822, %s836
      %p838 = scmp.eq.s32.totalorder %s94, 0
      %p839 = por %p837, %p838
      %s840 = ssub.s32 %s88, %s95
      %p841 = scmp.eq.s32.totalorder %s840, 0
      %s843 = sadd.s32 %s842, 1
      %s844 = scalar_select %p841, %s842, %s843
      %p847 = pneg %p841
      %p848 = scmp.eq.s32.totalorder %s88, 1
      %p849 = por %p847, %p848
      %p850 = scmp.ne.s32.totalorder %s842, %s845
      %p851 = scmp.eq.s32.totalorder %s88, 0
      %p852 = por %p850, %p851
      %p853 = scmp.ne.s32.totalorder %s842, %s845
      %p854 = scmp.eq.s32.totalorder %s93, 1
      %p855 = por %p853, %p854
      %p856 = scmp.ne.s32.totalorder %s845, %s846
      %p857 = scmp.eq.s32.totalorder %s93, 0
      %p858 = por %p856, %p857
      %p859 = scmp.ne.s32.totalorder %s845, %s846
      %p860 = scmp.eq.s32.totalorder %s94, 1
      %p861 = por %p859, %p860
      %p863 = scmp.ne.s32.totalorder %s846, %s862
      %p864 = scmp.eq.s32.totalorder %s94, 0
      %p865 = por %p863, %p864
      %s866 = ssub.s32 %s88, %s95
      %p867 = scmp.eq.s32.totalorder %s866, 0
      %s869 = sadd.s32 %s868, 1
      %s870 = scalar_select %p867, %s868, %s869
      %p873 = pneg %p867
      %p874 = scmp.eq.s32.totalorder %s88, 1
      %p875 = por %p873, %p874
      %p876 = scmp.ne.s32.totalorder %s868, %s871
      %p877 = scmp.eq.s32.totalorder %s88, 0
      %p878 = por %p876, %p877
      %p879 = scmp.ne.s32.totalorder %s868, %s871
      %p880 = scmp.eq.s32.totalorder %s93, 1
      %p881 = por %p879, %p880
      %p882 = scmp.ne.s32.totalorder %s871, %s872
      %p883 = scmp.eq.s32.totalorder %s93, 0
      %p884 = por %p882, %p883
      %p885 = scmp.ne.s32.totalorder %s871, %s872
      %p886 = scmp.eq.s32.totalorder %s94, 1
      %p887 = por %p885, %p886
      %p889 = scmp.ne.s32.totalorder %s872, %s888
      %p890 = scmp.eq.s32.totalorder %s94, 0
      %p891 = por %p889, %p890
      %s892 = ssub.s32 %s88, %s95
      %p893 = scmp.eq.s32.totalorder %s892, 0
      %s895 = sadd.s32 %s894, 1
      %s896 = scalar_select %p893, %s894, %s895
      %p899 = pneg %p893
      %p900 = scmp.eq.s32.totalorder %s88, 1
      %p901 = por %p899, %p900
      %p902 = scmp.ne.s32.totalorder %s894, %s897
      %p903 = scmp.eq.s32.totalorder %s88, 0
      %p904 = por %p902, %p903
      %p905 = scmp.ne.s32.totalorder %s894, %s897
      %p906 = scmp.eq.s32.totalorder %s93, 1
      %p907 = por %p905, %p906
      %p908 = scmp.ne.s32.totalorder %s897, %s898
      %p909 = scmp.eq.s32.totalorder %s93, 0
      %p910 = por %p908, %p909
      %p911 = scmp.ne.s32.totalorder %s897, %s898
      %p912 = scmp.eq.s32.totalorder %s94, 1
      %p913 = por %p911, %p912
      %p915 = scmp.ne.s32.totalorder %s898, %s914
      %p916 = scmp.eq.s32.totalorder %s94, 0
      %p917 = por %p915, %p916
      %s918 = ssub.s32 %s88, %s95
      %p919 = scmp.eq.s32.totalorder %s918, 0
      %s921 = sadd.s32 %s920, 1
      %s922 = scalar_select %p919, %s920, %s921
      %p925 = pneg %p919
      %p926 = scmp.eq.s32.totalorder %s88, 1
      %p927 = por %p925, %p926
      %p928 = scmp.ne.s32.totalorder %s920, %s923
      %p929 = scmp.eq.s32.totalorder %s88, 0
      %p930 = por %p928, %p929
      %p931 = scmp.ne.s32.totalorder %s920, %s923
      %p932 = scmp.eq.s32.totalorder %s93, 1
      %p933 = por %p931, %p932
      %p934 = scmp.ne.s32.totalorder %s923, %s924
      %p935 = scmp.eq.s32.totalorder %s93, 0
      %p936 = por %p934, %p935
      %p937 = scmp.ne.s32.totalorder %s923, %s924
      %p938 = scmp.eq.s32.totalorder %s94, 1
      %p939 = por %p937, %p938
      %p941 = scmp.ne.s32.totalorder %s924, %s940
      %p942 = scmp.eq.s32.totalorder %s94, 0
      %p943 = por %p941, %p942
      %p944 = scmp.le.s32.totalorder 1, %s88
      %p945 = scmp.lt.s32.totalorder %s88, 3
      %p946 = pnand %p944, %p945
      %p947 = pneg %p946
      // Predicated region
      $region9: #{sp_gnn_forward.1} parent=5 // pred_check
        _
      $region10: #{sp_gnn_forward.1} parent=5 // pred_check_branch
        %949 = sbr.rel (%p946) target = $region12
      $region11: #{sp_gnn_forward.1} parent=5 // pred_region
        %s950 = ssub.s32 %s88, 1
        // Predicated region
        $region13: #{sp_gnn_forward.1} parent=11 // pred_check
          %p951 = pneg %p265
        $region14: #{sp_gnn_forward.1} parent=11 // pred_check_branch
          %953 = sbr.rel (%p951) target = $region16
        $region15: #{sp_gnn_forward.1} parent=11 // pred_region
          _
        $region16: #{sp_gnn_forward.1} parent=11 // pred_fallthru
          _
        // Predicated region
        $region17: #{sp_gnn_forward.1} parent=11 // pred_check
          %p954 = pneg %p286
        $region18: #{sp_gnn_forward.1} parent=11 // pred_check_branch
          %956 = sbr.rel (%p954) target = $region20
        $region19: #{sp_gnn_forward.1} parent=11 // pred_region
          _
        $region20: #{sp_gnn_forward.1} parent=11 // pred_fallthru
          _
        // Predicated region
        $region21: #{sp_gnn_forward.1} parent=11 // pred_check
          %p957 = pneg %p307
        $region22: #{sp_gnn_forward.1} parent=11 // pred_check_branch
          %959 = sbr.rel (%p957) target = $region24
        $region23: #{sp_gnn_forward.1} parent=11 // pred_region
          _
        $region24: #{sp_gnn_forward.1} parent=11 // pred_fallthru
          _
        // Predicated region
        $region25: #{sp_gnn_forward.1} parent=11 // pred_check
          %p960 = pneg %p328
        $region26: #{sp_gnn_forward.1} parent=11 // pred_check_branch
          %962 = sbr.rel (%p960) target = $region28
        $region27: #{sp_gnn_forward.1} parent=11 // pred_region
          _
        $region28: #{sp_gnn_forward.1} parent=11 // pred_fallthru
          _
        // Predicated region
        $region29: #{sp_gnn_forward.1} parent=11 // pred_check
          %p963 = pneg %p349
        $region30: #{sp_gnn_forward.1} parent=11 // pred_check_branch
          %965 = sbr.rel (%p963) target = $region32
        $region31: #{sp_gnn_forward.1} parent=11 // pred_region
          _
        $region32: #{sp_gnn_forward.1} parent=11 // pred_fallthru
          _
        // Predicated region
        $region33: #{sp_gnn_forward.1} parent=11 // pred_check
          %p966 = pneg %p370
        $region34: #{sp_gnn_forward.1} parent=11 // pred_check_branch
          %968 = sbr.rel (%p966) target = $region36
        $region35: #{sp_gnn_forward.1} parent=11 // pred_region
          _
        $region36: #{sp_gnn_forward.1} parent=11 // pred_fallthru
          _
        // Predicated region
        $region37: #{sp_gnn_forward.1} parent=11 // pred_check
          %p969 = pneg %p391
        $region38: #{sp_gnn_forward.1} parent=11 // pred_check_branch
          %971 = sbr.rel (%p969) target = $region40
        $region39: #{sp_gnn_forward.1} parent=11 // pred_region
          _
        $region40: #{sp_gnn_forward.1} parent=11 // pred_fallthru
          _
        // Predicated region
        $region41: #{sp_gnn_forward.1} parent=11 // pred_check
          %p972 = pneg %p412
        $region42: #{sp_gnn_forward.1} parent=11 // pred_check_branch
          %974 = sbr.rel (%p972) target = $region44
        $region43: #{sp_gnn_forward.1} parent=11 // pred_region
          _
        $region44: #{sp_gnn_forward.1} parent=11 // pred_fallthru
          _
        // Predicated region
        $region45: #{sp_gnn_forward.1} parent=11 // pred_check
          %p975 = pneg %p433
        $region46: #{sp_gnn_forward.1} parent=11 // pred_check_branch
          %977 = sbr.rel (%p975) target = $region48
        $region47: #{sp_gnn_forward.1} parent=11 // pred_region
          _
        $region48: #{sp_gnn_forward.1} parent=11 // pred_fallthru
          _
        // Predicated region
        $region49: #{sp_gnn_forward.1} parent=11 // pred_check
          %p978 = pneg %p454
        $region50: #{sp_gnn_forward.1} parent=11 // pred_check_branch
          %980 = sbr.rel (%p978) target = $region52
        $region51: #{sp_gnn_forward.1} parent=11 // pred_region
          _
        $region52: #{sp_gnn_forward.1} parent=11 // pred_fallthru
          _
        // Predicated region
        $region53: #{sp_gnn_forward.1} parent=11 // pred_check
          %p981 = pneg %p475
        $region54: #{sp_gnn_forward.1} parent=11 // pred_check_branch
          %983 = sbr.rel (%p981) target = $region56
        $region55: #{sp_gnn_forward.1} parent=11 // pred_region
          _
        $region56: #{sp_gnn_forward.1} parent=11 // pred_fallthru
          _
        // Predicated region
        $region57: #{sp_gnn_forward.1} parent=11 // pred_check
          %p984 = pneg %p496
        $region58: #{sp_gnn_forward.1} parent=11 // pred_check_branch
          %986 = sbr.rel (%p984) target = $region60
        $region59: #{sp_gnn_forward.1} parent=11 // pred_region
          _
        $region60: #{sp_gnn_forward.1} parent=11 // pred_fallthru
          _
        // Predicated region
        $region61: #{sp_gnn_forward.1} parent=11 // pred_check
          %p987 = pneg %p517
        $region62: #{sp_gnn_forward.1} parent=11 // pred_check_branch
          %989 = sbr.rel (%p987) target = $region64
        $region63: #{sp_gnn_forward.1} parent=11 // pred_region
          _
        $region64: #{sp_gnn_forward.1} parent=11 // pred_fallthru
          _
        // Predicated region
        $region65: #{sp_gnn_forward.1} parent=11 // pred_check
          %p990 = pneg %p538
        $region66: #{sp_gnn_forward.1} parent=11 // pred_check_branch
          %992 = sbr.rel (%p990) target = $region68
        $region67: #{sp_gnn_forward.1} parent=11 // pred_region
          _
        $region68: #{sp_gnn_forward.1} parent=11 // pred_fallthru
          _
        // Predicated region
        $region69: #{sp_gnn_forward.1} parent=11 // pred_check
          %p993 = pneg %p559
        $region70: #{sp_gnn_forward.1} parent=11 // pred_check_branch
          %995 = sbr.rel (%p993) target = $region72
        $region71: #{sp_gnn_forward.1} parent=11 // pred_region
          _
        $region72: #{sp_gnn_forward.1} parent=11 // pred_fallthru
          _
        // Predicated region
        $region73: #{sp_gnn_forward.1} parent=11 // pred_check
          %p996 = pneg %p580
        $region74: #{sp_gnn_forward.1} parent=11 // pred_check_branch
          %998 = sbr.rel (%p996) target = $region76
        $region75: #{sp_gnn_forward.1} parent=11 // pred_region
          _
        $region76: #{sp_gnn_forward.1} parent=11 // pred_fallthru
          _
        // Predicated region
        $region77: #{sp_gnn_forward.1} parent=11 // pred_check
          %p999 = pneg %p601
        $region78: #{sp_gnn_forward.1} parent=11 // pred_check_branch
          %1001 = sbr.rel (%p999) target = $region80
        $region79: #{sp_gnn_forward.1} parent=11 // pred_region
          _
        $region80: #{sp_gnn_forward.1} parent=11 // pred_fallthru
          _
        // Predicated region
        $region81: #{sp_gnn_forward.1} parent=11 // pred_check
          %p1002 = pneg %p622
        $region82: #{sp_gnn_forward.1} parent=11 // pred_check_branch
          %1004 = sbr.rel (%p1002) target = $region84
        $region83: #{sp_gnn_forward.1} parent=11 // pred_region
          _
        $region84: #{sp_gnn_forward.1} parent=11 // pred_fallthru
          _
        // Predicated region
        $region85: #{sp_gnn_forward.1} parent=11 // pred_check
          %p1005 = pneg %p643
        $region86: #{sp_gnn_forward.1} parent=11 // pred_check_branch
          %1007 = sbr.rel (%p1005) target = $region88
        $region87: #{sp_gnn_forward.1} parent=11 // pred_region
          _
        $region88: #{sp_gnn_forward.1} parent=11 // pred_fallthru
          _
        // Predicated region
        $region89: #{sp_gnn_forward.1} parent=11 // pred_check
          %p1008 = pneg %p664
        $region90: #{sp_gnn_forward.1} parent=11 // pred_check_branch
          %1010 = sbr.rel (%p1008) target = $region92
        $region91: #{sp_gnn_forward.1} parent=11 // pred_region
          _
        $region92: #{sp_gnn_forward.1} parent=11 // pred_fallthru
          _
        // Predicated region
        $region93: #{sp_gnn_forward.1} parent=11 // pred_check
          %p1011 = pneg %p685
        $region94: #{sp_gnn_forward.1} parent=11 // pred_check_branch
          %1013 = sbr.rel (%p1011) target = $region96
        $region95: #{sp_gnn_forward.1} parent=11 // pred_region
          _
        $region96: #{sp_gnn_forward.1} parent=11 // pred_fallthru
          _
        // Predicated region
        $region97: #{sp_gnn_forward.1} parent=11 // pred_check
          %p1014 = pneg %p706
        $region98: #{sp_gnn_forward.1} parent=11 // pred_check_branch
          %1016 = sbr.rel (%p1014) target = $region100
        $region99: #{sp_gnn_forward.1} parent=11 // pred_region
          _
        $region100: #{sp_gnn_forward.1} parent=11 // pred_fallthru
          _
        // Predicated region
        $region101: #{sp_gnn_forward.1} parent=11 // pred_check
          %p1017 = pneg %p727
        $region102: #{sp_gnn_forward.1} parent=11 // pred_check_branch
          %1019 = sbr.rel (%p1017) target = $region104
        $region103: #{sp_gnn_forward.1} parent=11 // pred_region
          _
        $region104: #{sp_gnn_forward.1} parent=11 // pred_fallthru
          _
        // Predicated region
        $region105: #{sp_gnn_forward.1} parent=11 // pred_check
          %p1020 = pneg %p748
        $region106: #{sp_gnn_forward.1} parent=11 // pred_check_branch
          %1022 = sbr.rel (%p1020) target = $region108
        $region107: #{sp_gnn_forward.1} parent=11 // pred_region
          _
        $region108: #{sp_gnn_forward.1} parent=11 // pred_fallthru
          _
        // Predicated region
        $region109: #{sp_gnn_forward.1} parent=11 // pred_check
          %p1023 = pneg %p769
        $region110: #{sp_gnn_forward.1} parent=11 // pred_check_branch
          %1025 = sbr.rel (%p1023) target = $region112
        $region111: #{sp_gnn_forward.1} parent=11 // pred_region
          _
        $region112: #{sp_gnn_forward.1} parent=11 // pred_fallthru
          _
        // Predicated region
        $region113: #{sp_gnn_forward.1} parent=11 // pred_check
          %p1026 = pneg %p790
        $region114: #{sp_gnn_forward.1} parent=11 // pred_check_branch
          %1028 = sbr.rel (%p1026) target = $region116
        $region115: #{sp_gnn_forward.1} parent=11 // pred_region
          _
        $region116: #{sp_gnn_forward.1} parent=11 // pred_fallthru
          _
        // Predicated region
        $region117: #{sp_gnn_forward.1} parent=11 // pred_check
          %p1029 = pneg %p811
        $region118: #{sp_gnn_forward.1} parent=11 // pred_check_branch
          %1031 = sbr.rel (%p1029) target = $region120
        $region119: #{sp_gnn_forward.1} parent=11 // pred_region
          _
        $region120: #{sp_gnn_forward.1} parent=11 // pred_fallthru
          _
        // Predicated region
        $region121: #{sp_gnn_forward.1} parent=11 // pred_check
          %p1032 = pneg %p832
        $region122: #{sp_gnn_forward.1} parent=11 // pred_check_branch
          %1034 = sbr.rel (%p1032) target = $region124
        $region123: #{sp_gnn_forward.1} parent=11 // pred_region
          _
        $region124: #{sp_gnn_forward.1} parent=11 // pred_fallthru
          _
      $region12: #{sp_gnn_forward.1} parent=5 // pred_fallthru
        _
      %p1035 = scmp.lt.s32.totalorder %s88, 2
      // Predicated region
      $region125: #{sp_gnn_forward.1} parent=5 // pred_check
        %p1036 = pneg %p1035
      $region126: #{sp_gnn_forward.1} parent=5 // pred_check_branch
        %1038 = sbr.rel (%p1036) target = $region128
      $region127: #{sp_gnn_forward.1} parent=5 // pred_region
        // Predicated region
        $region129: #{sp_gnn_forward.1} parent=127 // pred_check
          %p1039 = pneg %p108
        $region130: #{sp_gnn_forward.1} parent=127 // pred_check_branch
          %1041 = sbr.rel (%p1039) target = $region132
        $region131: #{sp_gnn_forward.1} parent=127 // pred_region
          %p1042 = scmp.lt.s32.totalorder %s88, 1
          %s1043 = scalar_select %p1042, %s88, 1
          %s1044 = smul.addr %s1043, 2
          %s1045 = smul.addr %s1044, 8
          %s1046 = scalar_lea.vmem %s1, %s1045
        $region132: #{sp_gnn_forward.1} parent=127 // pred_fallthru
          _
        // Predicated region
        $region133: #{sp_gnn_forward.1} parent=127 // pred_check
          %p1047 = pneg %p134
        $region134: #{sp_gnn_forward.1} parent=127 // pred_check_branch
          %1049 = sbr.rel (%p1047) target = $region136
        $region135: #{sp_gnn_forward.1} parent=127 // pred_region
          %p1050 = scmp.lt.s32.totalorder %s88, 1
          %s1051 = scalar_select %p1050, %s88, 1
          %s1052 = smul.addr %s1051, 2
          %s1053 = smul.addr %s1052, 8
          %s1054 = scalar_lea.vmem %s3, %s1053
        $region136: #{sp_gnn_forward.1} parent=127 // pred_fallthru
          _
        // Predicated region
        $region137: #{sp_gnn_forward.1} parent=127 // pred_check
          %p1055 = pneg %p160
        $region138: #{sp_gnn_forward.1} parent=127 // pred_check_branch
          %1057 = sbr.rel (%p1055) target = $region140
        $region139: #{sp_gnn_forward.1} parent=127 // pred_region
          %p1058 = scmp.lt.s32.totalorder %s88, 1
          %s1059 = scalar_select %p1058, %s88, 1
          %s1060 = smul.addr %s1059, 2
          %s1061 = smul.addr %s1060, 8
          %s1062 = scalar_lea.vmem %s5, %s1061
        $region140: #{sp_gnn_forward.1} parent=127 // pred_fallthru
          _
        // Predicated region
        $region141: #{sp_gnn_forward.1} parent=127 // pred_check
          %p1063 = pneg %p186
        $region142: #{sp_gnn_forward.1} parent=127 // pred_check_branch
          %1065 = sbr.rel (%p1063) target = $region144
        $region143: #{sp_gnn_forward.1} parent=127 // pred_region
          %p1066 = scmp.lt.s32.totalorder %s88, 1
          %s1067 = scalar_select %p1066, %s88, 1
          %s1068 = smul.addr %s1067, 2
          %s1069 = smul.addr %s1068, 8
          %s1070 = scalar_lea.vmem %s7, %s1069
        $region144: #{sp_gnn_forward.1} parent=127 // pred_fallthru
          _
        // Predicated region
        $region145: #{sp_gnn_forward.1} parent=127 // pred_check
          %p1071 = pneg %p212
        $region146: #{sp_gnn_forward.1} parent=127 // pred_check_branch
          %1073 = sbr.rel (%p1071) target = $region148
        $region147: #{sp_gnn_forward.1} parent=127 // pred_region
          %p1074 = scmp.lt.s32.totalorder %s88, 1
          %s1075 = scalar_select %p1074, %s88, 1
          %s1076 = smul.addr %s1075, 2
          %s1077 = smul.addr %s1076, 8
          %s1078 = scalar_lea.vmem %s9, %s1077
        $region148: #{sp_gnn_forward.1} parent=127 // pred_fallthru
          _
        // Predicated region
        $region149: #{sp_gnn_forward.1} parent=127 // pred_check
          %p1079 = pneg %p238
        $region150: #{sp_gnn_forward.1} parent=127 // pred_check_branch
          %1081 = sbr.rel (%p1079) target = $region152
        $region151: #{sp_gnn_forward.1} parent=127 // pred_region
          %p1082 = scmp.lt.s32.totalorder %s88, 1
          %s1083 = scalar_select %p1082, %s88, 1
          %s1084 = scalar_lea.vmem %s11, %s1083
        $region152: #{sp_gnn_forward.1} parent=127 // pred_fallthru
          _
      $region128: #{sp_gnn_forward.1} parent=5 // pred_fallthru
        _
      %p1085 = scmp.le.s32.totalorder 1, %s88
      %p1086 = scmp.lt.s32.totalorder %s88, 3
      %p1087 = pnand %p1085, %p1086
      %p1088 = pneg %p1087
      // Predicated region
      $region153: #{sp_gnn_forward.1} parent=5 // pred_check
        _
      $region154: #{sp_gnn_forward.1} parent=5 // pred_check_branch
        %1090 = sbr.rel (%p1087) target = $region156
      $region155: #{sp_gnn_forward.1} parent=5 // pred_region
        %s1091 = ssub.s32 %s88, 1
        %p1092 = scmp.lt.s32.totalorder %s93, 1
        %s1093 = scalar_select %p1092, %s93, 1
        %s1094 = smul.addr %s1093, 2
        %s1095 = smul.addr %s1094, 8
        %s1096 = scalar_lea.vmem %s1, %s1095
        %p1097 = pneg %p114
        %p1098 = pneg %p111
        %p1099 = scmp.lt.s32.totalorder %s93, 1
        %s1100 = scalar_select %p1099, %s93, 1
        %s1101 = smul.addr %s1100, 2
        %s1102 = smul.addr %s1101, 8
        %s1103 = scalar_lea.vmem %s3, %s1102
        %p1104 = pneg %p140
        %p1105 = pneg %p137
        %p1106 = scmp.lt.s32.totalorder %s93, 1
        %s1107 = scalar_select %p1106, %s93, 1
        %s1108 = smul.addr %s1107, 2
        %s1109 = smul.addr %s1108, 8
        %s1110 = scalar_lea.vmem %s5, %s1109
        %p1111 = pneg %p166
        %p1112 = pneg %p163
        %p1113 = scmp.lt.s32.totalorder %s93, 1
        %s1114 = scalar_select %p1113, %s93, 1
        %s1115 = smul.addr %s1114, 2
        %s1116 = smul.addr %s1115, 8
        %s1117 = scalar_lea.vmem %s7, %s1116
        %p1118 = pneg %p192
        %p1119 = pneg %p189
        %p1120 = scmp.lt.s32.totalorder %s93, 1
        %s1121 = scalar_select %p1120, %s93, 1
        %s1122 = smul.addr %s1121, 2
        %s1123 = smul.addr %s1122, 8
        %s1124 = scalar_lea.vmem %s9, %s1123
        %p1125 = pneg %p218
        %p1126 = pneg %p215
        %p1127 = scmp.lt.s32.totalorder %s93, 1
        %s1128 = scalar_select %p1127, %s93, 1
        %s1129 = scalar_lea.vmem %s11, %s1128
        %p1130 = pneg %p244
        %p1131 = pneg %p241
        %p1132 = pneg %p265
        %p1133 = pneg %p262
        %p1134 = pneg %p286
        %p1135 = pneg %p283
        %p1136 = pneg %p307
        %p1137 = pneg %p304
        %p1138 = pneg %p328
        %p1139 = pneg %p325
        %p1140 = pneg %p349
        %p1141 = pneg %p346
        %p1142 = pneg %p370
        %p1143 = pneg %p367
        %p1144 = pneg %p391
        %p1145 = pneg %p388
        %p1146 = pneg %p412
        %p1147 = pneg %p409
        %p1148 = pneg %p433
        %p1149 = pneg %p430
        %p1150 = pneg %p454
        %p1151 = pneg %p451
        %p1152 = pneg %p475
        %p1153 = pneg %p472
        %p1154 = pneg %p496
        %p1155 = pneg %p493
        %p1156 = pneg %p517
        %p1157 = pneg %p514
        %p1158 = pneg %p538
        %p1159 = pneg %p535
        %p1160 = pneg %p559
        %p1161 = pneg %p556
        %p1162 = pneg %p580
        %p1163 = pneg %p577
        %p1164 = pneg %p601
        %p1165 = pneg %p598
        %p1166 = pneg %p622
        %p1167 = pneg %p619
        %p1168 = pneg %p643
        %p1169 = pneg %p640
        %p1170 = pneg %p664
        %p1171 = pneg %p661
        %p1172 = pneg %p685
        %p1173 = pneg %p682
        %p1174 = pneg %p706
        %p1175 = pneg %p703
        %p1176 = pneg %p727
        %p1177 = pneg %p724
        %p1178 = pneg %p748
        %p1179 = pneg %p745
        %p1180 = pneg %p769
        %p1181 = pneg %p766
        %p1182 = pneg %p790
        %p1183 = pneg %p787
        %p1184 = pneg %p811
        %p1185 = pneg %p808
        %p1186 = pneg %p832
        %p1187 = pneg %p829
        %p1188 = pneg %p858
        %p1189 = pneg %p855
        %p1190 = scmp.lt.s32.totalorder %s93, 1
        %s1191 = scalar_select %p1190, %s93, 1
        %s1192 = smul.addr %s1191, 2
        %s1193 = smul.addr %s1192, 8
        %s1194 = scalar_lea.vmem %s69, %s1193
        %p1195 = pneg %p884
        %p1196 = pneg %p881
        %p1197 = scmp.lt.s32.totalorder %s93, 1
        %s1198 = scalar_select %p1197, %s93, 1
        %s1199 = smul.addr %s1198, 2
        %s1200 = smul.addr %s1199, 8
        %s1201 = scalar_lea.vmem %s71, %s1200
        %p1202 = pneg %p910
        %p1203 = pneg %p907
        %s1204 = sand.u32 %s897, 1
        %s1205 = scalar_lea.sflag [#allocation3], %s1204
        %s1206 = sand.u32 %s897, 1
        %s1207 = smul.addr %s1206, 16
        %s1208 = scalar_lea.vmem [#allocation2], %s1207
        %p1209 = pneg %p936
        %p1210 = pneg %p933
        %s1211 = sand.u32 %s923, 1
        %s1212 = scalar_lea.sflag [#allocation5], %s1211
        %s1213 = sand.u32 %s923, 1
        %s1214 = scalar_lea.vmem [#allocation4], %s1213
        %p1215 = scmp.lt.s32.totalorder %s93, 1
        %s1216 = scalar_select %p1215, %s93, 1
        %s1217 = smul.addr %s1216, 2
        %s1218 = smul.addr %s1217, 8
        %s1219 = scalar_lea.vmem %s1, %s1218
        %p1220 = scmp.lt.s32.totalorder %s93, 1
        %s1221 = scalar_select %p1220, %s93, 1
        %s1222 = smul.addr %s1221, 2
        %s1223 = smul.addr %s1222, 8
        %s1224 = scalar_lea.vmem %s3, %s1223
        %p1225 = scmp.lt.s32.totalorder %s93, 1
        %s1226 = scalar_select %p1225, %s93, 1
        %s1227 = smul.addr %s1226, 2
        %s1228 = smul.addr %s1227, 8
        %s1229 = scalar_lea.vmem %s5, %s1228
        %p1230 = scmp.lt.s32.totalorder %s93, 1
        %s1231 = scalar_select %p1230, %s93, 1
        %s1232 = smul.addr %s1231, 2
        %s1233 = smul.addr %s1232, 8
        %s1234 = scalar_lea.vmem %s7, %s1233
        %p1235 = scmp.lt.s32.totalorder %s93, 1
        %s1236 = scalar_select %p1235, %s93, 1
        %s1237 = smul.addr %s1236, 2
        %s1238 = smul.addr %s1237, 8
        %s1239 = scalar_lea.vmem %s9, %s1238
        %p1240 = scmp.lt.s32.totalorder %s93, 1
        %s1241 = scalar_select %p1240, %s93, 1
        %s1242 = scalar_lea.vmem %s11, %s1241
        %p1243 = scmp.lt.s32.totalorder %s93, 1
        %s1244 = scalar_select %p1243, %s93, 1
        %s1245 = smul.addr %s1244, 2
        %s1246 = smul.addr %s1245, 8
        %s1247 = scalar_lea.vmem %s69, %s1246
        %p1248 = scmp.lt.s32.totalorder %s93, 1
        %s1249 = scalar_select %p1248, %s93, 1
        %s1250 = smul.addr %s1249, 2
        %s1251 = smul.addr %s1250, 8
        %s1252 = scalar_lea.vmem %s71, %s1251
        %v1253 = vld [vmem:[%s1234] sm:$0xff]
        %v1254 = vld [vmem:[%s1234 + $0x8] sm:$0xff]
        %v1255 = vld [vmem:[%s1239] sm:$0xff]
        %v1256 = vld [vmem:[%s1239 + $0x8] sm:$0xff]
        %v1257 = vld [vmem:[%s1229] sm:$0xff]
        %v1258 = vld [vmem:[%s1229 + $0x8] sm:$0xff]
        %v1259 = vld [vmem:[%s1219] sm:$0xff]
        %v1260 = vld [vmem:[%s1219 + $0x8] sm:$0xff]
        %v1261 = vld [vmem:[%s13] sm:$0xff]
        %v1262 = vld [vmem:[%s15] sm:$0x1]
        %v1264 = vlaneseq
        %v1265 = vshrl.u32 %v1264, 7
        %v1266 = vsub.s32 0, %v1265
        %v1267 = vrot.slane %v1262, %v1266
        %vm1269 = vcmask 64512
        %v1271 = vsel %vm1269, %v1259, 0
        %v1274 = vsel %vm1269, %v1260, 0
        %1276 = vmatprep.subr.mxu0 0.0
        %1277 = vmatpush1.msra.mxu0 %v1261
        %1278 = vmatprep.subr.mxu0 0.0
        %1279 = vmatpush1.msra.mxu0 0.0
        %1280 = vmatprep.subr.mxu0 0.0
        %1281 = vmatpush1.msra.mxu0 0.0
        %1282 = vmatprep.subr.mxu0 0.0
        %1283 = vmatpush1.msra.mxu0 0.0
        %1284 = vmatprep.subr.mxu0 0.0
        %1285 = vmatpush1.msra.mxu0 0.0
        %1286 = vmatprep.subr.mxu0 0.0
        %1287 = vmatpush1.msra.mxu0 0.0
        %1288 = vmatprep.subr.mxu0 0.0
        %1289 = vmatpush1.msra.mxu0 0.0
        %1290 = vmatprep.subr.mxu0 0.0
        %1291 = vmatpush1.msra.mxu0 0.0
        %1292 = vmatprep.subr.mxu0 0.0
        %1293 = vmatpush1.msra.mxu0 0.0
        %1294 = vmatprep.subr.mxu0 0.0
        %1295 = vmatpush1.msra.mxu0 0.0
        %1296 = vmatprep.subr.mxu0 0.0
        %1297 = vmatpush1.msra.mxu0 0.0
        %1298 = vmatprep.subr.mxu0 0.0
        %1299 = vmatpush1.msra.mxu0 0.0
        %1300 = vmatprep.subr.mxu0 0.0
        %1301 = vmatpush1.msra.mxu0 0.0
        %1302 = vmatprep.subr.mxu0 0.0
        %1303 = vmatpush1.msra.mxu0 0.0
        %1304 = vmatprep.subr.mxu0 0.0
        %1305 = vmatpush1.msra.mxu0 0.0
        %1306 = vmatprep.subr.mxu0 0.0
        %1307 = vmatpush1.msra.mxu0 0.0
        %1308 = vmatprep.subr.mxu0 0.0
        %1309 = vmatpush1.msra.mxu0 0.0
        %1310 = vmatprep.subr.mxu0 0.0
        %1311 = vmatpush1.msra.mxu0 0.0
        %1312 = vmatprep.subr.mxu0 0.0
        %1313 = vmatpush1.msra.mxu0 0.0
        %1314 = vmatprep.subr.mxu0 0.0
        %1315 = vmatpush1.msra.mxu0 0.0
        %1316 = vmatprep.subr.mxu0 0.0
        %1317 = vmatpush1.msra.mxu0 0.0
        %1318 = vmatprep.subr.mxu0 0.0
        %1319 = vmatpush1.msra.mxu0 0.0
        %1320 = vmatprep.subr.mxu0 0.0
        %1321 = vmatpush1.msra.mxu0 0.0
        %1322 = vmatprep.subr.mxu0 0.0
        %1323 = vmatpush1.msra.mxu0 0.0
        %1324 = vmatprep.subr.mxu0 0.0
        %1325 = vmatpush1.msra.mxu0 0.0
        %1326 = vmatprep.subr.mxu0 0.0
        %1327 = vmatpush1.msra.mxu0 0.0
        %1328 = vmatprep.subr.mxu0 0.0
        %1329 = vmatpush1.msra.mxu0 0.0
        %1330 = vmatprep.subr.mxu0 0.0
        %1331 = vmatpush1.msra.mxu0 0.0
        %1332 = vmatprep.subr.mxu0 0.0
        %1333 = vmatpush1.msra.mxu0 0.0
        %1334 = vmatprep.subr.mxu0 0.0
        %1335 = vmatpush1.msra.mxu0 0.0
        %1336 = vmatprep.subr.mxu0 0.0
        %1337 = vmatpush1.msra.mxu0 0.0
        %1338 = vmatprep.subr.mxu0 0.0
        %1339 = vmatpush1.msra.mxu0 0.0
        %1340 = vmatprep.mubr.f32.mxu0 0.0
        %1341 = vmatmul.mubr.f32.gmra.mrb[0].mxu0 %v1271
        %v1342 = vpop.f32.mrb[0].mxu0
        %v1343 = vadd.f32 %v1267, %v1342
        %v1344 = vpop.f32.mrb[0].mxu0
        %1345 = vmatprep.mubr.f32.mxu0 0.0
        %1346 = vmatmul.mubr.f32.gmra.mrb[0].mxu0 %v1274
        %v1347 = vpop.f32.mrb[0].mxu0
        %v1348 = vadd.f32 %v1267, %v1347
        %v1349 = vpop.f32.mrb[0].mxu0
        %1350 = vdwg.mxu0
        %v1351 = vld [vmem:[%s17] sm:$0xff]
        %v1352 = vld [vmem:[%s19] sm:$0x1]
        %v1354 = vlaneseq
        %v1355 = vshrl.u32 %v1354, 7
        %v1356 = vsub.s32 0, %v1355
        %v1357 = vrot.slane %v1352, %v1356
        %1359 = vmatprep.subr.mxu0 0.0
        %1360 = vmatpush1.msra.mxu0 %v1351
        %1361 = vmatprep.subr.mxu0 0.0
        %1362 = vmatpush1.msra.mxu0 0.0
        %1363 = vmatprep.subr.mxu0 0.0
        %1364 = vmatpush1.msra.mxu0 0.0
        %1365 = vmatprep.subr.mxu0 0.0
        %1366 = vmatpush1.msra.mxu0 0.0
        %1367 = vmatprep.subr.mxu0 0.0
        %1368 = vmatpush1.msra.mxu0 0.0
        %1369 = vmatprep.subr.mxu0 0.0
        %1370 = vmatpush1.msra.mxu0 0.0
        %1371 = vmatprep.subr.mxu0 0.0
        %1372 = vmatpush1.msra.mxu0 0.0
        %1373 = vmatprep.subr.mxu0 0.0
        %1374 = vmatpush1.msra.mxu0 0.0
        %1375 = vmatprep.subr.mxu0 0.0
        %1376 = vmatpush1.msra.mxu0 0.0
        %1377 = vmatprep.subr.mxu0 0.0
        %1378 = vmatpush1.msra.mxu0 0.0
        %1379 = vmatprep.subr.mxu0 0.0
        %1380 = vmatpush1.msra.mxu0 0.0
        %1381 = vmatprep.subr.mxu0 0.0
        %1382 = vmatpush1.msra.mxu0 0.0
        %1383 = vmatprep.subr.mxu0 0.0
        %1384 = vmatpush1.msra.mxu0 0.0
        %1385 = vmatprep.subr.mxu0 0.0
        %1386 = vmatpush1.msra.mxu0 0.0
        %1387 = vmatprep.subr.mxu0 0.0
        %1388 = vmatpush1.msra.mxu0 0.0
        %1389 = vmatprep.subr.mxu0 0.0
        %1390 = vmatpush1.msra.mxu0 0.0
        %1391 = vmatprep.subr.mxu0 0.0
        %1392 = vmatpush1.msra.mxu0 0.0
        %1393 = vmatprep.subr.mxu0 0.0
        %1394 = vmatpush1.msra.mxu0 0.0
        %1395 = vmatprep.subr.mxu0 0.0
        %1396 = vmatpush1.msra.mxu0 0.0
        %1397 = vmatprep.subr.mxu0 0.0
        %1398 = vmatpush1.msra.mxu0 0.0
        %1399 = vmatprep.subr.mxu0 0.0
        %1400 = vmatpush1.msra.mxu0 0.0
        %1401 = vmatprep.subr.mxu0 0.0
        %1402 = vmatpush1.msra.mxu0 0.0
        %1403 = vmatprep.subr.mxu0 0.0
        %1404 = vmatpush1.msra.mxu0 0.0
        %1405 = vmatprep.subr.mxu0 0.0
        %1406 = vmatpush1.msra.mxu0 0.0
        %1407 = vmatprep.subr.mxu0 0.0
        %1408 = vmatpush1.msra.mxu0 0.0
        %1409 = vmatprep.subr.mxu0 0.0
        %1410 = vmatpush1.msra.mxu0 0.0
        %1411 = vmatprep.subr.mxu0 0.0
        %1412 = vmatpush1.msra.mxu0 0.0
        %1413 = vmatprep.subr.mxu0 0.0
        %1414 = vmatpush1.msra.mxu0 0.0
        %1415 = vmatprep.subr.mxu0 0.0
        %1416 = vmatpush1.msra.mxu0 0.0
        %1417 = vmatprep.subr.mxu0 0.0
        %1418 = vmatpush1.msra.mxu0 0.0
        %1419 = vmatprep.subr.mxu0 0.0
        %1420 = vmatpush1.msra.mxu0 0.0
        %1421 = vmatprep.subr.mxu0 0.0
        %1422 = vmatpush1.msra.mxu0 0.0
        %1423 = vmatprep.mubr.f32.mxu0 0.0
        %1424 = vmatmul.mubr.f32.gmra.mrb[0].mxu0 %v1271
        %v1425 = vpop.f32.mrb[0].mxu0
        %v1426 = vadd.f32 %v1357, %v1425
        %v1427 = vpop.f32.mrb[0].mxu0
        %1428 = vmatprep.mubr.f32.mxu0 0.0
        %1429 = vmatmul.mubr.f32.gmra.mrb[0].mxu0 %v1274
        %v1430 = vpop.f32.mrb[0].mxu0
        %v1431 = vadd.f32 %v1357, %v1430
        %v1432 = vpop.f32.mrb[0].mxu0
        %1433 = vdwg.mxu0
        %v1434 = vmax.f32 %v1426, 0.0
        %v1435 = vmax.f32 %v1431, 0.0
        %v1436 = vld [vmem:[%s21] sm:$0xff]
        %v1437 = vld [vmem:[%s21 + $0x8] sm:$0xff]
        %v1438 = vld [vmem:[%s21 + $0x10] sm:$0xff]
        %v1439 = vld [vmem:[%s21 + $0x18] sm:$0xff]
        %v1440 = vld [vmem:[%s23] sm:$0x1]
        %v1442 = vlaneseq
        %v1443 = vshrl.u32 %v1442, 7
        %v1444 = vsub.s32 0, %v1443
        %v1445 = vrot.slane %v1440, %v1444
        %vm1447 = vcmask 261120
        %v1449 = vsel %vm1447, %v1434, 0
        %v1452 = vsel %vm1447, %v1435, 0
        %1454 = vmatprep.subr.mxu0 0.0
        %1455 = vmatpush1.msra.mxu0 %v1436
        %1456 = vmatprep.subr.mxu0 0.0
        %1457 = vmatpush1.msra.mxu0 %v1437
        %1458 = vmatprep.subr.mxu0 0.0
        %1459 = vmatpush1.msra.mxu0 %v1438
        %1460 = vmatprep.subr.mxu0 0.0
        %1461 = vmatpush1.msra.mxu0 %v1439
        %1462 = vmatprep.subr.mxu0 0.0
        %1463 = vmatpush1.msra.mxu0 0.0
        %1464 = vmatprep.subr.mxu0 0.0
        %1465 = vmatpush1.msra.mxu0 0.0
        %1466 = vmatprep.subr.mxu0 0.0
        %1467 = vmatpush1.msra.mxu0 0.0
        %1468 = vmatprep.subr.mxu0 0.0
        %1469 = vmatpush1.msra.mxu0 0.0
        %1470 = vmatprep.subr.mxu0 0.0
        %1471 = vmatpush1.msra.mxu0 0.0
        %1472 = vmatprep.subr.mxu0 0.0
        %1473 = vmatpush1.msra.mxu0 0.0
        %1474 = vmatprep.subr.mxu0 0.0
        %1475 = vmatpush1.msra.mxu0 0.0
        %1476 = vmatprep.subr.mxu0 0.0
        %1477 = vmatpush1.msra.mxu0 0.0
        %1478 = vmatprep.subr.mxu0 0.0
        %1479 = vmatpush1.msra.mxu0 0.0
        %1480 = vmatprep.subr.mxu0 0.0
        %1481 = vmatpush1.msra.mxu0 0.0
        %1482 = vmatprep.subr.mxu0 0.0
        %1483 = vmatpush1.msra.mxu0 0.0
        %1484 = vmatprep.subr.mxu0 0.0
        %1485 = vmatpush1.msra.mxu0 0.0
        %1486 = vmatprep.subr.mxu0 0.0
        %1487 = vmatpush1.msra.mxu0 0.0
        %1488 = vmatprep.subr.mxu0 0.0
        %1489 = vmatpush1.msra.mxu0 0.0
        %1490 = vmatprep.subr.mxu0 0.0
        %1491 = vmatpush1.msra.mxu0 0.0
        %1492 = vmatprep.subr.mxu0 0.0
        %1493 = vmatpush1.msra.mxu0 0.0
        %1494 = vmatprep.subr.mxu0 0.0
        %1495 = vmatpush1.msra.mxu0 0.0
        %1496 = vmatprep.subr.mxu0 0.0
        %1497 = vmatpush1.msra.mxu0 0.0
        %1498 = vmatprep.subr.mxu0 0.0
        %1499 = vmatpush1.msra.mxu0 0.0
        %1500 = vmatprep.subr.mxu0 0.0
        %1501 = vmatpush1.msra.mxu0 0.0
        %1502 = vmatprep.subr.mxu0 0.0
        %1503 = vmatpush1.msra.mxu0 0.0
        %1504 = vmatprep.subr.mxu0 0.0
        %1505 = vmatpush1.msra.mxu0 0.0
        %1506 = vmatprep.subr.mxu0 0.0
        %1507 = vmatpush1.msra.mxu0 0.0
        %1508 = vmatprep.subr.mxu0 0.0
        %1509 = vmatpush1.msra.mxu0 0.0
        %1510 = vmatprep.subr.mxu0 0.0
        %1511 = vmatpush1.msra.mxu0 0.0
        %1512 = vmatprep.subr.mxu0 0.0
        %1513 = vmatpush1.msra.mxu0 0.0
        %1514 = vmatprep.subr.mxu0 0.0
        %1515 = vmatpush1.msra.mxu0 0.0
        %1516 = vmatprep.subr.mxu0 0.0
        %1517 = vmatpush1.msra.mxu0 0.0
        %1518 = vmatprep.mubr.f32.mxu0 0.0
        %1519 = vmatmul.mubr.f32.gmra.mrb[0].mxu0 %v1449
        %v1520 = vpop.f32.mrb[0].mxu0
        %v1521 = vadd.f32 %v1445, %v1520
        %v1522 = vpop.f32.mrb[0].mxu0
        %1523 = vmatprep.mubr.f32.mxu0 0.0
        %1524 = vmatmul.mubr.f32.gmra.mrb[0].mxu0 %v1452
        %v1525 = vpop.f32.mrb[0].mxu0
        %v1526 = vadd.f32 %v1445, %v1525
        %v1527 = vpop.f32.mrb[0].mxu0
        %1528 = vdwg.mxu0
        %v1529 = vmax.f32 %v1521, 0.0
        %v1530 = vmax.f32 %v1526, 0.0
        %v1531 = vld [vmem:[%s25] sm:$0xff]
        %v1532 = vld [vmem:[%s25 + $0x8] sm:$0xff]
        %v1533 = vld [vmem:[%s27] sm:$0x1]
        %v1535 = vlaneseq
        %v1536 = vshrl.u32 %v1535, 7
        %v1537 = vsub.s32 0, %v1536
        %v1538 = vrot.slane %v1533, %v1537
        %vm1540 = vcmask 130048
        %v1542 = vsel %vm1540, %v1529, 0
        %v1545 = vsel %vm1540, %v1530, 0
        %1547 = vmatprep.subr.mxu0 0.0
        %1548 = vmatpush1.msra.mxu0 %v1531
        %1549 = vmatprep.subr.mxu0 0.0
        %1550 = vmatpush1.msra.mxu0 %v1532
        %1551 = vmatprep.subr.mxu0 0.0
        %1552 = vmatpush1.msra.mxu0 0.0
        %1553 = vmatprep.subr.mxu0 0.0
        %1554 = vmatpush1.msra.mxu0 0.0
        %1555 = vmatprep.subr.mxu0 0.0
        %1556 = vmatpush1.msra.mxu0 0.0
        %1557 = vmatprep.subr.mxu0 0.0
        %1558 = vmatpush1.msra.mxu0 0.0
        %1559 = vmatprep.subr.mxu0 0.0
        %1560 = vmatpush1.msra.mxu0 0.0
        %1561 = vmatprep.subr.mxu0 0.0
        %1562 = vmatpush1.msra.mxu0 0.0
        %1563 = vmatprep.subr.mxu0 0.0
        %1564 = vmatpush1.msra.mxu0 0.0
        %1565 = vmatprep.subr.mxu0 0.0
        %1566 = vmatpush1.msra.mxu0 0.0
        %1567 = vmatprep.subr.mxu0 0.0
        %1568 = vmatpush1.msra.mxu0 0.0
        %1569 = vmatprep.subr.mxu0 0.0
        %1570 = vmatpush1.msra.mxu0 0.0
        %1571 = vmatprep.subr.mxu0 0.0
        %1572 = vmatpush1.msra.mxu0 0.0
        %1573 = vmatprep.subr.mxu0 0.0
        %1574 = vmatpush1.msra.mxu0 0.0
        %1575 = vmatprep.subr.mxu0 0.0
        %1576 = vmatpush1.msra.mxu0 0.0
        %1577 = vmatprep.subr.mxu0 0.0
        %1578 = vmatpush1.msra.mxu0 0.0
        %1579 = vmatprep.subr.mxu0 0.0
        %1580 = vmatpush1.msra.mxu0 0.0
        %1581 = vmatprep.subr.mxu0 0.0
        %1582 = vmatpush1.msra.mxu0 0.0
        %1583 = vmatprep.subr.mxu0 0.0
        %1584 = vmatpush1.msra.mxu0 0.0
        %1585 = vmatprep.subr.mxu0 0.0
        %1586 = vmatpush1.msra.mxu0 0.0
        %1587 = vmatprep.subr.mxu0 0.0
        %1588 = vmatpush1.msra.mxu0 0.0
        %1589 = vmatprep.subr.mxu0 0.0
        %1590 = vmatpush1.msra.mxu0 0.0
        %1591 = vmatprep.subr.mxu0 0.0
        %1592 = vmatpush1.msra.mxu0 0.0
        %1593 = vmatprep.subr.mxu0 0.0
        %1594 = vmatpush1.msra.mxu0 0.0
        %1595 = vmatprep.subr.mxu0 0.0
        %1596 = vmatpush1.msra.mxu0 0.0
        %1597 = vmatprep.subr.mxu0 0.0
        %1598 = vmatpush1.msra.mxu0 0.0
        %1599 = vmatprep.subr.mxu0 0.0
        %1600 = vmatpush1.msra.mxu0 0.0
        %1601 = vmatprep.subr.mxu0 0.0
        %1602 = vmatpush1.msra.mxu0 0.0
        %1603 = vmatprep.subr.mxu0 0.0
        %1604 = vmatpush1.msra.mxu0 0.0
        %1605 = vmatprep.subr.mxu0 0.0
        %1606 = vmatpush1.msra.mxu0 0.0
        %1607 = vmatprep.subr.mxu0 0.0
        %1608 = vmatpush1.msra.mxu0 0.0
        %1609 = vmatprep.subr.mxu0 0.0
        %1610 = vmatpush1.msra.mxu0 0.0
        %1611 = vmatprep.mubr.f32.mxu0 0.0
        %1612 = vmatmul.mubr.f32.gmra.mrb[0].mxu0 %v1542
        %v1613 = vpop.f32.mrb[0].mxu0
        %v1614 = vadd.f32 %v1538, %v1613
        %v1615 = vpop.f32.mrb[0].mxu0
        %1616 = vmatprep.mubr.f32.mxu0 0.0
        %1617 = vmatmul.mubr.f32.gmra.mrb[0].mxu0 %v1545
        %v1618 = vpop.f32.mrb[0].mxu0
        %v1619 = vadd.f32 %v1538, %v1618
        %v1620 = vpop.f32.mrb[0].mxu0
        %1621 = vdwg.mxu0
        %v1622 = vld [vmem:[%s29] sm:$0xf]
        %vm1623 = vcmask 31744
        %v1625 = vsel %vm1623, %v1614, 0
        %v1628 = vsel %vm1623, %v1619, 0
        %vm1630 = vcmask 1043456
        %v1632 = vsel %vm1630, %v1622, 0
        %1634 = vmatprep.subr.mxu0 0.0
        %1635 = vmatpush1.msra.mxu0 %v1632
        %1636 = vmatprep.subr.mxu0 0.0
        %1637 = vmatpush1.msra.mxu0 0.0
        %1638 = vmatprep.subr.mxu0 0.0
        %1639 = vmatpush1.msra.mxu0 0.0
        %1640 = vmatprep.subr.mxu0 0.0
        %1641 = vmatpush1.msra.mxu0 0.0
        %1642 = vmatprep.subr.mxu0 0.0
        %1643 = vmatpush1.msra.mxu0 0.0
        %1644 = vmatprep.subr.mxu0 0.0
        %1645 = vmatpush1.msra.mxu0 0.0
        %1646 = vmatprep.subr.mxu0 0.0
        %1647 = vmatpush1.msra.mxu0 0.0
        %1648 = vmatprep.subr.mxu0 0.0
        %1649 = vmatpush1.msra.mxu0 0.0
        %1650 = vmatprep.subr.mxu0 0.0
        %1651 = vmatpush1.msra.mxu0 0.0
        %1652 = vmatprep.subr.mxu0 0.0
        %1653 = vmatpush1.msra.mxu0 0.0
        %1654 = vmatprep.subr.mxu0 0.0
        %1655 = vmatpush1.msra.mxu0 0.0
        %1656 = vmatprep.subr.mxu0 0.0
        %1657 = vmatpush1.msra.mxu0 0.0
        %1658 = vmatprep.subr.mxu0 0.0
        %1659 = vmatpush1.msra.mxu0 0.0
        %1660 = vmatprep.subr.mxu0 0.0
        %1661 = vmatpush1.msra.mxu0 0.0
        %1662 = vmatprep.subr.mxu0 0.0
        %1663 = vmatpush1.msra.mxu0 0.0
        %1664 = vmatprep.subr.mxu0 0.0
        %1665 = vmatpush1.msra.mxu0 0.0
        %1666 = vmatprep.subr.mxu0 0.0
        %1667 = vmatpush1.msra.mxu0 0.0
        %1668 = vmatprep.subr.mxu0 0.0
        %1669 = vmatpush1.msra.mxu0 0.0
        %1670 = vmatprep.subr.mxu0 0.0
        %1671 = vmatpush1.msra.mxu0 0.0
        %1672 = vmatprep.subr.mxu0 0.0
        %1673 = vmatpush1.msra.mxu0 0.0
        %1674 = vmatprep.subr.mxu0 0.0
        %1675 = vmatpush1.msra.mxu0 0.0
        %1676 = vmatprep.subr.mxu0 0.0
        %1677 = vmatpush1.msra.mxu0 0.0
        %1678 = vmatprep.subr.mxu0 0.0
        %1679 = vmatpush1.msra.mxu0 0.0
        %1680 = vmatprep.subr.mxu0 0.0
        %1681 = vmatpush1.msra.mxu0 0.0
        %1682 = vmatprep.subr.mxu0 0.0
        %1683 = vmatpush1.msra.mxu0 0.0
        %1684 = vmatprep.subr.mxu0 0.0
        %1685 = vmatpush1.msra.mxu0 0.0
        %1686 = vmatprep.subr.mxu0 0.0
        %1687 = vmatpush1.msra.mxu0 0.0
        %1688 = vmatprep.subr.mxu0 0.0
        %1689 = vmatpush1.msra.mxu0 0.0
        %1690 = vmatprep.subr.mxu0 0.0
        %1691 = vmatpush1.msra.mxu0 0.0
        %1692 = vmatprep.subr.mxu0 0.0
        %1693 = vmatpush1.msra.mxu0 0.0
        %1694 = vmatprep.subr.mxu0 0.0
        %1695 = vmatpush1.msra.mxu0 0.0
        %1696 = vmatprep.subr.mxu0 0.0
        %1697 = vmatpush1.msra.mxu0 0.0
        %1698 = vmatprep.mubr.f32.mxu0 0.0
        %1699 = vmatmul.mubr.f32.gmra.mrb[0].mxu0 %v1625
        %v1700 = vpop.f32.mrb[0].mxu0
        %v1701 = vadd.f32 0.0, %v1700
        %v1702 = vpop.f32.mrb[0].mxu0
        %1703 = vmatprep.mubr.f32.mxu0 0.0
        %1704 = vmatmul.mubr.f32.gmra.mrb[0].mxu0 %v1628
        %v1705 = vpop.f32.mrb[0].mxu0
        %v1706 = vadd.f32 0.0, %v1705
        %v1707 = vpop.f32.mrb[0].mxu0
        %1708 = vdwg.mxu0
        %vm1709 = vcmask 7168
        %v1710 = vsel %vm1709, %v1701, -inf
        %v1711 = vsel %vm1709, %v1706, -inf
        %v1712 = vmax.f32 %v1710, %v1711
        %v1713 = vrot.slane %v1712, 4
        %v1714 = vmax.f32 %v1712, %v1713
        %v1715 = vrot.slane %v1714, 2
        %v1716 = vmax.f32 %v1714, %v1715
        %v1717 = vrot.slane %v1716, 1
        %v1718 = vmax.f32 %v1716, %v1717
        %v1719 = vsub.f32 %v1701, %v1718
        %v1720 = vsub.f32 %v1706, %v1718
        %v1721 = vmul.f32 %v1719, 1.442695
        %v1722 = vpow.pop %v1721
        %v1723 = vmul.f32 %v1720, 1.442695
        %v1724 = vpow.pop %v1723
        %v1725 = vsel %vm1709, %v1722, 0.0
        %v1726 = vsel %vm1709, %v1724, 0.0
        %v1727 = vadd.f32 %v1725, %v1726
        %v1728 = vrot.slane %v1727, 4
        %v1729 = vadd.f32 %v1727, %v1728
        %v1730 = vrot.slane %v1729, 2
        %v1731 = vadd.f32 %v1729, %v1730
        %v1732 = vrot.slane %v1731, 1
        %v1733 = vadd.f32 %v1731, %v1732
        %v1734 = vrcp.pop %v1733
        %v1735 = vmul.f32 %v1722, %v1734
        %v1736 = vmul.f32 %v1724, %v1734
        %1738 = vset.pattern.permute.xlu0 0
        %1739 = vperm.xlu0 %1738, %v1735
        %v1740 = vpop.permute.xlu0 %1739
        %1743 = vset.pattern.permute.xlu0 0
        %1744 = vperm.xlu0 %1743, %v1736
        %v1745 = vpop.permute.xlu0 %1744
        %v1747 = vmul.f32 %v1740, %v1614
        %v1748 = vmul.f32 %v1745, %v1619
        %v1749 = vsel %vm1623, %v1747, 0.0
        %v1750 = vsel %vm1623, %v1748, 0.0
        %v1751 = vadd.f32 %v1749, %v1750
        %v1752 = vrot.slane %v1751, 4
        %v1753 = vadd.f32 %v1751, %v1752
        %v1754 = vrot.slane %v1753, 2
        %v1755 = vadd.f32 %v1753, %v1754
        %v1756 = vrot.slane %v1755, 1
        %v1757 = vadd.f32 %v1755, %v1756
        %vm1758 = vcmask 24576
        %1759 = vst.msk [vmem:[%s1214] sm:$0x1] %vm1758, %v1757
        %v1760 = vld [vmem:[%s31] sm:$0xff]
        %v1761 = vld [vmem:[%s33] sm:$0x1]
        %v1763 = vlaneseq
        %v1764 = vshrl.u32 %v1763, 7
        %v1765 = vsub.s32 0, %v1764
        %v1766 = vrot.slane %v1761, %v1765
        %v1769 = vsel %vm1269, %v1343, 0
        %v1772 = vsel %vm1269, %v1348, 0
        %1774 = vmatprep.subr.mxu0 0.0
        %1775 = vmatpush1.msra.mxu0 %v1760
        %1776 = vmatprep.subr.mxu0 0.0
        %1777 = vmatpush1.msra.mxu0 0.0
        %1778 = vmatprep.subr.mxu0 0.0
        %1779 = vmatpush1.msra.mxu0 0.0
        %1780 = vmatprep.subr.mxu0 0.0
        %1781 = vmatpush1.msra.mxu0 0.0
        %1782 = vmatprep.subr.mxu0 0.0
        %1783 = vmatpush1.msra.mxu0 0.0
        %1784 = vmatprep.subr.mxu0 0.0
        %1785 = vmatpush1.msra.mxu0 0.0
        %1786 = vmatprep.subr.mxu0 0.0
        %1787 = vmatpush1.msra.mxu0 0.0
        %1788 = vmatprep.subr.mxu0 0.0
        %1789 = vmatpush1.msra.mxu0 0.0
        %1790 = vmatprep.subr.mxu0 0.0
        %1791 = vmatpush1.msra.mxu0 0.0
        %1792 = vmatprep.subr.mxu0 0.0
        %1793 = vmatpush1.msra.mxu0 0.0
        %1794 = vmatprep.subr.mxu0 0.0
        %1795 = vmatpush1.msra.mxu0 0.0
        %1796 = vmatprep.subr.mxu0 0.0
        %1797 = vmatpush1.msra.mxu0 0.0
        %1798 = vmatprep.subr.mxu0 0.0
        %1799 = vmatpush1.msra.mxu0 0.0
        %1800 = vmatprep.subr.mxu0 0.0
        %1801 = vmatpush1.msra.mxu0 0.0
        %1802 = vmatprep.subr.mxu0 0.0
        %1803 = vmatpush1.msra.mxu0 0.0
        %1804 = vmatprep.subr.mxu0 0.0
        %1805 = vmatpush1.msra.mxu0 0.0
        %1806 = vmatprep.subr.mxu0 0.0
        %1807 = vmatpush1.msra.mxu0 0.0
        %1808 = vmatprep.subr.mxu0 0.0
        %1809 = vmatpush1.msra.mxu0 0.0
        %1810 = vmatprep.subr.mxu0 0.0
        %1811 = vmatpush1.msra.mxu0 0.0
        %1812 = vmatprep.subr.mxu0 0.0
        %1813 = vmatpush1.msra.mxu0 0.0
        %1814 = vmatprep.subr.mxu0 0.0
        %1815 = vmatpush1.msra.mxu0 0.0
        %1816 = vmatprep.subr.mxu0 0.0
        %1817 = vmatpush1.msra.mxu0 0.0
        %1818 = vmatprep.subr.mxu0 0.0
        %1819 = vmatpush1.msra.mxu0 0.0
        %1820 = vmatprep.subr.mxu0 0.0
        %1821 = vmatpush1.msra.mxu0 0.0
        %1822 = vmatprep.subr.mxu0 0.0
        %1823 = vmatpush1.msra.mxu0 0.0
        %1824 = vmatprep.subr.mxu0 0.0
        %1825 = vmatpush1.msra.mxu0 0.0
        %1826 = vmatprep.subr.mxu0 0.0
        %1827 = vmatpush1.msra.mxu0 0.0
        %1828 = vmatprep.subr.mxu0 0.0
        %1829 = vmatpush1.msra.mxu0 0.0
        %1830 = vmatprep.subr.mxu0 0.0
        %1831 = vmatpush1.msra.mxu0 0.0
        %1832 = vmatprep.subr.mxu0 0.0
        %1833 = vmatpush1.msra.mxu0 0.0
        %1834 = vmatprep.subr.mxu0 0.0
        %1835 = vmatpush1.msra.mxu0 0.0
        %1836 = vmatprep.subr.mxu0 0.0
        %1837 = vmatpush1.msra.mxu0 0.0
        %1838 = vmatprep.mubr.f32.mxu0 0.0
        %1839 = vmatmul.mubr.f32.gmra.mrb[0].mxu0 %v1769
        %v1840 = vpop.f32.mrb[0].mxu0
        %v1841 = vadd.f32 %v1766, %v1840
        %v1842 = vpop.f32.mrb[0].mxu0
        %1843 = vmatprep.mubr.f32.mxu0 0.0
        %1844 = vmatmul.mubr.f32.gmra.mrb[0].mxu0 %v1772
        %v1845 = vpop.f32.mrb[0].mxu0
        %v1846 = vadd.f32 %v1766, %v1845
        %v1847 = vpop.f32.mrb[0].mxu0
        %1848 = vdwg.mxu0
        %v1849 = vmax.f32 %v1841, 0.0
        %v1850 = vmax.f32 %v1846, 0.0
        %v1851 = vld [vmem:[%s35] sm:$0xff]
        %v1852 = vld [vmem:[%s35 + $0x8] sm:$0xff]
        %v1853 = vld [vmem:[%s35 + $0x10] sm:$0xff]
        %v1854 = vld [vmem:[%s35 + $0x18] sm:$0xff]
        %v1855 = vld [vmem:[%s37] sm:$0x1]
        %v1857 = vlaneseq
        %v1858 = vshrl.u32 %v1857, 7
        %v1859 = vsub.s32 0, %v1858
        %v1860 = vrot.slane %v1855, %v1859
        %v1863 = vsel %vm1447, %v1849, 0
        %v1866 = vsel %vm1447, %v1850, 0
        %1868 = vmatprep.subr.mxu0 0.0
        %1869 = vmatpush1.msra.mxu0 %v1851
        %1870 = vmatprep.subr.mxu0 0.0
        %1871 = vmatpush1.msra.mxu0 %v1852
        %1872 = vmatprep.subr.mxu0 0.0
        %1873 = vmatpush1.msra.mxu0 %v1853
        %1874 = vmatprep.subr.mxu0 0.0
        %1875 = vmatpush1.msra.mxu0 %v1854
        %1876 = vmatprep.subr.mxu0 0.0
        %1877 = vmatpush1.msra.mxu0 0.0
        %1878 = vmatprep.subr.mxu0 0.0
        %1879 = vmatpush1.msra.mxu0 0.0
        %1880 = vmatprep.subr.mxu0 0.0
        %1881 = vmatpush1.msra.mxu0 0.0
        %1882 = vmatprep.subr.mxu0 0.0
        %1883 = vmatpush1.msra.mxu0 0.0
        %1884 = vmatprep.subr.mxu0 0.0
        %1885 = vmatpush1.msra.mxu0 0.0
        %1886 = vmatprep.subr.mxu0 0.0
        %1887 = vmatpush1.msra.mxu0 0.0
        %1888 = vmatprep.subr.mxu0 0.0
        %1889 = vmatpush1.msra.mxu0 0.0
        %1890 = vmatprep.subr.mxu0 0.0
        %1891 = vmatpush1.msra.mxu0 0.0
        %1892 = vmatprep.subr.mxu0 0.0
        %1893 = vmatpush1.msra.mxu0 0.0
        %1894 = vmatprep.subr.mxu0 0.0
        %1895 = vmatpush1.msra.mxu0 0.0
        %1896 = vmatprep.subr.mxu0 0.0
        %1897 = vmatpush1.msra.mxu0 0.0
        %1898 = vmatprep.subr.mxu0 0.0
        %1899 = vmatpush1.msra.mxu0 0.0
        %1900 = vmatprep.subr.mxu0 0.0
        %1901 = vmatpush1.msra.mxu0 0.0
        %1902 = vmatprep.subr.mxu0 0.0
        %1903 = vmatpush1.msra.mxu0 0.0
        %1904 = vmatprep.subr.mxu0 0.0
        %1905 = vmatpush1.msra.mxu0 0.0
        %1906 = vmatprep.subr.mxu0 0.0
        %1907 = vmatpush1.msra.mxu0 0.0
        %1908 = vmatprep.subr.mxu0 0.0
        %1909 = vmatpush1.msra.mxu0 0.0
        %1910 = vmatprep.subr.mxu0 0.0
        %1911 = vmatpush1.msra.mxu0 0.0
        %1912 = vmatprep.subr.mxu0 0.0
        %1913 = vmatpush1.msra.mxu0 0.0
        %1914 = vmatprep.subr.mxu0 0.0
        %1915 = vmatpush1.msra.mxu0 0.0
        %1916 = vmatprep.subr.mxu0 0.0
        %1917 = vmatpush1.msra.mxu0 0.0
        %1918 = vmatprep.subr.mxu0 0.0
        %1919 = vmatpush1.msra.mxu0 0.0
        %1920 = vmatprep.subr.mxu0 0.0
        %1921 = vmatpush1.msra.mxu0 0.0
        %1922 = vmatprep.subr.mxu0 0.0
        %1923 = vmatpush1.msra.mxu0 0.0
        %1924 = vmatprep.subr.mxu0 0.0
        %1925 = vmatpush1.msra.mxu0 0.0
        %1926 = vmatprep.subr.mxu0 0.0
        %1927 = vmatpush1.msra.mxu0 0.0
        %1928 = vmatprep.subr.mxu0 0.0
        %1929 = vmatpush1.msra.mxu0 0.0
        %1930 = vmatprep.subr.mxu0 0.0
        %1931 = vmatpush1.msra.mxu0 0.0
        %1932 = vmatprep.mubr.f32.mxu0 0.0
        %1933 = vmatmul.mubr.f32.gmra.mrb[0].mxu0 %v1863
        %v1934 = vpop.f32.mrb[0].mxu0
        %v1935 = vadd.f32 %v1860, %v1934
        %v1936 = vpop.f32.mrb[0].mxu0
        %1937 = vmatprep.mubr.f32.mxu0 0.0
        %1938 = vmatmul.mubr.f32.gmra.mrb[0].mxu0 %v1866
        %v1939 = vpop.f32.mrb[0].mxu0
        %v1940 = vadd.f32 %v1860, %v1939
        %v1941 = vpop.f32.mrb[0].mxu0
        %1942 = vdwg.mxu0
        %v1943 = vmax.f32 %v1935, 0.0
        %v1944 = vmax.f32 %v1940, 0.0
        %v1945 = vld [vmem:[%s39] sm:$0xff]
        %v1946 = vld [vmem:[%s39 + $0x8] sm:$0xff]
        %v1947 = vld [vmem:[%s41] sm:$0x1]
        %v1949 = vlaneseq
        %v1950 = vshrl.u32 %v1949, 7
        %v1951 = vsub.s32 0, %v1950
        %v1952 = vrot.slane %v1947, %v1951
        %v1955 = vsel %vm1540, %v1943, 0
        %v1958 = vsel %vm1540, %v1944, 0
        %1960 = vmatprep.subr.mxu0 0.0
        %1961 = vmatpush1.msra.mxu0 %v1945
        %1962 = vmatprep.subr.mxu0 0.0
        %1963 = vmatpush1.msra.mxu0 %v1946
        %1964 = vmatprep.subr.mxu0 0.0
        %1965 = vmatpush1.msra.mxu0 0.0
        %1966 = vmatprep.subr.mxu0 0.0
        %1967 = vmatpush1.msra.mxu0 0.0
        %1968 = vmatprep.subr.mxu0 0.0
        %1969 = vmatpush1.msra.mxu0 0.0
        %1970 = vmatprep.subr.mxu0 0.0
        %1971 = vmatpush1.msra.mxu0 0.0
        %1972 = vmatprep.subr.mxu0 0.0
        %1973 = vmatpush1.msra.mxu0 0.0
        %1974 = vmatprep.subr.mxu0 0.0
        %1975 = vmatpush1.msra.mxu0 0.0
        %1976 = vmatprep.subr.mxu0 0.0
        %1977 = vmatpush1.msra.mxu0 0.0
        %1978 = vmatprep.subr.mxu0 0.0
        %1979 = vmatpush1.msra.mxu0 0.0
        %1980 = vmatprep.subr.mxu0 0.0
        %1981 = vmatpush1.msra.mxu0 0.0
        %1982 = vmatprep.subr.mxu0 0.0
        %1983 = vmatpush1.msra.mxu0 0.0
        %1984 = vmatprep.subr.mxu0 0.0
        %1985 = vmatpush1.msra.mxu0 0.0
        %1986 = vmatprep.subr.mxu0 0.0
        %1987 = vmatpush1.msra.mxu0 0.0
        %1988 = vmatprep.subr.mxu0 0.0
        %1989 = vmatpush1.msra.mxu0 0.0
        %1990 = vmatprep.subr.mxu0 0.0
        %1991 = vmatpush1.msra.mxu0 0.0
        %1992 = vmatprep.subr.mxu0 0.0
        %1993 = vmatpush1.msra.mxu0 0.0
        %1994 = vmatprep.subr.mxu0 0.0
        %1995 = vmatpush1.msra.mxu0 0.0
        %1996 = vmatprep.subr.mxu0 0.0
        %1997 = vmatpush1.msra.mxu0 0.0
        %1998 = vmatprep.subr.mxu0 0.0
        %1999 = vmatpush1.msra.mxu0 0.0
        %2000 = vmatprep.subr.mxu0 0.0
        %2001 = vmatpush1.msra.mxu0 0.0
        %2002 = vmatprep.subr.mxu0 0.0
        %2003 = vmatpush1.msra.mxu0 0.0
        %2004 = vmatprep.subr.mxu0 0.0
        %2005 = vmatpush1.msra.mxu0 0.0
        %2006 = vmatprep.subr.mxu0 0.0
        %2007 = vmatpush1.msra.mxu0 0.0
        %2008 = vmatprep.subr.mxu0 0.0
        %2009 = vmatpush1.msra.mxu0 0.0
        %2010 = vmatprep.subr.mxu0 0.0
        %2011 = vmatpush1.msra.mxu0 0.0
        %2012 = vmatprep.subr.mxu0 0.0
        %2013 = vmatpush1.msra.mxu0 0.0
        %2014 = vmatprep.subr.mxu0 0.0
        %2015 = vmatpush1.msra.mxu0 0.0
        %2016 = vmatprep.subr.mxu0 0.0
        %2017 = vmatpush1.msra.mxu0 0.0
        %2018 = vmatprep.subr.mxu0 0.0
        %2019 = vmatpush1.msra.mxu0 0.0
        %2020 = vmatprep.subr.mxu0 0.0
        %2021 = vmatpush1.msra.mxu0 0.0
        %2022 = vmatprep.subr.mxu0 0.0
        %2023 = vmatpush1.msra.mxu0 0.0
        %2024 = vmatprep.mubr.f32.mxu0 0.0
        %2025 = vmatmul.mubr.f32.gmra.mrb[0].mxu0 %v1955
        %v2026 = vpop.f32.mrb[0].mxu0
        %v2027 = vadd.f32 %v1952, %v2026
        %v2028 = vpop.f32.mrb[0].mxu0
        %2029 = vmatprep.mubr.f32.mxu0 0.0
        %2030 = vmatmul.mubr.f32.gmra.mrb[0].mxu0 %v1958
        %v2031 = vpop.f32.mrb[0].mxu0
        %v2032 = vadd.f32 %v1952, %v2031
        %v2033 = vpop.f32.mrb[0].mxu0
        %2034 = vdwg.mxu0
        %v2035 = vmax.f32 %v2027, 0.0
        %v2036 = vmax.f32 %v2032, 0.0
        %v2038 = vsel %vm1540, %v1253, 0
        %v2041 = vsel %vm1540, %v1254, 0
        %2043 = vmatprep.subr.mxu0 0.0
        %2044 = vmatpush1.msra.mxu0 %v2035
        %2045 = vmatprep.subr.mxu0 0.0
        %2046 = vmatpush1.msra.mxu0 %v2036
        %2047 = vmatprep.subr.mxu0 0.0
        %2048 = vmatpush1.msra.mxu0 0.0
        %2049 = vmatprep.subr.mxu0 0.0
        %2050 = vmatpush1.msra.mxu0 0.0
        %2051 = vmatprep.subr.mxu0 0.0
        %2052 = vmatpush1.msra.mxu0 0.0
        %2053 = vmatprep.subr.mxu0 0.0
        %2054 = vmatpush1.msra.mxu0 0.0
        %2055 = vmatprep.subr.mxu0 0.0
        %2056 = vmatpush1.msra.mxu0 0.0
        %2057 = vmatprep.subr.mxu0 0.0
        %2058 = vmatpush1.msra.mxu0 0.0
        %2059 = vmatprep.subr.mxu0 0.0
        %2060 = vmatpush1.msra.mxu0 0.0
        %2061 = vmatprep.subr.mxu0 0.0
        %2062 = vmatpush1.msra.mxu0 0.0
        %2063 = vmatprep.subr.mxu0 0.0
        %2064 = vmatpush1.msra.mxu0 0.0
        %2065 = vmatprep.subr.mxu0 0.0
        %2066 = vmatpush1.msra.mxu0 0.0
        %2067 = vmatprep.subr.mxu0 0.0
        %2068 = vmatpush1.msra.mxu0 0.0
        %2069 = vmatprep.subr.mxu0 0.0
        %2070 = vmatpush1.msra.mxu0 0.0
        %2071 = vmatprep.subr.mxu0 0.0
        %2072 = vmatpush1.msra.mxu0 0.0
        %2073 = vmatprep.subr.mxu0 0.0
        %2074 = vmatpush1.msra.mxu0 0.0
        %2075 = vmatprep.subr.mxu0 0.0
        %2076 = vmatpush1.msra.mxu0 0.0
        %2077 = vmatprep.subr.mxu0 0.0
        %2078 = vmatpush1.msra.mxu0 0.0
        %2079 = vmatprep.subr.mxu0 0.0
        %2080 = vmatpush1.msra.mxu0 0.0
        %2081 = vmatprep.subr.mxu0 0.0
        %2082 = vmatpush1.msra.mxu0 0.0
        %2083 = vmatprep.subr.mxu0 0.0
        %2084 = vmatpush1.msra.mxu0 0.0
        %2085 = vmatprep.subr.mxu0 0.0
        %2086 = vmatpush1.msra.mxu0 0.0
        %2087 = vmatprep.subr.mxu0 0.0
        %2088 = vmatpush1.msra.mxu0 0.0
        %2089 = vmatprep.subr.mxu0 0.0
        %2090 = vmatpush1.msra.mxu0 0.0
        %2091 = vmatprep.subr.mxu0 0.0
        %2092 = vmatpush1.msra.mxu0 0.0
        %2093 = vmatprep.subr.mxu0 0.0
        %2094 = vmatpush1.msra.mxu0 0.0
        %2095 = vmatprep.subr.mxu0 0.0
        %2096 = vmatpush1.msra.mxu0 0.0
        %2097 = vmatprep.subr.mxu0 0.0
        %2098 = vmatpush1.msra.mxu0 0.0
        %2099 = vmatprep.subr.mxu0 0.0
        %2100 = vmatpush1.msra.mxu0 0.0
        %2101 = vmatprep.subr.mxu0 0.0
        %2102 = vmatpush1.msra.mxu0 0.0
        %2103 = vmatprep.subr.mxu0 0.0
        %2104 = vmatpush1.msra.mxu0 0.0
        %2105 = vmatprep.subr.mxu0 0.0
        %2106 = vmatpush1.msra.mxu0 0.0
        %2107 = vmatprep.mubr.f32.mxu0 0.0
        %2108 = vmatmul.mubr.f32.gmra.mrb[0].mxu0 %v2038
        %v2109 = vpop.f32.mrb[0].mxu0
        %v2110 = vadd.f32 0.0, %v2109
        %v2111 = vpop.f32.mrb[0].mxu0
        %2112 = vmatprep.mubr.f32.mxu0 0.0
        %2113 = vmatmul.mubr.f32.gmra.mrb[0].mxu0 %v2041
        %v2114 = vpop.f32.mrb[0].mxu0
        %v2115 = vadd.f32 0.0, %v2114
        %v2116 = vpop.f32.mrb[0].mxu0
        %2117 = vdwg.mxu0
        %2119 = vset.pattern.permute.xlu0 0
        %2120 = vperm.xlu0 %2119, %v1757
        %v2121 = vpop.permute.xlu0 %2120
        %v2123 = vmul.f32 %v2121, %v2035
        %v2124 = vmul.f32 %v2121, %v2036
        %2125 = vset.pattern.permute.xlu0 1
        %2126 = vperm.xlu0 %2125, %v1757
        %v2127 = vpop.permute.xlu0 %2126
        %v2129 = vmul.f32 %v2127, %v2110
        %v2130 = vmul.f32 %v2127, %v2115
        %v2131 = vadd.f32 %v2123, %v2129
        %v2132 = vadd.f32 %v2124, %v2130
        %2133 = vmatprep.subr.mxu0 0.0
        %2134 = vmatpush1.msra.mxu0 %v2110
        %2135 = vmatprep.subr.mxu0 0.0
        %2136 = vmatpush1.msra.mxu0 %v2115
        %2137 = vmatprep.subr.mxu0 0.0
        %2138 = vmatpush1.msra.mxu0 0.0
        %2139 = vmatprep.subr.mxu0 0.0
        %2140 = vmatpush1.msra.mxu0 0.0
        %2141 = vmatprep.subr.mxu0 0.0
        %2142 = vmatpush1.msra.mxu0 0.0
        %2143 = vmatprep.subr.mxu0 0.0
        %2144 = vmatpush1.msra.mxu0 0.0
        %2145 = vmatprep.subr.mxu0 0.0
        %2146 = vmatpush1.msra.mxu0 0.0
        %2147 = vmatprep.subr.mxu0 0.0
        %2148 = vmatpush1.msra.mxu0 0.0
        %2149 = vmatprep.subr.mxu0 0.0
        %2150 = vmatpush1.msra.mxu0 0.0
        %2151 = vmatprep.subr.mxu0 0.0
        %2152 = vmatpush1.msra.mxu0 0.0
        %2153 = vmatprep.subr.mxu0 0.0
        %2154 = vmatpush1.msra.mxu0 0.0
        %2155 = vmatprep.subr.mxu0 0.0
        %2156 = vmatpush1.msra.mxu0 0.0
        %2157 = vmatprep.subr.mxu0 0.0
        %2158 = vmatpush1.msra.mxu0 0.0
        %2159 = vmatprep.subr.mxu0 0.0
        %2160 = vmatpush1.msra.mxu0 0.0
        %2161 = vmatprep.subr.mxu0 0.0
        %2162 = vmatpush1.msra.mxu0 0.0
        %2163 = vmatprep.subr.mxu0 0.0
        %2164 = vmatpush1.msra.mxu0 0.0
        %2165 = vmatprep.subr.mxu0 0.0
        %2166 = vmatpush1.msra.mxu0 0.0
        %2167 = vmatprep.subr.mxu0 0.0
        %2168 = vmatpush1.msra.mxu0 0.0
        %2169 = vmatprep.subr.mxu0 0.0
        %2170 = vmatpush1.msra.mxu0 0.0
        %2171 = vmatprep.subr.mxu0 0.0
        %2172 = vmatpush1.msra.mxu0 0.0
        %2173 = vmatprep.subr.mxu0 0.0
        %2174 = vmatpush1.msra.mxu0 0.0
        %2175 = vmatprep.subr.mxu0 0.0
        %2176 = vmatpush1.msra.mxu0 0.0
        %2177 = vmatprep.subr.mxu0 0.0
        %2178 = vmatpush1.msra.mxu0 0.0
        %2179 = vmatprep.subr.mxu0 0.0
        %2180 = vmatpush1.msra.mxu0 0.0
        %2181 = vmatprep.subr.mxu0 0.0
        %2182 = vmatpush1.msra.mxu0 0.0
        %2183 = vmatprep.subr.mxu0 0.0
        %2184 = vmatpush1.msra.mxu0 0.0
        %2185 = vmatprep.subr.mxu0 0.0
        %2186 = vmatpush1.msra.mxu0 0.0
        %2187 = vmatprep.subr.mxu0 0.0
        %2188 = vmatpush1.msra.mxu0 0.0
        %2189 = vmatprep.subr.mxu0 0.0
        %2190 = vmatpush1.msra.mxu0 0.0
        %2191 = vmatprep.subr.mxu0 0.0
        %2192 = vmatpush1.msra.mxu0 0.0
        %2193 = vmatprep.subr.mxu0 0.0
        %2194 = vmatpush1.msra.mxu0 0.0
        %2195 = vmatprep.subr.mxu0 0.0
        %2196 = vmatpush1.msra.mxu0 0.0
        %2197 = vmatprep.mubr.f32.mxu0 0.0
        %2198 = vmatmul.mubr.f32.gmra.mrb[0].mxu0 %v2038
        %v2199 = vpop.f32.mrb[0].mxu0
        %v2200 = vadd.f32 0.0, %v2199
        %v2201 = vpop.f32.mrb[0].mxu0
        %2202 = vmatprep.mubr.f32.mxu0 0.0
        %2203 = vmatmul.mubr.f32.gmra.mrb[0].mxu0 %v2041
        %v2204 = vpop.f32.mrb[0].mxu0
        %v2205 = vadd.f32 0.0, %v2204
        %v2206 = vpop.f32.mrb[0].mxu0
        %2207 = vdwg.mxu0
        %v2208 = vmul.f32 %v2200, 2.0
        %v2209 = vmul.f32 %v2205, 2.0
        %v2210 = vsub.f32 %v2208, %v2035
        %v2211 = vsub.f32 %v2209, %v2036
        %v2212 = vmul.f32 %v1757, 0.5
        %2214 = vset.pattern.permute.xlu0 2
        %2215 = vperm.xlu0 %2214, %v2212
        %v2216 = vpop.permute.xlu0 %2215
        %v2218 = vmul.f32 %v2216, %v2210
        %v2219 = vmul.f32 %v2216, %v2211
        %v2220 = vadd.f32 %v2131, %v2218
        %v2221 = vadd.f32 %v2132, %v2219
        %2222 = vmatprep.subr.mxu0 0.0
        %2223 = vmatpush1.msra.mxu0 %v2210
        %2224 = vmatprep.subr.mxu0 0.0
        %2225 = vmatpush1.msra.mxu0 %v2211
        %2226 = vmatprep.subr.mxu0 0.0
        %2227 = vmatpush1.msra.mxu0 0.0
        %2228 = vmatprep.subr.mxu0 0.0
        %2229 = vmatpush1.msra.mxu0 0.0
        %2230 = vmatprep.subr.mxu0 0.0
        %2231 = vmatpush1.msra.mxu0 0.0
        %2232 = vmatprep.subr.mxu0 0.0
        %2233 = vmatpush1.msra.mxu0 0.0
        %2234 = vmatprep.subr.mxu0 0.0
        %2235 = vmatpush1.msra.mxu0 0.0
        %2236 = vmatprep.subr.mxu0 0.0
        %2237 = vmatpush1.msra.mxu0 0.0
        %2238 = vmatprep.subr.mxu0 0.0
        %2239 = vmatpush1.msra.mxu0 0.0
        %2240 = vmatprep.subr.mxu0 0.0
        %2241 = vmatpush1.msra.mxu0 0.0
        %2242 = vmatprep.subr.mxu0 0.0
        %2243 = vmatpush1.msra.mxu0 0.0
        %2244 = vmatprep.subr.mxu0 0.0
        %2245 = vmatpush1.msra.mxu0 0.0
        %2246 = vmatprep.subr.mxu0 0.0
        %2247 = vmatpush1.msra.mxu0 0.0
        %2248 = vmatprep.subr.mxu0 0.0
        %2249 = vmatpush1.msra.mxu0 0.0
        %2250 = vmatprep.subr.mxu0 0.0
        %2251 = vmatpush1.msra.mxu0 0.0
        %2252 = vmatprep.subr.mxu0 0.0
        %2253 = vmatpush1.msra.mxu0 0.0
        %2254 = vmatprep.subr.mxu0 0.0
        %2255 = vmatpush1.msra.mxu0 0.0
        %2256 = vmatprep.subr.mxu0 0.0
        %2257 = vmatpush1.msra.mxu0 0.0
        %2258 = vmatprep.subr.mxu0 0.0
        %2259 = vmatpush1.msra.mxu0 0.0
        %2260 = vmatprep.subr.mxu0 0.0
        %2261 = vmatpush1.msra.mxu0 0.0
        %2262 = vmatprep.subr.mxu0 0.0
        %2263 = vmatpush1.msra.mxu0 0.0
        %2264 = vmatprep.subr.mxu0 0.0
        %2265 = vmatpush1.msra.mxu0 0.0
        %2266 = vmatprep.subr.mxu0 0.0
        %2267 = vmatpush1.msra.mxu0 0.0
        %2268 = vmatprep.subr.mxu0 0.0
        %2269 = vmatpush1.msra.mxu0 0.0
        %2270 = vmatprep.subr.mxu0 0.0
        %2271 = vmatpush1.msra.mxu0 0.0
        %2272 = vmatprep.subr.mxu0 0.0
        %2273 = vmatpush1.msra.mxu0 0.0
        %2274 = vmatprep.subr.mxu0 0.0
        %2275 = vmatpush1.msra.mxu0 0.0
        %2276 = vmatprep.subr.mxu0 0.0
        %2277 = vmatpush1.msra.mxu0 0.0
        %2278 = vmatprep.subr.mxu0 0.0
        %2279 = vmatpush1.msra.mxu0 0.0
        %2280 = vmatprep.subr.mxu0 0.0
        %2281 = vmatpush1.msra.mxu0 0.0
        %2282 = vmatprep.subr.mxu0 0.0
        %2283 = vmatpush1.msra.mxu0 0.0
        %2284 = vmatprep.subr.mxu0 0.0
        %2285 = vmatpush1.msra.mxu0 0.0
        %2286 = vmatprep.mubr.f32.mxu0 0.0
        %2287 = vmatmul.mubr.f32.gmra.mrb[0].mxu0 %v2038
        %v2288 = vpop.f32.mrb[0].mxu0
        %v2289 = vadd.f32 0.0, %v2288
        %v2290 = vpop.f32.mrb[0].mxu0
        %2291 = vmatprep.mubr.f32.mxu0 0.0
        %2292 = vmatmul.mubr.f32.gmra.mrb[0].mxu0 %v2041
        %v2293 = vpop.f32.mrb[0].mxu0
        %v2294 = vadd.f32 0.0, %v2293
        %v2295 = vpop.f32.mrb[0].mxu0
        %2296 = vdwg.mxu0
        %v2297 = vmul.f32 %v2289, 2.0
        %v2298 = vmul.f32 %v2294, 2.0
        %v2299 = vsub.f32 %v2297, %v2110
        %v2300 = vsub.f32 %v2298, %v2115
        %v2301 = vmul.f32 %v1757, 0.33333334
        %2303 = vset.pattern.permute.xlu0 3
        %2304 = vperm.xlu0 %2303, %v2301
        %v2305 = vpop.permute.xlu0 %2304
        %v2307 = vmul.f32 %v2305, %v2299
        %v2308 = vmul.f32 %v2305, %v2300
        %v2309 = vadd.f32 %v2220, %v2307
        %v2310 = vadd.f32 %v2221, %v2308
        %v2311 = vld [vmem:[%s43] sm:$0xff]
        %v2312 = vld [vmem:[%s45] sm:$0x3]
        %vm2313 = vcmask 15360
        %v2315 = vsel %vm2313, %v1255, 0
        %v2318 = vsel %vm2313, %v1256, 0
        %vm2320 = vcmask 1041408
        %v2322 = vsel %vm2320, %v2312, 0
        %2324 = vmatprep.subr.mxu0 0.0
        %2325 = vmatpush1.msra.mxu0 %v2322
        %2326 = vmatprep.subr.mxu0 0.0
        %2327 = vmatpush1.msra.mxu0 0.0
        %2328 = vmatprep.subr.mxu0 0.0
        %2329 = vmatpush1.msra.mxu0 0.0
        %2330 = vmatprep.subr.mxu0 0.0
        %2331 = vmatpush1.msra.mxu0 0.0
        %2332 = vmatprep.subr.mxu0 0.0
        %2333 = vmatpush1.msra.mxu0 0.0
        %2334 = vmatprep.subr.mxu0 0.0
        %2335 = vmatpush1.msra.mxu0 0.0
        %2336 = vmatprep.subr.mxu0 0.0
        %2337 = vmatpush1.msra.mxu0 0.0
        %2338 = vmatprep.subr.mxu0 0.0
        %2339 = vmatpush1.msra.mxu0 0.0
        %2340 = vmatprep.subr.mxu0 0.0
        %2341 = vmatpush1.msra.mxu0 0.0
        %2342 = vmatprep.subr.mxu0 0.0
        %2343 = vmatpush1.msra.mxu0 0.0
        %2344 = vmatprep.subr.mxu0 0.0
        %2345 = vmatpush1.msra.mxu0 0.0
        %2346 = vmatprep.subr.mxu0 0.0
        %2347 = vmatpush1.msra.mxu0 0.0
        %2348 = vmatprep.subr.mxu0 0.0
        %2349 = vmatpush1.msra.mxu0 0.0
        %2350 = vmatprep.subr.mxu0 0.0
        %2351 = vmatpush1.msra.mxu0 0.0
        %2352 = vmatprep.subr.mxu0 0.0
        %2353 = vmatpush1.msra.mxu0 0.0
        %2354 = vmatprep.subr.mxu0 0.0
        %2355 = vmatpush1.msra.mxu0 0.0
        %2356 = vmatprep.subr.mxu0 0.0
        %2357 = vmatpush1.msra.mxu0 0.0
        %2358 = vmatprep.subr.mxu0 0.0
        %2359 = vmatpush1.msra.mxu0 0.0
        %2360 = vmatprep.subr.mxu0 0.0
        %2361 = vmatpush1.msra.mxu0 0.0
        %2362 = vmatprep.subr.mxu0 0.0
        %2363 = vmatpush1.msra.mxu0 0.0
        %2364 = vmatprep.subr.mxu0 0.0
        %2365 = vmatpush1.msra.mxu0 0.0
        %2366 = vmatprep.subr.mxu0 0.0
        %2367 = vmatpush1.msra.mxu0 0.0
        %2368 = vmatprep.subr.mxu0 0.0
        %2369 = vmatpush1.msra.mxu0 0.0
        %2370 = vmatprep.subr.mxu0 0.0
        %2371 = vmatpush1.msra.mxu0 0.0
        %2372 = vmatprep.subr.mxu0 0.0
        %2373 = vmatpush1.msra.mxu0 0.0
        %2374 = vmatprep.subr.mxu0 0.0
        %2375 = vmatpush1.msra.mxu0 0.0
        %2376 = vmatprep.subr.mxu0 0.0
        %2377 = vmatpush1.msra.mxu0 0.0
        %2378 = vmatprep.subr.mxu0 0.0
        %2379 = vmatpush1.msra.mxu0 0.0
        %2380 = vmatprep.subr.mxu0 0.0
        %2381 = vmatpush1.msra.mxu0 0.0
        %2382 = vmatprep.subr.mxu0 0.0
        %2383 = vmatpush1.msra.mxu0 0.0
        %2384 = vmatprep.subr.mxu0 0.0
        %2385 = vmatpush1.msra.mxu0 0.0
        %2386 = vmatprep.subr.mxu0 0.0
        %2387 = vmatpush1.msra.mxu0 0.0
        %2388 = vmatprep.mubr.f32.mxu0 0.0
        %2389 = vmatmul.mubr.f32.gmra.mrb[0].mxu0 %v2315
        %v2390 = vpop.f32.mrb[0].mxu0
        %v2391 = vadd.f32 0.0, %v2390
        %v2392 = vpop.f32.mrb[0].mxu0
        %2393 = vmatprep.mubr.f32.mxu0 0.0
        %2394 = vmatmul.mubr.f32.gmra.mrb[0].mxu0 %v2318
        %v2395 = vpop.f32.mrb[0].mxu0
        %v2396 = vadd.f32 0.0, %v2395
        %v2397 = vpop.f32.mrb[0].mxu0
        %2398 = vdwg.mxu0
        %v2400 = vsel %vm1269, %v2309, 0
        %v2403 = vsel %vm1269, %v2310, 0
        %2405 = vmatprep.subr.mxu0 0.0
        %2406 = vmatpush1.msra.mxu0 %v2311
        %2407 = vmatprep.subr.mxu0 0.0
        %2408 = vmatpush1.msra.mxu0 0.0
        %2409 = vmatprep.subr.mxu0 0.0
        %2410 = vmatpush1.msra.mxu0 0.0
        %2411 = vmatprep.subr.mxu0 0.0
        %2412 = vmatpush1.msra.mxu0 0.0
        %2413 = vmatprep.subr.mxu0 0.0
        %2414 = vmatpush1.msra.mxu0 0.0
        %2415 = vmatprep.subr.mxu0 0.0
        %2416 = vmatpush1.msra.mxu0 0.0
        %2417 = vmatprep.subr.mxu0 0.0
        %2418 = vmatpush1.msra.mxu0 0.0
        %2419 = vmatprep.subr.mxu0 0.0
        %2420 = vmatpush1.msra.mxu0 0.0
        %2421 = vmatprep.subr.mxu0 0.0
        %2422 = vmatpush1.msra.mxu0 0.0
        %2423 = vmatprep.subr.mxu0 0.0
        %2424 = vmatpush1.msra.mxu0 0.0
        %2425 = vmatprep.subr.mxu0 0.0
        %2426 = vmatpush1.msra.mxu0 0.0
        %2427 = vmatprep.subr.mxu0 0.0
        %2428 = vmatpush1.msra.mxu0 0.0
        %2429 = vmatprep.subr.mxu0 0.0
        %2430 = vmatpush1.msra.mxu0 0.0
        %2431 = vmatprep.subr.mxu0 0.0
        %2432 = vmatpush1.msra.mxu0 0.0
        %2433 = vmatprep.subr.mxu0 0.0
        %2434 = vmatpush1.msra.mxu0 0.0
        %2435 = vmatprep.subr.mxu0 0.0
        %2436 = vmatpush1.msra.mxu0 0.0
        %2437 = vmatprep.subr.mxu0 0.0
        %2438 = vmatpush1.msra.mxu0 0.0
        %2439 = vmatprep.subr.mxu0 0.0
        %2440 = vmatpush1.msra.mxu0 0.0
        %2441 = vmatprep.subr.mxu0 0.0
        %2442 = vmatpush1.msra.mxu0 0.0
        %2443 = vmatprep.subr.mxu0 0.0
        %2444 = vmatpush1.msra.mxu0 0.0
        %2445 = vmatprep.subr.mxu0 0.0
        %2446 = vmatpush1.msra.mxu0 0.0
        %2447 = vmatprep.subr.mxu0 0.0
        %2448 = vmatpush1.msra.mxu0 0.0
        %2449 = vmatprep.subr.mxu0 0.0
        %2450 = vmatpush1.msra.mxu0 0.0
        %2451 = vmatprep.subr.mxu0 0.0
        %2452 = vmatpush1.msra.mxu0 0.0
        %2453 = vmatprep.subr.mxu0 0.0
        %2454 = vmatpush1.msra.mxu0 0.0
        %2455 = vmatprep.subr.mxu0 0.0
        %2456 = vmatpush1.msra.mxu0 0.0
        %2457 = vmatprep.subr.mxu0 0.0
        %2458 = vmatpush1.msra.mxu0 0.0
        %2459 = vmatprep.subr.mxu0 0.0
        %2460 = vmatpush1.msra.mxu0 0.0
        %2461 = vmatprep.subr.mxu0 0.0
        %2462 = vmatpush1.msra.mxu0 0.0
        %2463 = vmatprep.subr.mxu0 0.0
        %2464 = vmatpush1.msra.mxu0 0.0
        %2465 = vmatprep.subr.mxu0 0.0
        %2466 = vmatpush1.msra.mxu0 0.0
        %2467 = vmatprep.subr.mxu0 0.0
        %2468 = vmatpush1.msra.mxu0 0.0
        %2469 = vmatprep.mubr.f32.mxu0 0.0
        %2470 = vmatmul.mubr.f32.gmra.mrb[0].mxu0 %v2400
        %v2471 = vpop.f32.mrb[0].mxu0
        %v2472 = vadd.f32 %v2391, %v2471
        %v2473 = vpop.f32.mrb[0].mxu0
        %2474 = vmatprep.mubr.f32.mxu0 0.0
        %2475 = vmatmul.mubr.f32.gmra.mrb[0].mxu0 %v2403
        %v2476 = vpop.f32.mrb[0].mxu0
        %v2477 = vadd.f32 %v2396, %v2476
        %v2478 = vpop.f32.mrb[0].mxu0
        %2479 = vdwg.mxu0
        %v2480 = vld [vmem:[%s49] sm:$0x1]
        %v2482 = vlaneseq
        %v2483 = vshrl.u32 %v2482, 7
        %v2484 = vsub.s32 0, %v2483
        %v2485 = vrot.slane %v2480, %v2484
        %v2487 = vadd.f32 %v2472, %v2485
        %v2488 = vadd.f32 %v2477, %v2485
        %v2489 = vld [vmem:[%s47] sm:$0xff]
        %v2490 = vld [vmem:[%s47 + $0x8] sm:$0xff]
        %v2491 = vld [vmem:[%s47 + $0x10] sm:$0xff]
        %v2492 = vld [vmem:[%s47 + $0x18] sm:$0xff]
        %v2493 = vld [vmem:[%s51] sm:$0x1]
        %v2495 = vlaneseq
        %v2496 = vshrl.u32 %v2495, 7
        %v2497 = vsub.s32 0, %v2496
        %v2498 = vrot.slane %v2493, %v2497
        %v2501 = vsel %vm1447, %v1257, 0
        %v2504 = vsel %vm1447, %v1258, 0
        %2506 = vmatprep.subr.mxu0 0.0
        %2507 = vmatpush1.msra.mxu0 %v2489
        %2508 = vmatprep.subr.mxu0 0.0
        %2509 = vmatpush1.msra.mxu0 %v2490
        %2510 = vmatprep.subr.mxu0 0.0
        %2511 = vmatpush1.msra.mxu0 %v2491
        %2512 = vmatprep.subr.mxu0 0.0
        %2513 = vmatpush1.msra.mxu0 %v2492
        %2514 = vmatprep.subr.mxu0 0.0
        %2515 = vmatpush1.msra.mxu0 0.0
        %2516 = vmatprep.subr.mxu0 0.0
        %2517 = vmatpush1.msra.mxu0 0.0
        %2518 = vmatprep.subr.mxu0 0.0
        %2519 = vmatpush1.msra.mxu0 0.0
        %2520 = vmatprep.subr.mxu0 0.0
        %2521 = vmatpush1.msra.mxu0 0.0
        %2522 = vmatprep.subr.mxu0 0.0
        %2523 = vmatpush1.msra.mxu0 0.0
        %2524 = vmatprep.subr.mxu0 0.0
        %2525 = vmatpush1.msra.mxu0 0.0
        %2526 = vmatprep.subr.mxu0 0.0
        %2527 = vmatpush1.msra.mxu0 0.0
        %2528 = vmatprep.subr.mxu0 0.0
        %2529 = vmatpush1.msra.mxu0 0.0
        %2530 = vmatprep.subr.mxu0 0.0
        %2531 = vmatpush1.msra.mxu0 0.0
        %2532 = vmatprep.subr.mxu0 0.0
        %2533 = vmatpush1.msra.mxu0 0.0
        %2534 = vmatprep.subr.mxu0 0.0
        %2535 = vmatpush1.msra.mxu0 0.0
        %2536 = vmatprep.subr.mxu0 0.0
        %2537 = vmatpush1.msra.mxu0 0.0
        %2538 = vmatprep.subr.mxu0 0.0
        %2539 = vmatpush1.msra.mxu0 0.0
        %2540 = vmatprep.subr.mxu0 0.0
        %2541 = vmatpush1.msra.mxu0 0.0
        %2542 = vmatprep.subr.mxu0 0.0
        %2543 = vmatpush1.msra.mxu0 0.0
        %2544 = vmatprep.subr.mxu0 0.0
        %2545 = vmatpush1.msra.mxu0 0.0
        %2546 = vmatprep.subr.mxu0 0.0
        %2547 = vmatpush1.msra.mxu0 0.0
        %2548 = vmatprep.subr.mxu0 0.0
        %2549 = vmatpush1.msra.mxu0 0.0
        %2550 = vmatprep.subr.mxu0 0.0
        %2551 = vmatpush1.msra.mxu0 0.0
        %2552 = vmatprep.subr.mxu0 0.0
        %2553 = vmatpush1.msra.mxu0 0.0
        %2554 = vmatprep.subr.mxu0 0.0
        %2555 = vmatpush1.msra.mxu0 0.0
        %2556 = vmatprep.subr.mxu0 0.0
        %2557 = vmatpush1.msra.mxu0 0.0
        %2558 = vmatprep.subr.mxu0 0.0
        %2559 = vmatpush1.msra.mxu0 0.0
        %2560 = vmatprep.subr.mxu0 0.0
        %2561 = vmatpush1.msra.mxu0 0.0
        %2562 = vmatprep.subr.mxu0 0.0
        %2563 = vmatpush1.msra.mxu0 0.0
        %2564 = vmatprep.subr.mxu0 0.0
        %2565 = vmatpush1.msra.mxu0 0.0
        %2566 = vmatprep.subr.mxu0 0.0
        %2567 = vmatpush1.msra.mxu0 0.0
        %2568 = vmatprep.subr.mxu0 0.0
        %2569 = vmatpush1.msra.mxu0 0.0
        %2570 = vmatprep.mubr.f32.mxu0 0.0
        %2571 = vmatmul.mubr.f32.gmra.mrb[0].mxu0 %v2501
        %v2572 = vpop.f32.mrb[0].mxu0
        %v2573 = vadd.f32 %v2498, %v2572
        %v2574 = vpop.f32.mrb[0].mxu0
        %2575 = vmatprep.mubr.f32.mxu0 0.0
        %2576 = vmatmul.mubr.f32.gmra.mrb[0].mxu0 %v2504
        %v2577 = vpop.f32.mrb[0].mxu0
        %v2578 = vadd.f32 %v2498, %v2577
        %v2579 = vpop.f32.mrb[0].mxu0
        %2580 = vdwg.mxu0
        %v2581 = vadd.f32 %v2487, %v2573
        %v2582 = vadd.f32 %v2488, %v2578
        %v2583 = vxor.u32 %v2581, 2147483648
        %v2584 = vxor.u32 %v2582, 2147483648
        %v2585 = vmul.f32 %v2583, 1.442695
        %v2586 = vpow.pop %v2585
        %v2587 = vmul.f32 %v2584, 1.442695
        %v2588 = vpow.pop %v2587
        %v2589 = vadd.f32 %v2586, 1.0
        %v2590 = vadd.f32 %v2588, 1.0
        %v2591 = vrcp.pop %v2589
        %v2592 = vmul.f32 1.0, %v2591
        %v2593 = vrcp.pop %v2590
        %v2594 = vmul.f32 1.0, %v2593
        %2597 = vrot.lane.b32.xlu0 %v2573, 64
        %v2598 = vpop.permute.xlu0 %2597
        %2599 = vrot.lane.b32.xlu0 %v2578, 64
        %v2600 = vpop.permute.xlu0 %2599
        %v2603 = vmul.f32 %v2592, %v2598
        %v2604 = vmul.f32 %v2594, %v2600
        %2607 = vrot.lane.b32.xlu0 %v2603, 64
        %v2608 = vpop.permute.xlu0 %2607
        %2609 = vrot.lane.b32.xlu0 %v2604, 64
        %v2610 = vpop.permute.xlu0 %2609
        %v2613 = vadd.f32 %v2487, %v2608
        %v2614 = vadd.f32 %v2488, %v2610
        %v2615 = vtanh.pop %v2613
        %v2616 = vtanh.pop %v2614
        %v2617 = vsub.f32 1.0, %v2592
        %v2618 = vsub.f32 1.0, %v2594
        %2621 = vrot.lane.b32.xlu0 %v2615, 96
        %v2622 = vpop.permute.xlu0 %2621
        %2623 = vrot.lane.b32.xlu0 %v2616, 96
        %v2624 = vpop.permute.xlu0 %2623
        %v2627 = vmul.f32 %v2617, %v2622
        %v2628 = vmul.f32 %v2618, %v2624
        %2629 = vrot.lane.b32.xlu0 %v1257, 32
        %v2630 = vpop.permute.xlu0 %2629
        %2631 = vrot.lane.b32.xlu0 %v1258, 32
        %v2632 = vpop.permute.xlu0 %2631
        %v2635 = vmul.f32 %v2592, %v2630
        %v2636 = vmul.f32 %v2594, %v2632
        %v2637 = vadd.f32 %v2627, %v2635
        %v2638 = vadd.f32 %v2628, %v2636
        %v2639 = vld [vmem:[%s53] sm:$0xff]
        %v2640 = vld [vmem:[%s53 + $0x8] sm:$0xff]
        %v2641 = vld [vmem:[%s53 + $0x10] sm:$0xff]
        %v2642 = vld [vmem:[%s53 + $0x18] sm:$0xff]
        %v2643 = vld [vmem:[%s55] sm:$0x1]
        %v2645 = vlaneseq
        %v2646 = vshrl.u32 %v2645, 7
        %v2647 = vsub.s32 0, %v2646
        %v2648 = vrot.slane %v2643, %v2647
        %2652 = vrot.lane.b32.xlu0 %v2637, 96
        %v2653 = vpop.permute.xlu0 %2652
        %2654 = vrot.lane.b32.xlu0 %v2638, 96
        %v2655 = vpop.permute.xlu0 %2654
        %v2656 = vsel %vm1447, %v2653, 0
        %v2658 = vsel %vm1447, %v2655, 0
        %2660 = vmatprep.subr.mxu0 0.0
        %2661 = vmatpush1.msra.mxu0 %v2639
        %2662 = vmatprep.subr.mxu0 0.0
        %2663 = vmatpush1.msra.mxu0 %v2640
        %2664 = vmatprep.subr.mxu0 0.0
        %2665 = vmatpush1.msra.mxu0 %v2641
        %2666 = vmatprep.subr.mxu0 0.0
        %2667 = vmatpush1.msra.mxu0 %v2642
        %2668 = vmatprep.subr.mxu0 0.0
        %2669 = vmatpush1.msra.mxu0 0.0
        %2670 = vmatprep.subr.mxu0 0.0
        %2671 = vmatpush1.msra.mxu0 0.0
        %2672 = vmatprep.subr.mxu0 0.0
        %2673 = vmatpush1.msra.mxu0 0.0
        %2674 = vmatprep.subr.mxu0 0.0
        %2675 = vmatpush1.msra.mxu0 0.0
        %2676 = vmatprep.subr.mxu0 0.0
        %2677 = vmatpush1.msra.mxu0 0.0
        %2678 = vmatprep.subr.mxu0 0.0
        %2679 = vmatpush1.msra.mxu0 0.0
        %2680 = vmatprep.subr.mxu0 0.0
        %2681 = vmatpush1.msra.mxu0 0.0
        %2682 = vmatprep.subr.mxu0 0.0
        %2683 = vmatpush1.msra.mxu0 0.0
        %2684 = vmatprep.subr.mxu0 0.0
        %2685 = vmatpush1.msra.mxu0 0.0
        %2686 = vmatprep.subr.mxu0 0.0
        %2687 = vmatpush1.msra.mxu0 0.0
        %2688 = vmatprep.subr.mxu0 0.0
        %2689 = vmatpush1.msra.mxu0 0.0
        %2690 = vmatprep.subr.mxu0 0.0
        %2691 = vmatpush1.msra.mxu0 0.0
        %2692 = vmatprep.subr.mxu0 0.0
        %2693 = vmatpush1.msra.mxu0 0.0
        %2694 = vmatprep.subr.mxu0 0.0
        %2695 = vmatpush1.msra.mxu0 0.0
        %2696 = vmatprep.subr.mxu0 0.0
        %2697 = vmatpush1.msra.mxu0 0.0
        %2698 = vmatprep.subr.mxu0 0.0
        %2699 = vmatpush1.msra.mxu0 0.0
        %2700 = vmatprep.subr.mxu0 0.0
        %2701 = vmatpush1.msra.mxu0 0.0
        %2702 = vmatprep.subr.mxu0 0.0
        %2703 = vmatpush1.msra.mxu0 0.0
        %2704 = vmatprep.subr.mxu0 0.0
        %2705 = vmatpush1.msra.mxu0 0.0
        %2706 = vmatprep.subr.mxu0 0.0
        %2707 = vmatpush1.msra.mxu0 0.0
        %2708 = vmatprep.subr.mxu0 0.0
        %2709 = vmatpush1.msra.mxu0 0.0
        %2710 = vmatprep.subr.mxu0 0.0
        %2711 = vmatpush1.msra.mxu0 0.0
        %2712 = vmatprep.subr.mxu0 0.0
        %2713 = vmatpush1.msra.mxu0 0.0
        %2714 = vmatprep.subr.mxu0 0.0
        %2715 = vmatpush1.msra.mxu0 0.0
        %2716 = vmatprep.subr.mxu0 0.0
        %2717 = vmatpush1.msra.mxu0 0.0
        %2718 = vmatprep.subr.mxu0 0.0
        %2719 = vmatpush1.msra.mxu0 0.0
        %2720 = vmatprep.subr.mxu0 0.0
        %2721 = vmatpush1.msra.mxu0 0.0
        %2722 = vmatprep.subr.mxu0 0.0
        %2723 = vmatpush1.msra.mxu0 0.0
        %2724 = vmatprep.mubr.f32.mxu0 0.0
        %2725 = vmatmul.mubr.f32.gmra.mrb[0].mxu0 %v2656
        %v2726 = vpop.f32.mrb[0].mxu0
        %v2727 = vadd.f32 %v2648, %v2726
        %v2728 = vpop.f32.mrb[0].mxu0
        %2729 = vmatprep.mubr.f32.mxu0 0.0
        %2730 = vmatmul.mubr.f32.gmra.mrb[0].mxu0 %v2658
        %v2731 = vpop.f32.mrb[0].mxu0
        %v2732 = vadd.f32 %v2648, %v2731
        %v2733 = vpop.f32.mrb[0].mxu0
        %2734 = vdwg.mxu0
        %v2736 = vsel %vm1269, %v2727, 0
        %v2739 = vsel %vm1269, %v2732, 0
        %2741 = vmatprep.subr.mxu0 0.0
        %2742 = vmatpush1.msra.mxu0 %v1760
        %2743 = vmatprep.subr.mxu0 0.0
        %2744 = vmatpush1.msra.mxu0 0.0
        %2745 = vmatprep.subr.mxu0 0.0
        %2746 = vmatpush1.msra.mxu0 0.0
        %2747 = vmatprep.subr.mxu0 0.0
        %2748 = vmatpush1.msra.mxu0 0.0
        %2749 = vmatprep.subr.mxu0 0.0
        %2750 = vmatpush1.msra.mxu0 0.0
        %2751 = vmatprep.subr.mxu0 0.0
        %2752 = vmatpush1.msra.mxu0 0.0
        %2753 = vmatprep.subr.mxu0 0.0
        %2754 = vmatpush1.msra.mxu0 0.0
        %2755 = vmatprep.subr.mxu0 0.0
        %2756 = vmatpush1.msra.mxu0 0.0
        %2757 = vmatprep.subr.mxu0 0.0
        %2758 = vmatpush1.msra.mxu0 0.0
        %2759 = vmatprep.subr.mxu0 0.0
        %2760 = vmatpush1.msra.mxu0 0.0
        %2761 = vmatprep.subr.mxu0 0.0
        %2762 = vmatpush1.msra.mxu0 0.0
        %2763 = vmatprep.subr.mxu0 0.0
        %2764 = vmatpush1.msra.mxu0 0.0
        %2765 = vmatprep.subr.mxu0 0.0
        %2766 = vmatpush1.msra.mxu0 0.0
        %2767 = vmatprep.subr.mxu0 0.0
        %2768 = vmatpush1.msra.mxu0 0.0
        %2769 = vmatprep.subr.mxu0 0.0
        %2770 = vmatpush1.msra.mxu0 0.0
        %2771 = vmatprep.subr.mxu0 0.0
        %2772 = vmatpush1.msra.mxu0 0.0
        %2773 = vmatprep.subr.mxu0 0.0
        %2774 = vmatpush1.msra.mxu0 0.0
        %2775 = vmatprep.subr.mxu0 0.0
        %2776 = vmatpush1.msra.mxu0 0.0
        %2777 = vmatprep.subr.mxu0 0.0
        %2778 = vmatpush1.msra.mxu0 0.0
        %2779 = vmatprep.subr.mxu0 0.0
        %2780 = vmatpush1.msra.mxu0 0.0
        %2781 = vmatprep.subr.mxu0 0.0
        %2782 = vmatpush1.msra.mxu0 0.0
        %2783 = vmatprep.subr.mxu0 0.0
        %2784 = vmatpush1.msra.mxu0 0.0
        %2785 = vmatprep.subr.mxu0 0.0
        %2786 = vmatpush1.msra.mxu0 0.0
        %2787 = vmatprep.subr.mxu0 0.0
        %2788 = vmatpush1.msra.mxu0 0.0
        %2789 = vmatprep.subr.mxu0 0.0
        %2790 = vmatpush1.msra.mxu0 0.0
        %2791 = vmatprep.subr.mxu0 0.0
        %2792 = vmatpush1.msra.mxu0 0.0
        %2793 = vmatprep.subr.mxu0 0.0
        %2794 = vmatpush1.msra.mxu0 0.0
        %2795 = vmatprep.subr.mxu0 0.0
        %2796 = vmatpush1.msra.mxu0 0.0
        %2797 = vmatprep.subr.mxu0 0.0
        %2798 = vmatpush1.msra.mxu0 0.0
        %2799 = vmatprep.subr.mxu0 0.0
        %2800 = vmatpush1.msra.mxu0 0.0
        %2801 = vmatprep.subr.mxu0 0.0
        %2802 = vmatpush1.msra.mxu0 0.0
        %2803 = vmatprep.subr.mxu0 0.0
        %2804 = vmatpush1.msra.mxu0 0.0
        %2805 = vmatprep.mubr.f32.mxu0 0.0
        %2806 = vmatmul.mubr.f32.gmra.mrb[0].mxu0 %v2736
        %v2807 = vpop.f32.mrb[0].mxu0
        %v2808 = vadd.f32 %v1766, %v2807
        %v2809 = vpop.f32.mrb[0].mxu0
        %2810 = vmatprep.mubr.f32.mxu0 0.0
        %2811 = vmatmul.mubr.f32.gmra.mrb[0].mxu0 %v2739
        %v2812 = vpop.f32.mrb[0].mxu0
        %v2813 = vadd.f32 %v1766, %v2812
        %v2814 = vpop.f32.mrb[0].mxu0
        %2815 = vdwg.mxu0
        %v2816 = vmax.f32 %v2808, 0.0
        %v2817 = vmax.f32 %v2813, 0.0
        %v2819 = vsel %vm1447, %v2816, 0
        %v2822 = vsel %vm1447, %v2817, 0
        %2824 = vmatprep.subr.mxu0 0.0
        %2825 = vmatpush1.msra.mxu0 %v1851
        %2826 = vmatprep.subr.mxu0 0.0
        %2827 = vmatpush1.msra.mxu0 %v1852
        %2828 = vmatprep.subr.mxu0 0.0
        %2829 = vmatpush1.msra.mxu0 %v1853
        %2830 = vmatprep.subr.mxu0 0.0
        %2831 = vmatpush1.msra.mxu0 %v1854
        %2832 = vmatprep.subr.mxu0 0.0
        %2833 = vmatpush1.msra.mxu0 0.0
        %2834 = vmatprep.subr.mxu0 0.0
        %2835 = vmatpush1.msra.mxu0 0.0
        %2836 = vmatprep.subr.mxu0 0.0
        %2837 = vmatpush1.msra.mxu0 0.0
        %2838 = vmatprep.subr.mxu0 0.0
        %2839 = vmatpush1.msra.mxu0 0.0
        %2840 = vmatprep.subr.mxu0 0.0
        %2841 = vmatpush1.msra.mxu0 0.0
        %2842 = vmatprep.subr.mxu0 0.0
        %2843 = vmatpush1.msra.mxu0 0.0
        %2844 = vmatprep.subr.mxu0 0.0
        %2845 = vmatpush1.msra.mxu0 0.0
        %2846 = vmatprep.subr.mxu0 0.0
        %2847 = vmatpush1.msra.mxu0 0.0
        %2848 = vmatprep.subr.mxu0 0.0
        %2849 = vmatpush1.msra.mxu0 0.0
        %2850 = vmatprep.subr.mxu0 0.0
        %2851 = vmatpush1.msra.mxu0 0.0
        %2852 = vmatprep.subr.mxu0 0.0
        %2853 = vmatpush1.msra.mxu0 0.0
        %2854 = vmatprep.subr.mxu0 0.0
        %2855 = vmatpush1.msra.mxu0 0.0
        %2856 = vmatprep.subr.mxu0 0.0
        %2857 = vmatpush1.msra.mxu0 0.0
        %2858 = vmatprep.subr.mxu0 0.0
        %2859 = vmatpush1.msra.mxu0 0.0
        %2860 = vmatprep.subr.mxu0 0.0
        %2861 = vmatpush1.msra.mxu0 0.0
        %2862 = vmatprep.subr.mxu0 0.0
        %2863 = vmatpush1.msra.mxu0 0.0
        %2864 = vmatprep.subr.mxu0 0.0
        %2865 = vmatpush1.msra.mxu0 0.0
        %2866 = vmatprep.subr.mxu0 0.0
        %2867 = vmatpush1.msra.mxu0 0.0
        %2868 = vmatprep.subr.mxu0 0.0
        %2869 = vmatpush1.msra.mxu0 0.0
        %2870 = vmatprep.subr.mxu0 0.0
        %2871 = vmatpush1.msra.mxu0 0.0
        %2872 = vmatprep.subr.mxu0 0.0
        %2873 = vmatpush1.msra.mxu0 0.0
        %2874 = vmatprep.subr.mxu0 0.0
        %2875 = vmatpush1.msra.mxu0 0.0
        %2876 = vmatprep.subr.mxu0 0.0
        %2877 = vmatpush1.msra.mxu0 0.0
        %2878 = vmatprep.subr.mxu0 0.0
        %2879 = vmatpush1.msra.mxu0 0.0
        %2880 = vmatprep.subr.mxu0 0.0
        %2881 = vmatpush1.msra.mxu0 0.0
        %2882 = vmatprep.subr.mxu0 0.0
        %2883 = vmatpush1.msra.mxu0 0.0
        %2884 = vmatprep.subr.mxu0 0.0
        %2885 = vmatpush1.msra.mxu0 0.0
        %2886 = vmatprep.subr.mxu0 0.0
        %2887 = vmatpush1.msra.mxu0 0.0
        %2888 = vmatprep.mubr.f32.mxu0 0.0
        %2889 = vmatmul.mubr.f32.gmra.mrb[0].mxu0 %v2819
        %v2890 = vpop.f32.mrb[0].mxu0
        %v2891 = vadd.f32 %v1860, %v2890
        %v2892 = vpop.f32.mrb[0].mxu0
        %2893 = vmatprep.mubr.f32.mxu0 0.0
        %2894 = vmatmul.mubr.f32.gmra.mrb[0].mxu0 %v2822
        %v2895 = vpop.f32.mrb[0].mxu0
        %v2896 = vadd.f32 %v1860, %v2895
        %v2897 = vpop.f32.mrb[0].mxu0
        %2898 = vdwg.mxu0
        %v2899 = vmax.f32 %v2891, 0.0
        %v2900 = vmax.f32 %v2896, 0.0
        %v2902 = vsel %vm1540, %v2899, 0
        %v2905 = vsel %vm1540, %v2900, 0
        %2907 = vmatprep.subr.mxu0 0.0
        %2908 = vmatpush1.msra.mxu0 %v1945
        %2909 = vmatprep.subr.mxu0 0.0
        %2910 = vmatpush1.msra.mxu0 %v1946
        %2911 = vmatprep.subr.mxu0 0.0
        %2912 = vmatpush1.msra.mxu0 0.0
        %2913 = vmatprep.subr.mxu0 0.0
        %2914 = vmatpush1.msra.mxu0 0.0
        %2915 = vmatprep.subr.mxu0 0.0
        %2916 = vmatpush1.msra.mxu0 0.0
        %2917 = vmatprep.subr.mxu0 0.0
        %2918 = vmatpush1.msra.mxu0 0.0
        %2919 = vmatprep.subr.mxu0 0.0
        %2920 = vmatpush1.msra.mxu0 0.0
        %2921 = vmatprep.subr.mxu0 0.0
        %2922 = vmatpush1.msra.mxu0 0.0
        %2923 = vmatprep.subr.mxu0 0.0
        %2924 = vmatpush1.msra.mxu0 0.0
        %2925 = vmatprep.subr.mxu0 0.0
        %2926 = vmatpush1.msra.mxu0 0.0
        %2927 = vmatprep.subr.mxu0 0.0
        %2928 = vmatpush1.msra.mxu0 0.0
        %2929 = vmatprep.subr.mxu0 0.0
        %2930 = vmatpush1.msra.mxu0 0.0
        %2931 = vmatprep.subr.mxu0 0.0
        %2932 = vmatpush1.msra.mxu0 0.0
        %2933 = vmatprep.subr.mxu0 0.0
        %2934 = vmatpush1.msra.mxu0 0.0
        %2935 = vmatprep.subr.mxu0 0.0
        %2936 = vmatpush1.msra.mxu0 0.0
        %2937 = vmatprep.subr.mxu0 0.0
        %2938 = vmatpush1.msra.mxu0 0.0
        %2939 = vmatprep.subr.mxu0 0.0
        %2940 = vmatpush1.msra.mxu0 0.0
        %2941 = vmatprep.subr.mxu0 0.0
        %2942 = vmatpush1.msra.mxu0 0.0
        %2943 = vmatprep.subr.mxu0 0.0
        %2944 = vmatpush1.msra.mxu0 0.0
        %2945 = vmatprep.subr.mxu0 0.0
        %2946 = vmatpush1.msra.mxu0 0.0
        %2947 = vmatprep.subr.mxu0 0.0
        %2948 = vmatpush1.msra.mxu0 0.0
        %2949 = vmatprep.subr.mxu0 0.0
        %2950 = vmatpush1.msra.mxu0 0.0
        %2951 = vmatprep.subr.mxu0 0.0
        %2952 = vmatpush1.msra.mxu0 0.0
        %2953 = vmatprep.subr.mxu0 0.0
        %2954 = vmatpush1.msra.mxu0 0.0
        %2955 = vmatprep.subr.mxu0 0.0
        %2956 = vmatpush1.msra.mxu0 0.0
        %2957 = vmatprep.subr.mxu0 0.0
        %2958 = vmatpush1.msra.mxu0 0.0
        %2959 = vmatprep.subr.mxu0 0.0
        %2960 = vmatpush1.msra.mxu0 0.0
        %2961 = vmatprep.subr.mxu0 0.0
        %2962 = vmatpush1.msra.mxu0 0.0
        %2963 = vmatprep.subr.mxu0 0.0
        %2964 = vmatpush1.msra.mxu0 0.0
        %2965 = vmatprep.subr.mxu0 0.0
        %2966 = vmatpush1.msra.mxu0 0.0
        %2967 = vmatprep.subr.mxu0 0.0
        %2968 = vmatpush1.msra.mxu0 0.0
        %2969 = vmatprep.subr.mxu0 0.0
        %2970 = vmatpush1.msra.mxu0 0.0
        %2971 = vmatprep.mubr.f32.mxu0 0.0
        %2972 = vmatmul.mubr.f32.gmra.mrb[0].mxu0 %v2902
        %v2973 = vpop.f32.mrb[0].mxu0
        %v2974 = vadd.f32 %v1952, %v2973
        %v2975 = vpop.f32.mrb[0].mxu0
        %2976 = vmatprep.mubr.f32.mxu0 0.0
        %2977 = vmatmul.mubr.f32.gmra.mrb[0].mxu0 %v2905
        %v2978 = vpop.f32.mrb[0].mxu0
        %v2979 = vadd.f32 %v1952, %v2978
        %v2980 = vpop.f32.mrb[0].mxu0
        %2981 = vdwg.mxu0
        %v2982 = vmax.f32 %v2974, 0.0
        %v2983 = vmax.f32 %v2979, 0.0
        %2984 = vmatprep.subr.mxu0 0.0
        %2985 = vmatpush1.msra.mxu0 %v2982
        %2986 = vmatprep.subr.mxu0 0.0
        %2987 = vmatpush1.msra.mxu0 %v2983
        %2988 = vmatprep.subr.mxu0 0.0
        %2989 = vmatpush1.msra.mxu0 0.0
        %2990 = vmatprep.subr.mxu0 0.0
        %2991 = vmatpush1.msra.mxu0 0.0
        %2992 = vmatprep.subr.mxu0 0.0
        %2993 = vmatpush1.msra.mxu0 0.0
        %2994 = vmatprep.subr.mxu0 0.0
        %2995 = vmatpush1.msra.mxu0 0.0
        %2996 = vmatprep.subr.mxu0 0.0
        %2997 = vmatpush1.msra.mxu0 0.0
        %2998 = vmatprep.subr.mxu0 0.0
        %2999 = vmatpush1.msra.mxu0 0.0
        %3000 = vmatprep.subr.mxu0 0.0
        %3001 = vmatpush1.msra.mxu0 0.0
        %3002 = vmatprep.subr.mxu0 0.0
        %3003 = vmatpush1.msra.mxu0 0.0
        %3004 = vmatprep.subr.mxu0 0.0
        %3005 = vmatpush1.msra.mxu0 0.0
        %3006 = vmatprep.subr.mxu0 0.0
        %3007 = vmatpush1.msra.mxu0 0.0
        %3008 = vmatprep.subr.mxu0 0.0
        %3009 = vmatpush1.msra.mxu0 0.0
        %3010 = vmatprep.subr.mxu0 0.0
        %3011 = vmatpush1.msra.mxu0 0.0
        %3012 = vmatprep.subr.mxu0 0.0
        %3013 = vmatpush1.msra.mxu0 0.0
        %3014 = vmatprep.subr.mxu0 0.0
        %3015 = vmatpush1.msra.mxu0 0.0
        %3016 = vmatprep.subr.mxu0 0.0
        %3017 = vmatpush1.msra.mxu0 0.0
        %3018 = vmatprep.subr.mxu0 0.0
        %3019 = vmatpush1.msra.mxu0 0.0
        %3020 = vmatprep.subr.mxu0 0.0
        %3021 = vmatpush1.msra.mxu0 0.0
        %3022 = vmatprep.subr.mxu0 0.0
        %3023 = vmatpush1.msra.mxu0 0.0
        %3024 = vmatprep.subr.mxu0 0.0
        %3025 = vmatpush1.msra.mxu0 0.0
        %3026 = vmatprep.subr.mxu0 0.0
        %3027 = vmatpush1.msra.mxu0 0.0
        %3028 = vmatprep.subr.mxu0 0.0
        %3029 = vmatpush1.msra.mxu0 0.0
        %3030 = vmatprep.subr.mxu0 0.0
        %3031 = vmatpush1.msra.mxu0 0.0
        %3032 = vmatprep.subr.mxu0 0.0
        %3033 = vmatpush1.msra.mxu0 0.0
        %3034 = vmatprep.subr.mxu0 0.0
        %3035 = vmatpush1.msra.mxu0 0.0
        %3036 = vmatprep.subr.mxu0 0.0
        %3037 = vmatpush1.msra.mxu0 0.0
        %3038 = vmatprep.subr.mxu0 0.0
        %3039 = vmatpush1.msra.mxu0 0.0
        %3040 = vmatprep.subr.mxu0 0.0
        %3041 = vmatpush1.msra.mxu0 0.0
        %3042 = vmatprep.subr.mxu0 0.0
        %3043 = vmatpush1.msra.mxu0 0.0
        %3044 = vmatprep.subr.mxu0 0.0
        %3045 = vmatpush1.msra.mxu0 0.0
        %3046 = vmatprep.subr.mxu0 0.0
        %3047 = vmatpush1.msra.mxu0 0.0
        %3048 = vmatprep.mubr.f32.mxu0 0.0
        %3049 = vmatmul.mubr.f32.gmra.mrb[0].mxu0 %v2038
        %v3050 = vpop.f32.mrb[0].mxu0
        %v3051 = vadd.f32 0.0, %v3050
        %v3052 = vpop.f32.mrb[0].mxu0
        %3053 = vmatprep.mubr.f32.mxu0 0.0
        %3054 = vmatmul.mubr.f32.gmra.mrb[0].mxu0 %v2041
        %v3055 = vpop.f32.mrb[0].mxu0
        %v3056 = vadd.f32 0.0, %v3055
        %v3057 = vpop.f32.mrb[0].mxu0
        %3058 = vdwg.mxu0
        %v3059 = vmul.f32 %v2121, %v2982
        %v3060 = vmul.f32 %v2121, %v2983
        %v3061 = vmul.f32 %v2127, %v3051
        %v3062 = vmul.f32 %v2127, %v3056
        %v3063 = vadd.f32 %v3059, %v3061
        %v3064 = vadd.f32 %v3060, %v3062
        %3065 = vmatprep.subr.mxu0 0.0
        %3066 = vmatpush1.msra.mxu0 %v3051
        %3067 = vmatprep.subr.mxu0 0.0
        %3068 = vmatpush1.msra.mxu0 %v3056
        %3069 = vmatprep.subr.mxu0 0.0
        %3070 = vmatpush1.msra.mxu0 0.0
        %3071 = vmatprep.subr.mxu0 0.0
        %3072 = vmatpush1.msra.mxu0 0.0
        %3073 = vmatprep.subr.mxu0 0.0
        %3074 = vmatpush1.msra.mxu0 0.0
        %3075 = vmatprep.subr.mxu0 0.0
        %3076 = vmatpush1.msra.mxu0 0.0
        %3077 = vmatprep.subr.mxu0 0.0
        %3078 = vmatpush1.msra.mxu0 0.0
        %3079 = vmatprep.subr.mxu0 0.0
        %3080 = vmatpush1.msra.mxu0 0.0
        %3081 = vmatprep.subr.mxu0 0.0
        %3082 = vmatpush1.msra.mxu0 0.0
        %3083 = vmatprep.subr.mxu0 0.0
        %3084 = vmatpush1.msra.mxu0 0.0
        %3085 = vmatprep.subr.mxu0 0.0
        %3086 = vmatpush1.msra.mxu0 0.0
        %3087 = vmatprep.subr.mxu0 0.0
        %3088 = vmatpush1.msra.mxu0 0.0
        %3089 = vmatprep.subr.mxu0 0.0
        %3090 = vmatpush1.msra.mxu0 0.0
        %3091 = vmatprep.subr.mxu0 0.0
        %3092 = vmatpush1.msra.mxu0 0.0
        %3093 = vmatprep.subr.mxu0 0.0
        %3094 = vmatpush1.msra.mxu0 0.0
        %3095 = vmatprep.subr.mxu0 0.0
        %3096 = vmatpush1.msra.mxu0 0.0
        %3097 = vmatprep.subr.mxu0 0.0
        %3098 = vmatpush1.msra.mxu0 0.0
        %3099 = vmatprep.subr.mxu0 0.0
        %3100 = vmatpush1.msra.mxu0 0.0
        %3101 = vmatprep.subr.mxu0 0.0
        %3102 = vmatpush1.msra.mxu0 0.0
        %3103 = vmatprep.subr.mxu0 0.0
        %3104 = vmatpush1.msra.mxu0 0.0
        %3105 = vmatprep.subr.mxu0 0.0
        %3106 = vmatpush1.msra.mxu0 0.0
        %3107 = vmatprep.subr.mxu0 0.0
        %3108 = vmatpush1.msra.mxu0 0.0
        %3109 = vmatprep.subr.mxu0 0.0
        %3110 = vmatpush1.msra.mxu0 0.0
        %3111 = vmatprep.subr.mxu0 0.0
        %3112 = vmatpush1.msra.mxu0 0.0
        %3113 = vmatprep.subr.mxu0 0.0
        %3114 = vmatpush1.msra.mxu0 0.0
        %3115 = vmatprep.subr.mxu0 0.0
        %3116 = vmatpush1.msra.mxu0 0.0
        %3117 = vmatprep.subr.mxu0 0.0
        %3118 = vmatpush1.msra.mxu0 0.0
        %3119 = vmatprep.subr.mxu0 0.0
        %3120 = vmatpush1.msra.mxu0 0.0
        %3121 = vmatprep.subr.mxu0 0.0
        %3122 = vmatpush1.msra.mxu0 0.0
        %3123 = vmatprep.subr.mxu0 0.0
        %3124 = vmatpush1.msra.mxu0 0.0
        %3125 = vmatprep.subr.mxu0 0.0
        %3126 = vmatpush1.msra.mxu0 0.0
        %3127 = vmatprep.subr.mxu0 0.0
        %3128 = vmatpush1.msra.mxu0 0.0
        %3129 = vmatprep.mubr.f32.mxu0 0.0
        %3130 = vmatmul.mubr.f32.gmra.mrb[0].mxu0 %v2038
        %v3131 = vpop.f32.mrb[0].mxu0
        %v3132 = vadd.f32 0.0, %v3131
        %v3133 = vpop.f32.mrb[0].mxu0
        %3134 = vmatprep.mubr.f32.mxu0 0.0
        %3135 = vmatmul.mubr.f32.gmra.mrb[0].mxu0 %v2041
        %v3136 = vpop.f32.mrb[0].mxu0
        %v3137 = vadd.f32 0.0, %v3136
        %v3138 = vpop.f32.mrb[0].mxu0
        %3139 = vdwg.mxu0
        %v3140 = vmul.f32 %v3132, 2.0
        %v3141 = vmul.f32 %v3137, 2.0
        %v3142 = vsub.f32 %v3140, %v2982
        %v3143 = vsub.f32 %v3141, %v2983
        %v3144 = vmul.f32 %v2216, %v3142
        %v3145 = vmul.f32 %v2216, %v3143
        %v3146 = vadd.f32 %v3063, %v3144
        %v3147 = vadd.f32 %v3064, %v3145
        %3148 = vmatprep.subr.mxu0 0.0
        %3149 = vmatpush1.msra.mxu0 %v3142
        %3150 = vmatprep.subr.mxu0 0.0
        %3151 = vmatpush1.msra.mxu0 %v3143
        %3152 = vmatprep.subr.mxu0 0.0
        %3153 = vmatpush1.msra.mxu0 0.0
        %3154 = vmatprep.subr.mxu0 0.0
        %3155 = vmatpush1.msra.mxu0 0.0
        %3156 = vmatprep.subr.mxu0 0.0
        %3157 = vmatpush1.msra.mxu0 0.0
        %3158 = vmatprep.subr.mxu0 0.0
        %3159 = vmatpush1.msra.mxu0 0.0
        %3160 = vmatprep.subr.mxu0 0.0
        %3161 = vmatpush1.msra.mxu0 0.0
        %3162 = vmatprep.subr.mxu0 0.0
        %3163 = vmatpush1.msra.mxu0 0.0
        %3164 = vmatprep.subr.mxu0 0.0
        %3165 = vmatpush1.msra.mxu0 0.0
        %3166 = vmatprep.subr.mxu0 0.0
        %3167 = vmatpush1.msra.mxu0 0.0
        %3168 = vmatprep.subr.mxu0 0.0
        %3169 = vmatpush1.msra.mxu0 0.0
        %3170 = vmatprep.subr.mxu0 0.0
        %3171 = vmatpush1.msra.mxu0 0.0
        %3172 = vmatprep.subr.mxu0 0.0
        %3173 = vmatpush1.msra.mxu0 0.0
        %3174 = vmatprep.subr.mxu0 0.0
        %3175 = vmatpush1.msra.mxu0 0.0
        %3176 = vmatprep.subr.mxu0 0.0
        %3177 = vmatpush1.msra.mxu0 0.0
        %3178 = vmatprep.subr.mxu0 0.0
        %3179 = vmatpush1.msra.mxu0 0.0
        %3180 = vmatprep.subr.mxu0 0.0
        %3181 = vmatpush1.msra.mxu0 0.0
        %3182 = vmatprep.subr.mxu0 0.0
        %3183 = vmatpush1.msra.mxu0 0.0
        %3184 = vmatprep.subr.mxu0 0.0
        %3185 = vmatpush1.msra.mxu0 0.0
        %3186 = vmatprep.subr.mxu0 0.0
        %3187 = vmatpush1.msra.mxu0 0.0
        %3188 = vmatprep.subr.mxu0 0.0
        %3189 = vmatpush1.msra.mxu0 0.0
        %3190 = vmatprep.subr.mxu0 0.0
        %3191 = vmatpush1.msra.mxu0 0.0
        %3192 = vmatprep.subr.mxu0 0.0
        %3193 = vmatpush1.msra.mxu0 0.0
        %3194 = vmatprep.subr.mxu0 0.0
        %3195 = vmatpush1.msra.mxu0 0.0
        %3196 = vmatprep.subr.mxu0 0.0
        %3197 = vmatpush1.msra.mxu0 0.0
        %3198 = vmatprep.subr.mxu0 0.0
        %3199 = vmatpush1.msra.mxu0 0.0
        %3200 = vmatprep.subr.mxu0 0.0
        %3201 = vmatpush1.msra.mxu0 0.0
        %3202 = vmatprep.subr.mxu0 0.0
        %3203 = vmatpush1.msra.mxu0 0.0
        %3204 = vmatprep.subr.mxu0 0.0
        %3205 = vmatpush1.msra.mxu0 0.0
        %3206 = vmatprep.subr.mxu0 0.0
        %3207 = vmatpush1.msra.mxu0 0.0
        %3208 = vmatprep.subr.mxu0 0.0
        %3209 = vmatpush1.msra.mxu0 0.0
        %3210 = vmatprep.subr.mxu0 0.0
        %3211 = vmatpush1.msra.mxu0 0.0
        %3212 = vmatprep.mubr.f32.mxu0 0.0
        %3213 = vmatmul.mubr.f32.gmra.mrb[0].mxu0 %v2038
        %v3214 = vpop.f32.mrb[0].mxu0
        %v3215 = vadd.f32 0.0, %v3214
        %v3216 = vpop.f32.mrb[0].mxu0
        %3217 = vmatprep.mubr.f32.mxu0 0.0
        %3218 = vmatmul.mubr.f32.gmra.mrb[0].mxu0 %v2041
        %v3219 = vpop.f32.mrb[0].mxu0
        %v3220 = vadd.f32 0.0, %v3219
        %v3221 = vpop.f32.mrb[0].mxu0
        %3222 = vdwg.mxu0
        %v3223 = vmul.f32 %v3215, 2.0
        %v3224 = vmul.f32 %v3220, 2.0
        %v3225 = vsub.f32 %v3223, %v3051
        %v3226 = vsub.f32 %v3224, %v3056
        %v3227 = vmul.f32 %v2305, %v3225
        %v3228 = vmul.f32 %v2305, %v3226
        %v3229 = vadd.f32 %v3146, %v3227
        %v3230 = vadd.f32 %v3147, %v3228
        %v3232 = vsel %vm1269, %v3229, 0
        %v3235 = vsel %vm1269, %v3230, 0
        %3237 = vmatprep.subr.mxu0 0.0
        %3238 = vmatpush1.msra.mxu0 %v2311
        %3239 = vmatprep.subr.mxu0 0.0
        %3240 = vmatpush1.msra.mxu0 0.0
        %3241 = vmatprep.subr.mxu0 0.0
        %3242 = vmatpush1.msra.mxu0 0.0
        %3243 = vmatprep.subr.mxu0 0.0
        %3244 = vmatpush1.msra.mxu0 0.0
        %3245 = vmatprep.subr.mxu0 0.0
        %3246 = vmatpush1.msra.mxu0 0.0
        %3247 = vmatprep.subr.mxu0 0.0
        %3248 = vmatpush1.msra.mxu0 0.0
        %3249 = vmatprep.subr.mxu0 0.0
        %3250 = vmatpush1.msra.mxu0 0.0
        %3251 = vmatprep.subr.mxu0 0.0
        %3252 = vmatpush1.msra.mxu0 0.0
        %3253 = vmatprep.subr.mxu0 0.0
        %3254 = vmatpush1.msra.mxu0 0.0
        %3255 = vmatprep.subr.mxu0 0.0
        %3256 = vmatpush1.msra.mxu0 0.0
        %3257 = vmatprep.subr.mxu0 0.0
        %3258 = vmatpush1.msra.mxu0 0.0
        %3259 = vmatprep.subr.mxu0 0.0
        %3260 = vmatpush1.msra.mxu0 0.0
        %3261 = vmatprep.subr.mxu0 0.0
        %3262 = vmatpush1.msra.mxu0 0.0
        %3263 = vmatprep.subr.mxu0 0.0
        %3264 = vmatpush1.msra.mxu0 0.0
        %3265 = vmatprep.subr.mxu0 0.0
        %3266 = vmatpush1.msra.mxu0 0.0
        %3267 = vmatprep.subr.mxu0 0.0
        %3268 = vmatpush1.msra.mxu0 0.0
        %3269 = vmatprep.subr.mxu0 0.0
        %3270 = vmatpush1.msra.mxu0 0.0
        %3271 = vmatprep.subr.mxu0 0.0
        %3272 = vmatpush1.msra.mxu0 0.0
        %3273 = vmatprep.subr.mxu0 0.0
        %3274 = vmatpush1.msra.mxu0 0.0
        %3275 = vmatprep.subr.mxu0 0.0
        %3276 = vmatpush1.msra.mxu0 0.0
        %3277 = vmatprep.subr.mxu0 0.0
        %3278 = vmatpush1.msra.mxu0 0.0
        %3279 = vmatprep.subr.mxu0 0.0
        %3280 = vmatpush1.msra.mxu0 0.0
        %3281 = vmatprep.subr.mxu0 0.0
        %3282 = vmatpush1.msra.mxu0 0.0
        %3283 = vmatprep.subr.mxu0 0.0
        %3284 = vmatpush1.msra.mxu0 0.0
        %3285 = vmatprep.subr.mxu0 0.0
        %3286 = vmatpush1.msra.mxu0 0.0
        %3287 = vmatprep.subr.mxu0 0.0
        %3288 = vmatpush1.msra.mxu0 0.0
        %3289 = vmatprep.subr.mxu0 0.0
        %3290 = vmatpush1.msra.mxu0 0.0
        %3291 = vmatprep.subr.mxu0 0.0
        %3292 = vmatpush1.msra.mxu0 0.0
        %3293 = vmatprep.subr.mxu0 0.0
        %3294 = vmatpush1.msra.mxu0 0.0
        %3295 = vmatprep.subr.mxu0 0.0
        %3296 = vmatpush1.msra.mxu0 0.0
        %3297 = vmatprep.subr.mxu0 0.0
        %3298 = vmatpush1.msra.mxu0 0.0
        %3299 = vmatprep.subr.mxu0 0.0
        %3300 = vmatpush1.msra.mxu0 0.0
        %3301 = vmatprep.mubr.f32.mxu0 0.0
        %3302 = vmatmul.mubr.f32.gmra.mrb[0].mxu0 %v3232
        %v3303 = vpop.f32.mrb[0].mxu0
        %v3304 = vadd.f32 %v2391, %v3303
        %v3305 = vpop.f32.mrb[0].mxu0
        %3306 = vmatprep.mubr.f32.mxu0 0.0
        %3307 = vmatmul.mubr.f32.gmra.mrb[0].mxu0 %v3235
        %v3308 = vpop.f32.mrb[0].mxu0
        %v3309 = vadd.f32 %v2396, %v3308
        %v3310 = vpop.f32.mrb[0].mxu0
        %3311 = vdwg.mxu0
        %v3312 = vadd.f32 %v3304, %v2485
        %v3313 = vadd.f32 %v3309, %v2485
        %3314 = vmatprep.subr.mxu0 0.0
        %3315 = vmatpush1.msra.mxu0 %v2489
        %3316 = vmatprep.subr.mxu0 0.0
        %3317 = vmatpush1.msra.mxu0 %v2490
        %3318 = vmatprep.subr.mxu0 0.0
        %3319 = vmatpush1.msra.mxu0 %v2491
        %3320 = vmatprep.subr.mxu0 0.0
        %3321 = vmatpush1.msra.mxu0 %v2492
        %3322 = vmatprep.subr.mxu0 0.0
        %3323 = vmatpush1.msra.mxu0 0.0
        %3324 = vmatprep.subr.mxu0 0.0
        %3325 = vmatpush1.msra.mxu0 0.0
        %3326 = vmatprep.subr.mxu0 0.0
        %3327 = vmatpush1.msra.mxu0 0.0
        %3328 = vmatprep.subr.mxu0 0.0
        %3329 = vmatpush1.msra.mxu0 0.0
        %3330 = vmatprep.subr.mxu0 0.0
        %3331 = vmatpush1.msra.mxu0 0.0
        %3332 = vmatprep.subr.mxu0 0.0
        %3333 = vmatpush1.msra.mxu0 0.0
        %3334 = vmatprep.subr.mxu0 0.0
        %3335 = vmatpush1.msra.mxu0 0.0
        %3336 = vmatprep.subr.mxu0 0.0
        %3337 = vmatpush1.msra.mxu0 0.0
        %3338 = vmatprep.subr.mxu0 0.0
        %3339 = vmatpush1.msra.mxu0 0.0
        %3340 = vmatprep.subr.mxu0 0.0
        %3341 = vmatpush1.msra.mxu0 0.0
        %3342 = vmatprep.subr.mxu0 0.0
        %3343 = vmatpush1.msra.mxu0 0.0
        %3344 = vmatprep.subr.mxu0 0.0
        %3345 = vmatpush1.msra.mxu0 0.0
        %3346 = vmatprep.subr.mxu0 0.0
        %3347 = vmatpush1.msra.mxu0 0.0
        %3348 = vmatprep.subr.mxu0 0.0
        %3349 = vmatpush1.msra.mxu0 0.0
        %3350 = vmatprep.subr.mxu0 0.0
        %3351 = vmatpush1.msra.mxu0 0.0
        %3352 = vmatprep.subr.mxu0 0.0
        %3353 = vmatpush1.msra.mxu0 0.0
        %3354 = vmatprep.subr.mxu0 0.0
        %3355 = vmatpush1.msra.mxu0 0.0
        %3356 = vmatprep.subr.mxu0 0.0
        %3357 = vmatpush1.msra.mxu0 0.0
        %3358 = vmatprep.subr.mxu0 0.0
        %3359 = vmatpush1.msra.mxu0 0.0
        %3360 = vmatprep.subr.mxu0 0.0
        %3361 = vmatpush1.msra.mxu0 0.0
        %3362 = vmatprep.subr.mxu0 0.0
        %3363 = vmatpush1.msra.mxu0 0.0
        %3364 = vmatprep.subr.mxu0 0.0
        %3365 = vmatpush1.msra.mxu0 0.0
        %3366 = vmatprep.subr.mxu0 0.0
        %3367 = vmatpush1.msra.mxu0 0.0
        %3368 = vmatprep.subr.mxu0 0.0
        %3369 = vmatpush1.msra.mxu0 0.0
        %3370 = vmatprep.subr.mxu0 0.0
        %3371 = vmatpush1.msra.mxu0 0.0
        %3372 = vmatprep.subr.mxu0 0.0
        %3373 = vmatpush1.msra.mxu0 0.0
        %3374 = vmatprep.subr.mxu0 0.0
        %3375 = vmatpush1.msra.mxu0 0.0
        %3376 = vmatprep.subr.mxu0 0.0
        %3377 = vmatpush1.msra.mxu0 0.0
        %3378 = vmatprep.mubr.f32.mxu0 0.0
        %3379 = vmatmul.mubr.f32.gmra.mrb[0].mxu0 %v2656
        %v3380 = vpop.f32.mrb[0].mxu0
        %v3381 = vadd.f32 %v2498, %v3380
        %v3382 = vpop.f32.mrb[0].mxu0
        %3383 = vmatprep.mubr.f32.mxu0 0.0
        %3384 = vmatmul.mubr.f32.gmra.mrb[0].mxu0 %v2658
        %v3385 = vpop.f32.mrb[0].mxu0
        %v3386 = vadd.f32 %v2498, %v3385
        %v3387 = vpop.f32.mrb[0].mxu0
        %3388 = vdwg.mxu0
        %v3389 = vadd.f32 %v3312, %v3381
        %v3390 = vadd.f32 %v3313, %v3386
        %v3391 = vxor.u32 %v3389, 2147483648
        %v3392 = vxor.u32 %v3390, 2147483648
        %v3393 = vmul.f32 %v3391, 1.442695
        %v3394 = vpow.pop %v3393
        %v3395 = vmul.f32 %v3392, 1.442695
        %v3396 = vpow.pop %v3395
        %v3397 = vadd.f32 %v3394, 1.0
        %v3398 = vadd.f32 %v3396, 1.0
        %v3399 = vrcp.pop %v3397
        %v3400 = vmul.f32 1.0, %v3399
        %v3401 = vrcp.pop %v3398
        %v3402 = vmul.f32 1.0, %v3401
        %3405 = vrot.lane.b32.xlu0 %v3381, 64
        %v3406 = vpop.permute.xlu0 %3405
        %3407 = vrot.lane.b32.xlu0 %v3386, 64
        %v3408 = vpop.permute.xlu0 %3407
        %v3411 = vmul.f32 %v3400, %v3406
        %v3412 = vmul.f32 %v3402, %v3408
        %3415 = vrot.lane.b32.xlu0 %v3411, 64
        %v3416 = vpop.permute.xlu0 %3415
        %3417 = vrot.lane.b32.xlu0 %v3412, 64
        %v3418 = vpop.permute.xlu0 %3417
        %v3421 = vadd.f32 %v3312, %v3416
        %v3422 = vadd.f32 %v3313, %v3418
        %v3423 = vtanh.pop %v3421
        %v3424 = vtanh.pop %v3422
        %v3425 = vsub.f32 1.0, %v3400
        %v3426 = vsub.f32 1.0, %v3402
        %3429 = vrot.lane.b32.xlu0 %v3423, 96
        %v3430 = vpop.permute.xlu0 %3429
        %3431 = vrot.lane.b32.xlu0 %v3424, 96
        %v3432 = vpop.permute.xlu0 %3431
        %v3435 = vmul.f32 %v3425, %v3430
        %v3436 = vmul.f32 %v3426, %v3432
        %v3437 = vmul.f32 %v3400, %v2637
        %v3438 = vmul.f32 %v3402, %v2638
        %v3439 = vadd.f32 %v3435, %v3437
        %v3440 = vadd.f32 %v3436, %v3438
        %3443 = vrot.lane.b32.xlu0 %v3439, 96
        %v3444 = vpop.permute.xlu0 %3443
        %3445 = vrot.lane.b32.xlu0 %v3440, 96
        %v3446 = vpop.permute.xlu0 %3445
        %v3447 = vsel %vm1447, %v3444, 0
        %v3449 = vsel %vm1447, %v3446, 0
        %3451 = vmatprep.subr.mxu0 0.0
        %3452 = vmatpush1.msra.mxu0 %v2639
        %3453 = vmatprep.subr.mxu0 0.0
        %3454 = vmatpush1.msra.mxu0 %v2640
        %3455 = vmatprep.subr.mxu0 0.0
        %3456 = vmatpush1.msra.mxu0 %v2641
        %3457 = vmatprep.subr.mxu0 0.0
        %3458 = vmatpush1.msra.mxu0 %v2642
        %3459 = vmatprep.subr.mxu0 0.0
        %3460 = vmatpush1.msra.mxu0 0.0
        %3461 = vmatprep.subr.mxu0 0.0
        %3462 = vmatpush1.msra.mxu0 0.0
        %3463 = vmatprep.subr.mxu0 0.0
        %3464 = vmatpush1.msra.mxu0 0.0
        %3465 = vmatprep.subr.mxu0 0.0
        %3466 = vmatpush1.msra.mxu0 0.0
        %3467 = vmatprep.subr.mxu0 0.0
        %3468 = vmatpush1.msra.mxu0 0.0
        %3469 = vmatprep.subr.mxu0 0.0
        %3470 = vmatpush1.msra.mxu0 0.0
        %3471 = vmatprep.subr.mxu0 0.0
        %3472 = vmatpush1.msra.mxu0 0.0
        %3473 = vmatprep.subr.mxu0 0.0
        %3474 = vmatpush1.msra.mxu0 0.0
        %3475 = vmatprep.subr.mxu0 0.0
        %3476 = vmatpush1.msra.mxu0 0.0
        %3477 = vmatprep.subr.mxu0 0.0
        %3478 = vmatpush1.msra.mxu0 0.0
        %3479 = vmatprep.subr.mxu0 0.0
        %3480 = vmatpush1.msra.mxu0 0.0
        %3481 = vmatprep.subr.mxu0 0.0
        %3482 = vmatpush1.msra.mxu0 0.0
        %3483 = vmatprep.subr.mxu0 0.0
        %3484 = vmatpush1.msra.mxu0 0.0
        %3485 = vmatprep.subr.mxu0 0.0
        %3486 = vmatpush1.msra.mxu0 0.0
        %3487 = vmatprep.subr.mxu0 0.0
        %3488 = vmatpush1.msra.mxu0 0.0
        %3489 = vmatprep.subr.mxu0 0.0
        %3490 = vmatpush1.msra.mxu0 0.0
        %3491 = vmatprep.subr.mxu0 0.0
        %3492 = vmatpush1.msra.mxu0 0.0
        %3493 = vmatprep.subr.mxu0 0.0
        %3494 = vmatpush1.msra.mxu0 0.0
        %3495 = vmatprep.subr.mxu0 0.0
        %3496 = vmatpush1.msra.mxu0 0.0
        %3497 = vmatprep.subr.mxu0 0.0
        %3498 = vmatpush1.msra.mxu0 0.0
        %3499 = vmatprep.subr.mxu0 0.0
        %3500 = vmatpush1.msra.mxu0 0.0
        %3501 = vmatprep.subr.mxu0 0.0
        %3502 = vmatpush1.msra.mxu0 0.0
        %3503 = vmatprep.subr.mxu0 0.0
        %3504 = vmatpush1.msra.mxu0 0.0
        %3505 = vmatprep.subr.mxu0 0.0
        %3506 = vmatpush1.msra.mxu0 0.0
        %3507 = vmatprep.subr.mxu0 0.0
        %3508 = vmatpush1.msra.mxu0 0.0
        %3509 = vmatprep.subr.mxu0 0.0
        %3510 = vmatpush1.msra.mxu0 0.0
        %3511 = vmatprep.subr.mxu0 0.0
        %3512 = vmatpush1.msra.mxu0 0.0
        %3513 = vmatprep.subr.mxu0 0.0
        %3514 = vmatpush1.msra.mxu0 0.0
        %3515 = vmatprep.mubr.f32.mxu0 0.0
        %3516 = vmatmul.mubr.f32.gmra.mrb[0].mxu0 %v3447
        %v3517 = vpop.f32.mrb[0].mxu0
        %v3518 = vadd.f32 %v2648, %v3517
        %v3519 = vpop.f32.mrb[0].mxu0
        %3520 = vmatprep.mubr.f32.mxu0 0.0
        %3521 = vmatmul.mubr.f32.gmra.mrb[0].mxu0 %v3449
        %v3522 = vpop.f32.mrb[0].mxu0
        %v3523 = vadd.f32 %v2648, %v3522
        %v3524 = vpop.f32.mrb[0].mxu0
        %3525 = vdwg.mxu0
        %v3526 = vld [vmem:[%s57] sm:$0xff]
        %v3527 = vld [vmem:[%s59] sm:$0x1]
        %v3529 = vlaneseq
        %v3530 = vshrl.u32 %v3529, 7
        %v3531 = vsub.s32 0, %v3530
        %v3532 = vrot.slane %v3527, %v3531
        %v3535 = vsel %vm1269, %v3518, 0
        %v3538 = vsel %vm1269, %v3523, 0
        %3540 = vmatprep.subr.mxu0 0.0
        %3541 = vmatpush1.msra.mxu0 %v3526
        %3542 = vmatprep.subr.mxu0 0.0
        %3543 = vmatpush1.msra.mxu0 0.0
        %3544 = vmatprep.subr.mxu0 0.0
        %3545 = vmatpush1.msra.mxu0 0.0
        %3546 = vmatprep.subr.mxu0 0.0
        %3547 = vmatpush1.msra.mxu0 0.0
        %3548 = vmatprep.subr.mxu0 0.0
        %3549 = vmatpush1.msra.mxu0 0.0
        %3550 = vmatprep.subr.mxu0 0.0
        %3551 = vmatpush1.msra.mxu0 0.0
        %3552 = vmatprep.subr.mxu0 0.0
        %3553 = vmatpush1.msra.mxu0 0.0
        %3554 = vmatprep.subr.mxu0 0.0
        %3555 = vmatpush1.msra.mxu0 0.0
        %3556 = vmatprep.subr.mxu0 0.0
        %3557 = vmatpush1.msra.mxu0 0.0
        %3558 = vmatprep.subr.mxu0 0.0
        %3559 = vmatpush1.msra.mxu0 0.0
        %3560 = vmatprep.subr.mxu0 0.0
        %3561 = vmatpush1.msra.mxu0 0.0
        %3562 = vmatprep.subr.mxu0 0.0
        %3563 = vmatpush1.msra.mxu0 0.0
        %3564 = vmatprep.subr.mxu0 0.0
        %3565 = vmatpush1.msra.mxu0 0.0
        %3566 = vmatprep.subr.mxu0 0.0
        %3567 = vmatpush1.msra.mxu0 0.0
        %3568 = vmatprep.subr.mxu0 0.0
        %3569 = vmatpush1.msra.mxu0 0.0
        %3570 = vmatprep.subr.mxu0 0.0
        %3571 = vmatpush1.msra.mxu0 0.0
        %3572 = vmatprep.subr.mxu0 0.0
        %3573 = vmatpush1.msra.mxu0 0.0
        %3574 = vmatprep.subr.mxu0 0.0
        %3575 = vmatpush1.msra.mxu0 0.0
        %3576 = vmatprep.subr.mxu0 0.0
        %3577 = vmatpush1.msra.mxu0 0.0
        %3578 = vmatprep.subr.mxu0 0.0
        %3579 = vmatpush1.msra.mxu0 0.0
        %3580 = vmatprep.subr.mxu0 0.0
        %3581 = vmatpush1.msra.mxu0 0.0
        %3582 = vmatprep.subr.mxu0 0.0
        %3583 = vmatpush1.msra.mxu0 0.0
        %3584 = vmatprep.subr.mxu0 0.0
        %3585 = vmatpush1.msra.mxu0 0.0
        %3586 = vmatprep.subr.mxu0 0.0
        %3587 = vmatpush1.msra.mxu0 0.0
        %3588 = vmatprep.subr.mxu0 0.0
        %3589 = vmatpush1.msra.mxu0 0.0
        %3590 = vmatprep.subr.mxu0 0.0
        %3591 = vmatpush1.msra.mxu0 0.0
        %3592 = vmatprep.subr.mxu0 0.0
        %3593 = vmatpush1.msra.mxu0 0.0
        %3594 = vmatprep.subr.mxu0 0.0
        %3595 = vmatpush1.msra.mxu0 0.0
        %3596 = vmatprep.subr.mxu0 0.0
        %3597 = vmatpush1.msra.mxu0 0.0
        %3598 = vmatprep.subr.mxu0 0.0
        %3599 = vmatpush1.msra.mxu0 0.0
        %3600 = vmatprep.subr.mxu0 0.0
        %3601 = vmatpush1.msra.mxu0 0.0
        %3602 = vmatprep.subr.mxu0 0.0
        %3603 = vmatpush1.msra.mxu0 0.0
        %3604 = vmatprep.mubr.f32.mxu0 0.0
        %3605 = vmatmul.mubr.f32.gmra.mrb[0].mxu0 %v3535
        %v3606 = vpop.f32.mrb[0].mxu0
        %v3607 = vadd.f32 %v3532, %v3606
        %v3608 = vpop.f32.mrb[0].mxu0
        %3609 = vmatprep.mubr.f32.mxu0 0.0
        %3610 = vmatmul.mubr.f32.gmra.mrb[0].mxu0 %v3538
        %v3611 = vpop.f32.mrb[0].mxu0
        %v3612 = vadd.f32 %v3532, %v3611
        %v3613 = vpop.f32.mrb[0].mxu0
        %3614 = vdwg.mxu0
        %v3615 = vld [vmem:[%s61] sm:$0xff]
        %v3616 = vld [vmem:[%s61 + $0x8] sm:$0xff]
        %v3617 = vld [vmem:[%s61 + $0x10] sm:$0xff]
        %v3618 = vld [vmem:[%s61 + $0x18] sm:$0xff]
        %v3619 = vld [vmem:[%s63] sm:$0x1]
        %v3621 = vlaneseq
        %v3622 = vshrl.u32 %v3621, 7
        %v3623 = vsub.s32 0, %v3622
        %v3624 = vrot.slane %v3619, %v3623
        %v3627 = vsel %vm1447, %v3607, 0
        %v3630 = vsel %vm1447, %v3612, 0
        %3632 = vmatprep.subr.mxu0 0.0
        %3633 = vmatpush1.msra.mxu0 %v3615
        %3634 = vmatprep.subr.mxu0 0.0
        %3635 = vmatpush1.msra.mxu0 %v3616
        %3636 = vmatprep.subr.mxu0 0.0
        %3637 = vmatpush1.msra.mxu0 %v3617
        %3638 = vmatprep.subr.mxu0 0.0
        %3639 = vmatpush1.msra.mxu0 %v3618
        %3640 = vmatprep.subr.mxu0 0.0
        %3641 = vmatpush1.msra.mxu0 0.0
        %3642 = vmatprep.subr.mxu0 0.0
        %3643 = vmatpush1.msra.mxu0 0.0
        %3644 = vmatprep.subr.mxu0 0.0
        %3645 = vmatpush1.msra.mxu0 0.0
        %3646 = vmatprep.subr.mxu0 0.0
        %3647 = vmatpush1.msra.mxu0 0.0
        %3648 = vmatprep.subr.mxu0 0.0
        %3649 = vmatpush1.msra.mxu0 0.0
        %3650 = vmatprep.subr.mxu0 0.0
        %3651 = vmatpush1.msra.mxu0 0.0
        %3652 = vmatprep.subr.mxu0 0.0
        %3653 = vmatpush1.msra.mxu0 0.0
        %3654 = vmatprep.subr.mxu0 0.0
        %3655 = vmatpush1.msra.mxu0 0.0
        %3656 = vmatprep.subr.mxu0 0.0
        %3657 = vmatpush1.msra.mxu0 0.0
        %3658 = vmatprep.subr.mxu0 0.0
        %3659 = vmatpush1.msra.mxu0 0.0
        %3660 = vmatprep.subr.mxu0 0.0
        %3661 = vmatpush1.msra.mxu0 0.0
        %3662 = vmatprep.subr.mxu0 0.0
        %3663 = vmatpush1.msra.mxu0 0.0
        %3664 = vmatprep.subr.mxu0 0.0
        %3665 = vmatpush1.msra.mxu0 0.0
        %3666 = vmatprep.subr.mxu0 0.0
        %3667 = vmatpush1.msra.mxu0 0.0
        %3668 = vmatprep.subr.mxu0 0.0
        %3669 = vmatpush1.msra.mxu0 0.0
        %3670 = vmatprep.subr.mxu0 0.0
        %3671 = vmatpush1.msra.mxu0 0.0
        %3672 = vmatprep.subr.mxu0 0.0
        %3673 = vmatpush1.msra.mxu0 0.0
        %3674 = vmatprep.subr.mxu0 0.0
        %3675 = vmatpush1.msra.mxu0 0.0
        %3676 = vmatprep.subr.mxu0 0.0
        %3677 = vmatpush1.msra.mxu0 0.0
        %3678 = vmatprep.subr.mxu0 0.0
        %3679 = vmatpush1.msra.mxu0 0.0
        %3680 = vmatprep.subr.mxu0 0.0
        %3681 = vmatpush1.msra.mxu0 0.0
        %3682 = vmatprep.subr.mxu0 0.0
        %3683 = vmatpush1.msra.mxu0 0.0
        %3684 = vmatprep.subr.mxu0 0.0
        %3685 = vmatpush1.msra.mxu0 0.0
        %3686 = vmatprep.subr.mxu0 0.0
        %3687 = vmatpush1.msra.mxu0 0.0
        %3688 = vmatprep.subr.mxu0 0.0
        %3689 = vmatpush1.msra.mxu0 0.0
        %3690 = vmatprep.subr.mxu0 0.0
        %3691 = vmatpush1.msra.mxu0 0.0
        %3692 = vmatprep.subr.mxu0 0.0
        %3693 = vmatpush1.msra.mxu0 0.0
        %3694 = vmatprep.subr.mxu0 0.0
        %3695 = vmatpush1.msra.mxu0 0.0
        %3696 = vmatprep.mubr.f32.mxu0 0.0
        %3697 = vmatmul.mubr.f32.gmra.mrb[0].mxu0 %v3627
        %v3698 = vpop.f32.mrb[0].mxu0
        %v3699 = vadd.f32 %v3624, %v3698
        %v3700 = vpop.f32.mrb[0].mxu0
        %3701 = vmatprep.mubr.f32.mxu0 0.0
        %3702 = vmatmul.mubr.f32.gmra.mrb[0].mxu0 %v3630
        %v3703 = vpop.f32.mrb[0].mxu0
        %v3704 = vadd.f32 %v3624, %v3703
        %v3705 = vpop.f32.mrb[0].mxu0
        %3706 = vdwg.mxu0
        %v3707 = vld [vmem:[%s65] sm:$0xff]
        %v3708 = vld [vmem:[%s65 + $0x8] sm:$0xff]
        %v3709 = vld [vmem:[%s67] sm:$0x1]
        %v3711 = vlaneseq
        %v3712 = vshrl.u32 %v3711, 7
        %v3713 = vsub.s32 0, %v3712
        %v3714 = vrot.slane %v3709, %v3713
        %v3717 = vsel %vm1540, %v3699, 0
        %v3720 = vsel %vm1540, %v3704, 0
        %3722 = vmatprep.subr.mxu0 0.0
        %3723 = vmatpush1.msra.mxu0 %v3707
        %3724 = vmatprep.subr.mxu0 0.0
        %3725 = vmatpush1.msra.mxu0 %v3708
        %3726 = vmatprep.subr.mxu0 0.0
        %3727 = vmatpush1.msra.mxu0 0.0
        %3728 = vmatprep.subr.mxu0 0.0
        %3729 = vmatpush1.msra.mxu0 0.0
        %3730 = vmatprep.subr.mxu0 0.0
        %3731 = vmatpush1.msra.mxu0 0.0
        %3732 = vmatprep.subr.mxu0 0.0
        %3733 = vmatpush1.msra.mxu0 0.0
        %3734 = vmatprep.subr.mxu0 0.0
        %3735 = vmatpush1.msra.mxu0 0.0
        %3736 = vmatprep.subr.mxu0 0.0
        %3737 = vmatpush1.msra.mxu0 0.0
        %3738 = vmatprep.subr.mxu0 0.0
        %3739 = vmatpush1.msra.mxu0 0.0
        %3740 = vmatprep.subr.mxu0 0.0
        %3741 = vmatpush1.msra.mxu0 0.0
        %3742 = vmatprep.subr.mxu0 0.0
        %3743 = vmatpush1.msra.mxu0 0.0
        %3744 = vmatprep.subr.mxu0 0.0
        %3745 = vmatpush1.msra.mxu0 0.0
        %3746 = vmatprep.subr.mxu0 0.0
        %3747 = vmatpush1.msra.mxu0 0.0
        %3748 = vmatprep.subr.mxu0 0.0
        %3749 = vmatpush1.msra.mxu0 0.0
        %3750 = vmatprep.subr.mxu0 0.0
        %3751 = vmatpush1.msra.mxu0 0.0
        %3752 = vmatprep.subr.mxu0 0.0
        %3753 = vmatpush1.msra.mxu0 0.0
        %3754 = vmatprep.subr.mxu0 0.0
        %3755 = vmatpush1.msra.mxu0 0.0
        %3756 = vmatprep.subr.mxu0 0.0
        %3757 = vmatpush1.msra.mxu0 0.0
        %3758 = vmatprep.subr.mxu0 0.0
        %3759 = vmatpush1.msra.mxu0 0.0
        %3760 = vmatprep.subr.mxu0 0.0
        %3761 = vmatpush1.msra.mxu0 0.0
        %3762 = vmatprep.subr.mxu0 0.0
        %3763 = vmatpush1.msra.mxu0 0.0
        %3764 = vmatprep.subr.mxu0 0.0
        %3765 = vmatpush1.msra.mxu0 0.0
        %3766 = vmatprep.subr.mxu0 0.0
        %3767 = vmatpush1.msra.mxu0 0.0
        %3768 = vmatprep.subr.mxu0 0.0
        %3769 = vmatpush1.msra.mxu0 0.0
        %3770 = vmatprep.subr.mxu0 0.0
        %3771 = vmatpush1.msra.mxu0 0.0
        %3772 = vmatprep.subr.mxu0 0.0
        %3773 = vmatpush1.msra.mxu0 0.0
        %3774 = vmatprep.subr.mxu0 0.0
        %3775 = vmatpush1.msra.mxu0 0.0
        %3776 = vmatprep.subr.mxu0 0.0
        %3777 = vmatpush1.msra.mxu0 0.0
        %3778 = vmatprep.subr.mxu0 0.0
        %3779 = vmatpush1.msra.mxu0 0.0
        %3780 = vmatprep.subr.mxu0 0.0
        %3781 = vmatpush1.msra.mxu0 0.0
        %3782 = vmatprep.subr.mxu0 0.0
        %3783 = vmatpush1.msra.mxu0 0.0
        %3784 = vmatprep.subr.mxu0 0.0
        %3785 = vmatpush1.msra.mxu0 0.0
        %3786 = vmatprep.mubr.f32.mxu0 0.0
        %3787 = vmatmul.mubr.f32.gmra.mrb[0].mxu0 %v3717
        %v3788 = vpop.f32.mrb[0].mxu0
        %v3789 = vadd.f32 %v3714, %v3788
        %v3790 = vpop.f32.mrb[0].mxu0
        %3791 = vmatprep.mubr.f32.mxu0 0.0
        %3792 = vmatmul.mubr.f32.gmra.mrb[0].mxu0 %v3720
        %v3793 = vpop.f32.mrb[0].mxu0
        %v3794 = vadd.f32 %v3714, %v3793
        %v3795 = vpop.f32.mrb[0].mxu0
        %3796 = vdwg.mxu0
        %3797 = vst.msk [vmem:[%s1247] sm:$0xff] %vm1623, %v3789
        %3798 = vst.msk [vmem:[%s1247 + $0x8] sm:$0xff] %vm1623, %v3794
        %3799 = vst.msk [vmem:[%s1252] sm:$0xff] %vm1269, %v3518
        %3800 = vst.msk [vmem:[%s1252 + $0x8] sm:$0xff] %vm1269, %v3523
        %3803 = vst.msk [vmem:[%s1208] sm:$0xff] %vm1447, %v3444
        %3804 = vst.msk [vmem:[%s1208 + $0x8] sm:$0xff] %vm1447, %v3446
        %p3805 = scmp.lt.s32.totalorder %s93, 1
        %s3806 = scalar_select %p3805, %s93, 1
        %s3807 = smul.addr %s3806, 2
        %s3808 = smul.addr %s3807, 8
        %s3809 = scalar_lea.vmem %s69, %s3808
        %p3810 = scmp.lt.s32.totalorder %s93, 1
        %s3811 = scalar_select %p3810, %s93, 1
        %s3812 = smul.addr %s3811, 2
        %s3813 = smul.addr %s3812, 8
        %s3814 = scalar_lea.vmem %s71, %s3813
        %s3815 = sand.u32 %s897, 1
        %s3816 = scalar_lea.sflag [#allocation3], %s3815
        %s3817 = sand.u32 %s897, 1
        %s3818 = smul.addr %s3817, 16
        %s3819 = scalar_lea.vmem [#allocation2], %s3818
        %s3820 = sand.u32 %s923, 1
        %s3821 = scalar_lea.sflag [#allocation5], %s3820
        %s3822 = sand.u32 %s923, 1
        %s3823 = scalar_lea.vmem [#allocation4], %s3822
        // Predicated region
        $region157: #{sp_gnn_forward.1} parent=155 // pred_check
          %p3824 = pneg %p855
        $region158: #{sp_gnn_forward.1} parent=155 // pred_check_branch
          %3826 = sbr.rel (%p3824) target = $region160
        $region159: #{sp_gnn_forward.1} parent=155 // pred_region
          _
        $region160: #{sp_gnn_forward.1} parent=155 // pred_fallthru
          _
        // Predicated region
        $region161: #{sp_gnn_forward.1} parent=155 // pred_check
          %p3827 = pneg %p881
        $region162: #{sp_gnn_forward.1} parent=155 // pred_check_branch
          %3829 = sbr.rel (%p3827) target = $region164
        $region163: #{sp_gnn_forward.1} parent=155 // pred_region
          _
        $region164: #{sp_gnn_forward.1} parent=155 // pred_fallthru
          _
        // Predicated region
        $region165: #{sp_gnn_forward.1} parent=155 // pred_check
          %p3830 = pneg %p907
        $region166: #{sp_gnn_forward.1} parent=155 // pred_check_branch
          %3832 = sbr.rel (%p3830) target = $region168
        $region167: #{sp_gnn_forward.1} parent=155 // pred_region
          %s3834 = ssub.s32 256, 256
          %3835 = vsyncadd %s3816, %s3834
          %s3836 = smul.addr %s93, 2
          %s3837 = smul.addr %s3836, 128
          %s3838 = scalar_lea.hbm %s73, %s3837
          %s3839 = sshll.u32 %s3819, 4
          %s3840 = int_to_ptr.vmem [resolvable:$true] %s3839
          %3845 = dma.vmem_to_hbm [thread:$0]  %s3840, 256, %s3838, %s3816, 128, 128, 8
        $region168: #{sp_gnn_forward.1} parent=155 // pred_fallthru
          _
        // Predicated region
        $region169: #{sp_gnn_forward.1} parent=155 // pred_check
          %p3846 = pneg %p933
        $region170: #{sp_gnn_forward.1} parent=155 // pred_check_branch
          %3848 = sbr.rel (%p3846) target = $region172
        $region171: #{sp_gnn_forward.1} parent=155 // pred_region
          %s3850 = ssub.s32 16, 16
          %3851 = vsyncadd %s3821, %s3850
          %s3852 = smul.addr %s93, 16
          %s3853 = scalar_lea.hbm %s75, %s3852
          %s3855 = sshll.u32 %s3823, 4
          %s3856 = int_to_ptr.vmem [resolvable:$true] %s3855
          %3858 = dma.vmem_to_hbm [thread:$0]  %s3856, 16, %s3853, %s3821
        $region172: #{sp_gnn_forward.1} parent=155 // pred_fallthru
          _
      $region156: #{sp_gnn_forward.1} parent=5 // pred_fallthru
        _
      %p3859 = scmp.le.s32.totalorder 2, %s88
      // Predicated region
      $region173: #{sp_gnn_forward.1} parent=5 // pred_check
        %p3860 = pneg %p3859
      $region174: #{sp_gnn_forward.1} parent=5 // pred_check_branch
        %3862 = sbr.rel (%p3860) target = $region176
      $region175: #{sp_gnn_forward.1} parent=5 // pred_region
        %s3863 = ssub.s32 %s88, 2
        // Predicated region
        $region177: #{sp_gnn_forward.1} parent=175 // pred_check
          %p3864 = pneg %p861
        $region178: #{sp_gnn_forward.1} parent=175 // pred_check_branch
          %3866 = sbr.rel (%p3864) target = $region180
        $region179: #{sp_gnn_forward.1} parent=175 // pred_region
          %p3867 = scmp.lt.s32.totalorder %s94, 1
          %s3868 = scalar_select %p3867, %s94, 1
          %s3869 = smul.addr %s3868, 2
          %s3870 = smul.addr %s3869, 8
          %s3871 = scalar_lea.vmem %s69, %s3870
        $region180: #{sp_gnn_forward.1} parent=175 // pred_fallthru
          _
        // Predicated region
        $region181: #{sp_gnn_forward.1} parent=175 // pred_check
          %p3872 = pneg %p887
        $region182: #{sp_gnn_forward.1} parent=175 // pred_check_branch
          %3874 = sbr.rel (%p3872) target = $region184
        $region183: #{sp_gnn_forward.1} parent=175 // pred_region
          %p3875 = scmp.lt.s32.totalorder %s94, 1
          %s3876 = scalar_select %p3875, %s94, 1
          %s3877 = smul.addr %s3876, 2
          %s3878 = smul.addr %s3877, 8
          %s3879 = scalar_lea.vmem %s71, %s3878
        $region184: #{sp_gnn_forward.1} parent=175 // pred_fallthru
          _
        // Predicated region
        $region185: #{sp_gnn_forward.1} parent=175 // pred_check
          %p3880 = pneg %p913
        $region186: #{sp_gnn_forward.1} parent=175 // pred_check_branch
          %3882 = sbr.rel (%p3880) target = $region188
        $region187: #{sp_gnn_forward.1} parent=175 // pred_region
          %s3883 = sand.u32 %s898, 1
          %s3884 = scalar_lea.sflag [#allocation3], %s3883
          %s3885 = sand.u32 %s898, 1
          %s3886 = smul.addr %s3885, 16
          %s3887 = scalar_lea.vmem [#allocation2], %s3886
          %3888 = dma.done %s3884, 256
        $region188: #{sp_gnn_forward.1} parent=175 // pred_fallthru
          _
        // Predicated region
        $region189: #{sp_gnn_forward.1} parent=175 // pred_check
          %p3889 = pneg %p939
        $region190: #{sp_gnn_forward.1} parent=175 // pred_check_branch
          %3891 = sbr.rel (%p3889) target = $region192
        $region191: #{sp_gnn_forward.1} parent=175 // pred_region
          %s3892 = sand.u32 %s924, 1
          %s3893 = scalar_lea.sflag [#allocation5], %s3892
          %s3894 = sand.u32 %s924, 1
          %s3895 = scalar_lea.vmem [#allocation4], %s3894
          %3896 = dma.done %s3893, 16
        $region192: #{sp_gnn_forward.1} parent=175 // pred_fallthru
          _
      $region176: #{sp_gnn_forward.1} parent=5 // pred_fallthru
        _
    $region6: #{sp_gnn_forward.1} parent=1 // loop_footer
      %s92 = sadd.s32 1, %s88
    $region7: #{sp_gnn_forward.1} parent=1 // loop_footer_branch
      %87 = sbr.rel target = $region3
    $region8: #{sp_gnn_forward.1} parent=1 // loop_exit
      _
    %3897 = vsyncpa [#allocation3], 1
    %s3898 = scalar_lea.sflag [#allocation3], 1
    %3899 = vsyncpa %s3898, 1
    %3900 = vsyncpa [#allocation5], 1
    %s3901 = scalar_lea.sflag [#allocation5], 1
    %3902 = vsyncpa %s3901, 1

</llo_original>
